<compile_context>
chip_gen: v7x
topology: tpu7x:2x2x1
jax: 0.10.0
libtpu: 0.0.40
codegen_flags: <defaults>
</compile_context>

<pallas_src>
import math
import functools
import numpy as np

import jax
import jax.numpy as jnp
from jax.experimental import pallas as pl
from jax.experimental.pallas import tpu as pltpu


# ----------------------------------------------------------------------------- fused kernel
def _fused_forward_kernel(
        # scalar prefetch (SMEM)
        lengths_ref,
        # per-block activations (Bb batch rows per grid step)
        x_in_ref, xs_ref,
        # weights (whole arrays, VMEM-resident across the grid)
        w_in_ref, b_in_ref,
        wqkv_ref, bqkv_ref, wo_ref,
        w1_ref, b1_ref, w2_ref,
        vecD_ref,                      # packed per-layer vectors: bo, g1, bt1, b2, g2, bt2
        emb_w_ref, emb_b_ref,
        m1w_ref, m1b_ref, m2w_ref, m2b_ref,
        # output
        o_ref,
        *, nhead, nlayers, S, Bb, aggreg):
    g = pl.program_id(0)
    D = wqkv_ref.shape[1]
    hd = D // nhead
    rows = Bb * S
    scale = 1.0 / math.sqrt(hd)

    # ---- fused temp-encoder + PE passthrough: one matmul, no lane concat ----
    in_dim = x_in_ref.shape[-1]
    x_in = x_in_ref[...].reshape(rows, in_dim)
    x = jnp.dot(x_in, w_in_ref[...], preferred_element_type=jnp.float32) + b_in_ref[...]

    # ---- per-row lengths (SMEM scalar reads); masks hoisted out of layer/head loops ----
    lens = [lengths_ref[g * Bb + rb] for rb in range(Bb)]

    col_pos = jax.lax.broadcasted_iota(jnp.int32, (1, rows), 1)
    row_pos = jax.lax.broadcasted_iota(jnp.int32, (rows, 1), 0)
    if Bb == 1:
        # (1, rows) bias; broadcast happens implicitly in the score add
        bias = jnp.where(col_pos < lens[0], 0.0, -1e9).astype(jnp.float32)
        valid = (row_pos < lens[0]).astype(jnp.float32)                 # (rows, 1)
    else:
        # block-diagonal (per packed batch row) + key-padding bias
        col_blk = col_pos // S
        col_in_blk = col_pos - col_blk * S
        col_len = jnp.where(col_blk == 0, lens[0], 0)
        for rb in range(1, Bb):
            col_len = jnp.where(col_blk == rb, lens[rb], col_len)
        col_valid = col_in_blk < col_len                                # (1, rows)
        same_blk = (row_pos // S) == col_blk                            # (rows, rows)
        bias = jnp.where(jnp.logical_and(same_blk, col_valid), 0.0, -1e9).astype(jnp.float32)

        row_blk = row_pos // S
        row_in_blk = row_pos - row_blk * S
        row_len = jnp.where(row_blk == 0, lens[0], 0)
        for rb in range(1, Bb):
            row_len = jnp.where(row_blk == rb, lens[rb], row_len)
        valid = (row_in_blk < row_len).astype(jnp.float32)              # (rows, 1)

    def layernorm(z, gm, bt):
        mu = jnp.mean(z, axis=-1, keepdims=True)
        var = jnp.mean((z - mu) ** 2, axis=-1, keepdims=True)
        return (z - mu) * jax.lax.rsqrt(var + 1e-5) * gm + bt

    # ---- post-norm transformer encoder layers ----
    for l in range(nlayers):
        vec = vecD_ref[l]                                   # (6, D)
        bo, g1, bt1 = vec[0:1], vec[1:2], vec[2:3]
        b2, g2, bt2 = vec[3:4], vec[4:5], vec[5:6]

        # fused QKV projection: one (rows, D) @ (D, 3D) matmul
        qkv = jnp.dot(x, wqkv_ref[l], preferred_element_type=jnp.float32) + bqkv_ref[l]
        q = qkv[:, :D] * scale                  # fold 1/sqrt(hd) into q once
        k = qkv[:, D:2 * D]
        v = qkv[:, 2 * D:]
        wo_l = wo_ref[l]                        # (D, D)

        # per-head score/softmax/context; output projection accumulated per head (no ctx concat)
        attn = None
        for h in range(nhead):
            lo, hi = h * hd, (h + 1) * hd
            s = jax.lax.dot_general(q[:, lo:hi], k[:, lo:hi],
                                    (((1,), (1,)), ((), ())),
                                    preferred_element_type=jnp.float32) + bias
            s = s - jnp.max(s, axis=-1, keepdims=True)
            p = jnp.exp(s)
            p = p * pl.reciprocal(jnp.sum(p, axis=-1, keepdims=True), approx=True)
            ctx_h = jnp.dot(p, v[:, lo:hi], preferred_element_type=jnp.float32)
            contrib = jnp.dot(ctx_h, wo_l[lo:hi, :], preferred_element_type=jnp.float32)
            attn = contrib if attn is None else attn + contrib
        attn = attn + bo

        x1 = layernorm(x + attn, g1, bt1)
        ff = jnp.maximum(jnp.dot(x1, w1_ref[l], preferred_element_type=jnp.float32) + b1_ref[l], 0.0)
        ff = jnp.dot(ff, w2_ref[l], preferred_element_type=jnp.float32) + b2
        x = layernorm(x1 + ff, g2, bt2)

    # ---- masked temporal aggregation, per packed batch row ----
    pooled_rows = []
    for rb in range(Bb):
        xr = x[rb * S:(rb + 1) * S]
        vr = valid[rb * S:(rb + 1) * S]
        if aggreg == 'mean':
            pooled_rows.append(jnp.sum(xr * vr, axis=0, keepdims=True)
                               / (lens[rb].astype(jnp.float32) + 1.0))
        else:  # 'max': padded rows scaled by -10.0, exactly as in the reference module
            scalef = vr + (1.0 - vr) * (-10.0)
            pooled_rows.append(jnp.max(xr * scalef, axis=0, keepdims=True))
    pooled = pooled_rows[0] if Bb == 1 else jnp.concatenate(pooled_rows, axis=0)   # (Bb, D)

    # ---- static embedding + MLP head; [pooled | emb] concat folded into split-row matmuls ----
    xs = xs_ref[...].reshape(Bb, xs_ref.shape[-1])
    emb = jnp.dot(xs, emb_w_ref[...], preferred_element_type=jnp.float32) + emb_b_ref[...]
    h1 = (jnp.dot(pooled, m1w_ref[:D, :], preferred_element_type=jnp.float32)
          + jnp.dot(emb, m1w_ref[D:, :], preferred_element_type=jnp.float32)
          + m1b_ref[...])
    h1 = jnp.maximum(h1, 0.0)
    out = jnp.dot(h1, m2w_ref[...], preferred_element_type=jnp.float32) + m2b_ref[...]
    o_ref[...] = out.reshape(o_ref.shape).astype(o_ref.dtype)


# ----------------------------------------------------------------------------- wrapper
def pallas_forward(params, cfg, Xtemp, Xtimes, Xstatic, lengths):
    S, B, F = Xtemp.shape
    td = cfg['temp_dim']
    D = cfg['d_model']
    pe_dim = cfg['pe_dim']
    ncls = cfg['n_classes']
    sd = Xstatic.shape[1]
    L = cfg['nlayers']

    # ---- boundary preprocessing in XLA (once): PE + layout; removes kernel lane concats ----
    n_ts = pe_dim // 2
    inv_ts = jnp.asarray(
        1.0 / np.power(float(cfg['max_len']), np.linspace(0.0, 1.0, n_ts)), jnp.float32)
    scaled = Xtimes[:, :, None] * inv_ts                                    # (S, B, n_ts)
    pe = jnp.concatenate([jnp.sin(scaled), jnp.cos(scaled)], axis=-1)       # (S, B, pe_dim)
    x_in = jnp.concatenate([Xtemp[:, :, :F // 2], pe], axis=-1)             # (S, B, td+pe_dim)
    x_in_b = jnp.transpose(x_in, (1, 0, 2))                                 # (B, S, td+pe_dim)
    xs_b = Xstatic[:, None, :]                                              # (B, 1, sd)

    # fused temp-encoder weight: [[temp_w, 0], [0, I_pe]]  -> single in-kernel matmul, no concat
    in_dim = td + pe_dim
    w_in = jnp.zeros((in_dim, D), jnp.float32)
    w_in = w_in.at[:td, :2 * td].set(params['temp_w'])
    w_in = w_in.at[td:, 2 * td:].set(jnp.eye(pe_dim, dtype=jnp.float32))
    b_in = jnp.concatenate([params['temp_b'], jnp.zeros((1, pe_dim), jnp.float32)], axis=-1)

    # pack the six per-layer (1, D) vectors into one (L, 6, D) input stream
    vecD = jnp.concatenate([params['bo'], params['g1'], params['bt1'],
                            params['b2'], params['g2'], params['bt2']], axis=1)

    # ---- rows-per-step: pack batch rows (~128 matmul rows per step), keep grid >= 2 when B >= 2
    #      so v7x's second TensorCore gets work (v5e/v6e have 1 TC and are unaffected) ----
    target_rows = 128
    Bb = max(1, min(max(1, target_rows // S), (B + 1) // 2))
    Bb = min(Bb, B)
    grid_n = -(-B // Bb)
    B_pad = grid_n * Bb

    lengths_p = lengths.astype(jnp.int32)
    if B_pad != B:
        pad = B_pad - B
        x_in_b = jnp.pad(x_in_b, ((0, pad), (0, 0), (0, 0)))
        xs_b = jnp.pad(xs_b, ((0, pad), (0, 0), (0, 0)))
        lengths_p = jnp.pad(lengths_p, (0, pad))

    weights = (w_in, b_in,
               params['wqkv'], params['bqkv'], params['wo'],
               params['w1'], params['b1'], params['w2'],
               vecD,
               params['emb_w'], params['emb_b'],
               params['mlp1_w'], params['mlp1_b'], params['mlp2_w'], params['mlp2_b'])

    def whole(shape):                  # whole-array block; constant index -> no re-DMA across steps
        nd = len(shape)
        return pl.BlockSpec(tuple(shape), lambda g, lens: (0,) * nd)

    in_specs = [
        pl.BlockSpec((Bb, S, in_dim), lambda g, lens: (g, 0, 0)),
        pl.BlockSpec((Bb, 1, sd), lambda g, lens: (g, 0, 0)),
    ] + [whole(w.shape) for w in weights]

    out_spec = pl.BlockSpec((Bb, 1, ncls), lambda g, lens: (g, 0, 0))

    kernel = functools.partial(_fused_forward_kernel,
                               nhead=cfg['nhead'], nlayers=L,
                               S=S, Bb=Bb, aggreg=cfg['aggreg'])

    out = pl.pallas_call(
        kernel,
        grid_spec=pltpu.PrefetchScalarGridSpec(
            num_scalar_prefetch=1,          # lengths -> SMEM; all mask math done in-kernel
            grid=(grid_n,),
            in_specs=in_specs,
            out_specs=out_spec),
        out_shape=jax.ShapeDtypeStruct((B_pad, 1, ncls), jnp.float32),
        compiler_params=pltpu.CompilerParams(dimension_semantics=("parallel",)),
    )(lengths_p, x_in_b, xs_b, *weights)
    return out[:B, 0, :]


# ----------------------------------------------------------------------------- params
def init_params(key, cfg):
    td, nhead, D = cfg['temp_dim'], cfg['nhead'], cfg['d_model']
    H, L, sd, ncls = cfg['hidden_dim'], cfg['nlayers'], cfg['static_dim'], cfg['n_classes']
    ks = iter(jax.random.split(key, 8 + 8 * L + 8))

    def lin(fan_in, fan_out):
        bound = 1.0 / math.sqrt(fan_in)
        w = jax.random.uniform(next(ks), (fan_in, fan_out), jnp.float32, -bound, bound)
        b = jax.random.uniform(next(ks), (1, fan_out), jnp.float32, -bound, bound)
        return w, b

    p = {}
    p['temp_w'], p['temp_b'] = lin(td, 2 * td)

    stacks = {k: [] for k in ('wqkv', 'bqkv', 'wo', 'bo', 'g1', 'bt1',
                              'w1', 'b1', 'w2', 'b2', 'g2', 'bt2')}
    for _ in range(L):
        wqkv, bqkv = lin(D, 3 * D)          # packed in_proj (q|k|v along the output axis)
        wo, bo = lin(D, D)
        w1, b1 = lin(D, H)
        w2, b2 = lin(H, D)
        vals = dict(wqkv=wqkv, bqkv=bqkv, wo=wo, bo=bo,
                    g1=jnp.ones((1, D), jnp.float32), bt1=jnp.zeros((1, D), jnp.float32),
                    w1=w1, b1=b1, w2=w2, b2=b2,
                    g2=jnp.ones((1, D), jnp.float32), bt2=jnp.zeros((1, D), jnp.float32))
        for k, v in vals.items():
            stacks[k].append(v)
    for k, v in stacks.items():
        p[k] = jnp.stack(v, axis=0)         # (L, ...) stacked per-layer weights

    p['emb_w'], p['emb_b'] = lin(sd, 2 * sd)
    final_dim = D + 2 * sd
    p['mlp1_w'], p['mlp1_b'] = lin(final_dim, final_dim)
    p['mlp2_w'], p['mlp2_b'] = lin(final_dim, ncls)
    return p


# ----------------------------------------------------------------------------- pure-JAX reference
def positional_encoding(times, pe_dim, max_len):
    n_ts = pe_dim // 2
    timescales = jnp.asarray(max_len, jnp.float32) ** jnp.linspace(0.0, 1.0, n_ts)
    scaled = times[:, :, None] / timescales[None, None, :]
    return jnp.concatenate([jnp.sin(scaled), jnp.cos(scaled)], axis=-1).astype(jnp.float32)


def reference_forward(params, cfg, Xtemp, Xtimes, Xstatic, lengths):
    S, B, F = Xtemp.shape
    D, nhead = cfg['d_model'], cfg['nhead']
    hd = D // nhead
    xt = Xtemp[:, :, :F // 2] @ params['temp_w'] + params['temp_b']
    pe = positional_encoding(Xtimes, cfg['pe_dim'], cfg['max_len'])
    x = jnp.transpose(jnp.concatenate([xt, pe], axis=-1), (1, 0, 2))      # (B, S, D)
    kpm = (jnp.arange(S)[None, :] >= lengths[:, None]).astype(jnp.float32)
    bias = (kpm * -1e9)[:, None, None, :]                                 # (B,1,1,S)

    def ln(z, g, bt):
        mu = z.mean(-1, keepdims=True)
        var = ((z - mu) ** 2).mean(-1, keepdims=True)
        return (z - mu) / jnp.sqrt(var + 1e-5) * g + bt

    for l in range(cfg['nlayers']):
        qkv = x @ params['wqkv'][l] + params['bqkv'][l]
        q, k, v = jnp.split(qkv, 3, axis=-1)
        qh = q.reshape(B, S, nhead, hd)
        kh = k.reshape(B, S, nhead, hd)
        vh = v.reshape(B, S, nhead, hd)
        s = jnp.einsum('bqhe,bkhe->bhqk', qh, kh) / math.sqrt(hd) + bias
        prob = jax.nn.softmax(s, axis=-1)
        ctx = jnp.einsum('bhqk,bkhe->bqhe', prob, vh).reshape(B, S, D)
        attn = ctx @ params['wo'][l] + params['bo'][l]
        x1 = ln(x + attn, params['g1'][l], params['bt1'][l])
        ff = jnp.maximum(x1 @ params['w1'][l] + params['b1'][l], 0.0) @ params['w2'][l] + params['b2'][l]
        x = ln(x1 + ff, params['g2'][l], params['bt2'][l])

    valid = 1.0 - kpm
    if cfg['aggreg'] == 'mean':
        pooled = jnp.sum(x * valid[:, :, None], axis=1) / (lengths.astype(jnp.float32) + 1.0)[:, None]
    else:
        scalef = valid + (1.0 - valid) * (-10.0)
        pooled = jnp.max(x * scalef[:, :, None], axis=1)
    emb = Xstatic @ params['emb_w'] + params['emb_b']
    feat = jnp.concatenate([pooled, emb], axis=-1)
    h = jnp.maximum(feat @ params['mlp1_w'] + params['mlp1_b'], 0.0)
    return h @ params['mlp2_w'] + params['mlp2_b']


# ----------------------------------------------------------------------------- main
if __name__ == "__main__":
    temp_dim, nhead, hidden_dim, nlayers = 7, 4, 32, 2
    static_dim, max_len, n_classes, B = 4, 16, 3, 2

    d_model = (temp_dim * 2 + nhead - 1) // nhead * nhead      # 16
    pe_dim = d_model - temp_dim * 2                            # 2
    assert pe_dim > 0 and pe_dim % 2 == 0 and d_model % nhead == 0

    cfg = dict(temp_dim=temp_dim, nhead=nhead, hidden_dim=hidden_dim, nlayers=nlayers,
               d_model=d_model, pe_dim=pe_dim, static_dim=static_dim,
               max_len=max_len, aggreg='mean', n_classes=n_classes)

    root = jax.random.PRNGKey(0)
    kp, kx, kt, ks = jax.random.split(root, 4)
    params = init_params(kp, cfg)

    S = max_len
    Xtemp = jax.random.normal(kx, (S, B, 2 * temp_dim), jnp.float32)       # (S, B, 2*temp_dim)
    Xtimes = jnp.cumsum(jax.random.uniform(kt, (S, B), jnp.float32, 0.1, 1.0), axis=0)
    Xstatic = jax.random.normal(ks, (B, static_dim), jnp.float32)          # (B, static_dim)
    lengths = jnp.array([S, 11], dtype=jnp.int32)                          # (B,)

    out = pallas_forward(params, cfg, Xtemp, Xtimes, Xstatic, lengths)
    out = jax.block_until_ready(out)

    ref = reference_forward(params, cfg, Xtemp, Xtimes, Xstatic, lengths)
    np.testing.assert_allclose(np.asarray(out), np.asarray(ref), rtol=2e-3, atol=2e-3)

    print("KERNEL_OK")
</pallas_src>

<mosaic_0001>
module attributes {stable_mosaic.version = 11 : i64} {
  func.func @_fused_forward_kernel(%arg0: i32, %arg1: memref<2xi32, #tpu.memory_space<smem>>, %arg2: memref<1x16x9xf32, #tpu.memory_space<vmem>>, %arg3: memref<1x1x4xf32, #tpu.memory_space<vmem>>, %arg4: memref<9x16xf32, #tpu.memory_space<vmem>>, %arg5: memref<1x16xf32, #tpu.memory_space<vmem>>, %arg6: memref<2x16x48xf32, #tpu.memory_space<vmem>>, %arg7: memref<2x1x48xf32, #tpu.memory_space<vmem>>, %arg8: memref<2x16x16xf32, #tpu.memory_space<vmem>>, %arg9: memref<2x16x32xf32, #tpu.memory_space<vmem>>, %arg10: memref<2x1x32xf32, #tpu.memory_space<vmem>>, %arg11: memref<2x32x16xf32, #tpu.memory_space<vmem>>, %arg12: memref<2x6x16xf32, #tpu.memory_space<vmem>>, %arg13: memref<4x8xf32, #tpu.memory_space<vmem>>, %arg14: memref<1x8xf32, #tpu.memory_space<vmem>>, %arg15: memref<24x24xf32, #tpu.memory_space<vmem>>, %arg16: memref<1x24xf32, #tpu.memory_space<vmem>>, %arg17: memref<24x3xf32, #tpu.memory_space<vmem>>, %arg18: memref<1x3xf32, #tpu.memory_space<vmem>>, %arg19: memref<1x1x3xf32, #tpu.memory_space<vmem>>) attributes {dimension_semantics = [#tpu.dimension_semantics<parallel>], iteration_bounds = array<i64: 2>, scalar_prefetch = 1 : i64, scratch_operands = 0 : i64, tpu.core_type = #tpu.core_type<tc>, window_params = [{transform_indices = @transform_0, window_bounds = array<i64: 1, 16, 9>}, {transform_indices = @transform_1, window_bounds = array<i64: 1, 1, 4>}, {pipeline_mode = #tpu.pipeline_mode<synchronous>, transform_indices = @transform_2, window_bounds = array<i64: 9, 16>}, {pipeline_mode = #tpu.pipeline_mode<synchronous>, transform_indices = @transform_3, window_bounds = array<i64: 1, 16>}, {pipeline_mode = #tpu.pipeline_mode<synchronous>, transform_indices = @transform_4, window_bounds = array<i64: 2, 16, 48>}, {pipeline_mode = #tpu.pipeline_mode<synchronous>, transform_indices = @transform_5, window_bounds = array<i64: 2, 1, 48>}, {pipeline_mode = #tpu.pipeline_mode<synchronous>, transform_indices = @transform_6, window_bounds = array<i64: 2, 16, 16>}, {pipeline_mode = #tpu.pipeline_mode<synchronous>, transform_indices = @transform_7, window_bounds = array<i64: 2, 16, 32>}, {pipeline_mode = #tpu.pipeline_mode<synchronous>, transform_indices = @transform_8, window_bounds = array<i64: 2, 1, 32>}, {pipeline_mode = #tpu.pipeline_mode<synchronous>, transform_indices = @transform_9, window_bounds = array<i64: 2, 32, 16>}, {pipeline_mode = #tpu.pipeline_mode<synchronous>, transform_indices = @transform_10, window_bounds = array<i64: 2, 6, 16>}, {pipeline_mode = #tpu.pipeline_mode<synchronous>, transform_indices = @transform_11, window_bounds = array<i64: 4, 8>}, {pipeline_mode = #tpu.pipeline_mode<synchronous>, transform_indices = @transform_12, window_bounds = array<i64: 1, 8>}, {pipeline_mode = #tpu.pipeline_mode<synchronous>, transform_indices = @transform_13, window_bounds = array<i64: 24, 24>}, {pipeline_mode = #tpu.pipeline_mode<synchronous>, transform_indices = @transform_14, window_bounds = array<i64: 1, 24>}, {pipeline_mode = #tpu.pipeline_mode<synchronous>, transform_indices = @transform_15, window_bounds = array<i64: 24, 3>}, {pipeline_mode = #tpu.pipeline_mode<synchronous>, transform_indices = @transform_16, window_bounds = array<i64: 1, 3>}, {transform_indices = @transform_17, window_bounds = array<i64: 1, 1, 3>}]} {
    %c0 = arith.constant 0 : index
    %c0_0 = arith.constant 0 : index
    %c0_1 = arith.constant 0 : index
    %0 = vector.load %arg2[%c0, %c0_0, %c0_1] : memref<1x16x9xf32, #tpu.memory_space<vmem>>, vector<1x16x9xf32>
    %1 = vector.shape_cast %0 : vector<1x16x9xf32> to vector<16x9xf32>
    %c0_2 = arith.constant 0 : index
    %c0_3 = arith.constant 0 : index
    %2 = vector.load %arg4[%c0_2, %c0_3] : memref<9x16xf32, #tpu.memory_space<vmem>>, vector<9x16xf32>
    %cst = arith.constant dense<0.000000e+00> : vector<16x16xf32>
    %3 = tpu.matmul %1, %2, %cst {dimension_numbers = #tpu.dot_dimension_numbers<[1], [0], [0], [1], [0, 0, 1, 1], [], []>} : vector<16x9xf32>, vector<9x16xf32>, vector<16x16xf32> -> vector<16x16xf32>
    %c0_4 = arith.constant 0 : index
    %c0_5 = arith.constant 0 : index
    %4 = vector.load %arg5[%c0_4, %c0_5] : memref<1x16xf32, #tpu.memory_space<vmem>>, vector<1x16xf32>
    %5 = vector.broadcast %4 : vector<1x16xf32> to vector<16x16xf32>
    %6 = arith.addf %3, %5 : vector<16x16xf32>
    %c1_i32 = arith.constant 1 : i32
    %7 = arith.muli %arg0, %c1_i32 : i32
    %c0_i32 = arith.constant 0 : i32
    %8 = arith.addi %7, %c0_i32 : i32
    %9 = arith.index_cast %8 : i32 to index
    %10 = memref.load %arg1[%9] : memref<2xi32, #tpu.memory_space<smem>>
    %11 = tpu.iota {dimensions = array<i32: 1>} : vector<1x16xi32>
    %12 = tpu.iota {dimensions = array<i32: 0>} : vector<16x1xi32>
    %13 = vector.broadcast %10 : i32 to vector<1x16xi32>
    %14 = arith.cmpi slt, %11, %13 : vector<1x16xi32>
    %cst_6 = arith.constant 0.000000e+00 : f32
    %cst_7 = arith.constant -1.000000e+09 : f32
    %15 = vector.broadcast %cst_6 : f32 to vector<1x16xf32>
    %16 = vector.broadcast %cst_7 : f32 to vector<1x16xf32>
    %17 = arith.select %14, %15, %16 : vector<1x16xi1>, vector<1x16xf32>
    %18 = vector.broadcast %10 : i32 to vector<16x1xi32>
    %19 = arith.cmpi slt, %12, %18 : vector<16x1xi32>
    %20 = arith.extui %19 : vector<16x1xi1> to vector<16x1xi32>
    %21 = arith.sitofp %20 : vector<16x1xi32> to vector<16x1xf32>
    %c0_8 = arith.constant 0 : index
    %c0_9 = arith.constant 0 : index
    %c0_10 = arith.constant 0 : index
    %22 = vector.load %arg12[%c0_8, %c0_9, %c0_10] : memref<2x6x16xf32, #tpu.memory_space<vmem>>, vector<1x6x16xf32>
    %23 = vector.shape_cast %22 : vector<1x6x16xf32> to vector<6x16xf32>
    %24 = vector.extract_strided_slice %23 {offsets = [0, 0], sizes = [1, 16], strides = [1, 1]} : vector<6x16xf32> to vector<1x16xf32>
    %25 = vector.extract_strided_slice %23 {offsets = [1, 0], sizes = [1, 16], strides = [1, 1]} : vector<6x16xf32> to vector<1x16xf32>
    %26 = vector.extract_strided_slice %23 {offsets = [2, 0], sizes = [1, 16], strides = [1, 1]} : vector<6x16xf32> to vector<1x16xf32>
    %27 = vector.extract_strided_slice %23 {offsets = [3, 0], sizes = [1, 16], strides = [1, 1]} : vector<6x16xf32> to vector<1x16xf32>
    %28 = vector.extract_strided_slice %23 {offsets = [4, 0], sizes = [1, 16], strides = [1, 1]} : vector<6x16xf32> to vector<1x16xf32>
    %29 = vector.extract_strided_slice %23 {offsets = [5, 0], sizes = [1, 16], strides = [1, 1]} : vector<6x16xf32> to vector<1x16xf32>
    %c0_11 = arith.constant 0 : index
    %c0_12 = arith.constant 0 : index
    %c0_13 = arith.constant 0 : index
    %30 = vector.load %arg6[%c0_11, %c0_12, %c0_13] : memref<2x16x48xf32, #tpu.memory_space<vmem>>, vector<1x16x48xf32>
    %31 = vector.shape_cast %30 : vector<1x16x48xf32> to vector<16x48xf32>
    %cst_14 = arith.constant dense<0.000000e+00> : vector<16x48xf32>
    %32 = tpu.matmul %6, %31, %cst_14 {dimension_numbers = #tpu.dot_dimension_numbers<[1], [0], [0], [1], [0, 0, 1, 1], [], []>} : vector<16x16xf32>, vector<16x48xf32>, vector<16x48xf32> -> vector<16x48xf32>
    %c0_15 = arith.constant 0 : index
    %c0_16 = arith.constant 0 : index
    %c0_17 = arith.constant 0 : index
    %33 = vector.load %arg7[%c0_15, %c0_16, %c0_17] : memref<2x1x48xf32, #tpu.memory_space<vmem>>, vector<1x1x48xf32>
    %34 = vector.shape_cast %33 : vector<1x1x48xf32> to vector<1x48xf32>
    %35 = vector.broadcast %34 : vector<1x48xf32> to vector<16x48xf32>
    %36 = arith.addf %32, %35 : vector<16x48xf32>
    %37 = vector.extract_strided_slice %36 {offsets = [0, 0], sizes = [16, 16], strides = [1, 1]} : vector<16x48xf32> to vector<16x16xf32>
    %cst_18 = arith.constant 5.000000e-01 : f32
    %38 = vector.broadcast %cst_18 : f32 to vector<16x16xf32>
    %39 = arith.mulf %37, %38 : vector<16x16xf32>
    %40 = vector.extract_strided_slice %36 {offsets = [0, 16], sizes = [16, 16], strides = [1, 1]} : vector<16x48xf32> to vector<16x16xf32>
    %41 = vector.extract_strided_slice %36 {offsets = [0, 32], sizes = [16, 16], strides = [1, 1]} : vector<16x48xf32> to vector<16x16xf32>
    %c0_19 = arith.constant 0 : index
    %c0_20 = arith.constant 0 : index
    %c0_21 = arith.constant 0 : index
    %42 = vector.load %arg8[%c0_19, %c0_20, %c0_21] : memref<2x16x16xf32, #tpu.memory_space<vmem>>, vector<1x16x16xf32>
    %43 = vector.shape_cast %42 : vector<1x16x16xf32> to vector<16x16xf32>
    %44 = vector.extract_strided_slice %39 {offsets = [0, 0], sizes = [16, 4], strides = [1, 1]} : vector<16x16xf32> to vector<16x4xf32>
    %45 = vector.extract_strided_slice %40 {offsets = [0, 0], sizes = [16, 4], strides = [1, 1]} : vector<16x16xf32> to vector<16x4xf32>
    %cst_22 = arith.constant dense<0.000000e+00> : vector<16x16xf32>
    %46 = tpu.matmul %44, %45, %cst_22 {dimension_numbers = #tpu.dot_dimension_numbers<[1], [1], [0], [0], [0, 0, 1, 0], [], []>} : vector<16x4xf32>, vector<16x4xf32>, vector<16x16xf32> -> vector<16x16xf32>
    %47 = vector.broadcast %17 : vector<1x16xf32> to vector<16x16xf32>
    %48 = arith.addf %46, %47 : vector<16x16xf32>
    %cst_23 = arith.constant dense<0xFF800000> : vector<16xf32>
    %49 = vector.multi_reduction <maximumf>, %48, %cst_23 [1] : vector<16x16xf32> to vector<16xf32>
    %50 = vector.shape_cast %49 : vector<16xf32> to vector<16x1xf32>
    %51 = vector.broadcast %50 : vector<16x1xf32> to vector<16x16xf32>
    %52 = arith.subf %48, %51 : vector<16x16xf32>
    %53 = math.exp %52 : vector<16x16xf32>
    %cst_24 = arith.constant dense<0.000000e+00> : vector<16xf32>
    %54 = vector.multi_reduction <add>, %53, %cst_24 [1] : vector<16x16xf32> to vector<16xf32>
    %55 = vector.shape_cast %54 : vector<16xf32> to vector<16x1xf32>
    %56 = tpu.reciprocal %55 {approx = true} : vector<16x1xf32> -> vector<16x1xf32>
    %57 = vector.broadcast %56 : vector<16x1xf32> to vector<16x16xf32>
    %58 = arith.mulf %53, %57 : vector<16x16xf32>
    %59 = vector.extract_strided_slice %41 {offsets = [0, 0], sizes = [16, 4], strides = [1, 1]} : vector<16x16xf32> to vector<16x4xf32>
    %cst_25 = arith.constant dense<0.000000e+00> : vector<16x4xf32>
    %60 = tpu.matmul %58, %59, %cst_25 {dimension_numbers = #tpu.dot_dimension_numbers<[1], [0], [0], [1], [0, 0, 1, 1], [], []>} : vector<16x16xf32>, vector<16x4xf32>, vector<16x4xf32> -> vector<16x4xf32>
    %61 = vector.extract_strided_slice %43 {offsets = [0, 0], sizes = [4, 16], strides = [1, 1]} : vector<16x16xf32> to vector<4x16xf32>
    %cst_26 = arith.constant dense<0.000000e+00> : vector<16x16xf32>
    %62 = tpu.matmul %60, %61, %cst_26 {dimension_numbers = #tpu.dot_dimension_numbers<[1], [0], [0], [1], [0, 0, 1, 1], [], []>} : vector<16x4xf32>, vector<4x16xf32>, vector<16x16xf32> -> vector<16x16xf32>
    %63 = vector.extract_strided_slice %39 {offsets = [0, 4], sizes = [16, 4], strides = [1, 1]} : vector<16x16xf32> to vector<16x4xf32>
    %64 = vector.extract_strided_slice %40 {offsets = [0, 4], sizes = [16, 4], strides = [1, 1]} : vector<16x16xf32> to vector<16x4xf32>
    %cst_27 = arith.constant dense<0.000000e+00> : vector<16x16xf32>
    %65 = tpu.matmul %63, %64, %cst_27 {dimension_numbers = #tpu.dot_dimension_numbers<[1], [1], [0], [0], [0, 0, 1, 0], [], []>} : vector<16x4xf32>, vector<16x4xf32>, vector<16x16xf32> -> vector<16x16xf32>
    %66 = vector.broadcast %17 : vector<1x16xf32> to vector<16x16xf32>
    %67 = arith.addf %65, %66 : vector<16x16xf32>
    %cst_28 = arith.constant dense<0xFF800000> : vector<16xf32>
    %68 = vector.multi_reduction <maximumf>, %67, %cst_28 [1] : vector<16x16xf32> to vector<16xf32>
    %69 = vector.shape_cast %68 : vector<16xf32> to vector<16x1xf32>
    %70 = vector.broadcast %69 : vector<16x1xf32> to vector<16x16xf32>
    %71 = arith.subf %67, %70 : vector<16x16xf32>
    %72 = math.exp %71 : vector<16x16xf32>
    %cst_29 = arith.constant dense<0.000000e+00> : vector<16xf32>
    %73 = vector.multi_reduction <add>, %72, %cst_29 [1] : vector<16x16xf32> to vector<16xf32>
    %74 = vector.shape_cast %73 : vector<16xf32> to vector<16x1xf32>
    %75 = tpu.reciprocal %74 {approx = true} : vector<16x1xf32> -> vector<16x1xf32>
    %76 = vector.broadcast %75 : vector<16x1xf32> to vector<16x16xf32>
    %77 = arith.mulf %72, %76 : vector<16x16xf32>
    %78 = vector.extract_strided_slice %41 {offsets = [0, 4], sizes = [16, 4], strides = [1, 1]} : vector<16x16xf32> to vector<16x4xf32>
    %cst_30 = arith.constant dense<0.000000e+00> : vector<16x4xf32>
    %79 = tpu.matmul %77, %78, %cst_30 {dimension_numbers = #tpu.dot_dimension_numbers<[1], [0], [0], [1], [0, 0, 1, 1], [], []>} : vector<16x16xf32>, vector<16x4xf32>, vector<16x4xf32> -> vector<16x4xf32>
    %80 = vector.extract_strided_slice %43 {offsets = [4, 0], sizes = [4, 16], strides = [1, 1]} : vector<16x16xf32> to vector<4x16xf32>
    %cst_31 = arith.constant dense<0.000000e+00> : vector<16x16xf32>
    %81 = tpu.matmul %79, %80, %cst_31 {dimension_numbers = #tpu.dot_dimension_numbers<[1], [0], [0], [1], [0, 0, 1, 1], [], []>} : vector<16x4xf32>, vector<4x16xf32>, vector<16x16xf32> -> vector<16x16xf32>
    %82 = arith.addf %62, %81 : vector<16x16xf32>
    %83 = vector.extract_strided_slice %39 {offsets = [0, 8], sizes = [16, 4], strides = [1, 1]} : vector<16x16xf32> to vector<16x4xf32>
    %84 = vector.extract_strided_slice %40 {offsets = [0, 8], sizes = [16, 4], strides = [1, 1]} : vector<16x16xf32> to vector<16x4xf32>
    %cst_32 = arith.constant dense<0.000000e+00> : vector<16x16xf32>
    %85 = tpu.matmul %83, %84, %cst_32 {dimension_numbers = #tpu.dot_dimension_numbers<[1], [1], [0], [0], [0, 0, 1, 0], [], []>} : vector<16x4xf32>, vector<16x4xf32>, vector<16x16xf32> -> vector<16x16xf32>
    %86 = vector.broadcast %17 : vector<1x16xf32> to vector<16x16xf32>
    %87 = arith.addf %85, %86 : vector<16x16xf32>
    %cst_33 = arith.constant dense<0xFF800000> : vector<16xf32>
    %88 = vector.multi_reduction <maximumf>, %87, %cst_33 [1] : vector<16x16xf32> to vector<16xf32>
    %89 = vector.shape_cast %88 : vector<16xf32> to vector<16x1xf32>
    %90 = vector.broadcast %89 : vector<16x1xf32> to vector<16x16xf32>
    %91 = arith.subf %87, %90 : vector<16x16xf32>
    %92 = math.exp %91 : vector<16x16xf32>
    %cst_34 = arith.constant dense<0.000000e+00> : vector<16xf32>
    %93 = vector.multi_reduction <add>, %92, %cst_34 [1] : vector<16x16xf32> to vector<16xf32>
    %94 = vector.shape_cast %93 : vector<16xf32> to vector<16x1xf32>
    %95 = tpu.reciprocal %94 {approx = true} : vector<16x1xf32> -> vector<16x1xf32>
    %96 = vector.broadcast %95 : vector<16x1xf32> to vector<16x16xf32>
    %97 = arith.mulf %92, %96 : vector<16x16xf32>
    %98 = vector.extract_strided_slice %41 {offsets = [0, 8], sizes = [16, 4], strides = [1, 1]} : vector<16x16xf32> to vector<16x4xf32>
    %cst_35 = arith.constant dense<0.000000e+00> : vector<16x4xf32>
    %99 = tpu.matmul %97, %98, %cst_35 {dimension_numbers = #tpu.dot_dimension_numbers<[1], [0], [0], [1], [0, 0, 1, 1], [], []>} : vector<16x16xf32>, vector<16x4xf32>, vector<16x4xf32> -> vector<16x4xf32>
    %100 = vector.extract_strided_slice %43 {offsets = [8, 0], sizes = [4, 16], strides = [1, 1]} : vector<16x16xf32> to vector<4x16xf32>
    %cst_36 = arith.constant dense<0.000000e+00> : vector<16x16xf32>
    %101 = tpu.matmul %99, %100, %cst_36 {dimension_numbers = #tpu.dot_dimension_numbers<[1], [0], [0], [1], [0, 0, 1, 1], [], []>} : vector<16x4xf32>, vector<4x16xf32>, vector<16x16xf32> -> vector<16x16xf32>
    %102 = arith.addf %82, %101 : vector<16x16xf32>
    %103 = vector.extract_strided_slice %39 {offsets = [0, 12], sizes = [16, 4], strides = [1, 1]} : vector<16x16xf32> to vector<16x4xf32>
    %104 = vector.extract_strided_slice %40 {offsets = [0, 12], sizes = [16, 4], strides = [1, 1]} : vector<16x16xf32> to vector<16x4xf32>
    %cst_37 = arith.constant dense<0.000000e+00> : vector<16x16xf32>
    %105 = tpu.matmul %103, %104, %cst_37 {dimension_numbers = #tpu.dot_dimension_numbers<[1], [1], [0], [0], [0, 0, 1, 0], [], []>} : vector<16x4xf32>, vector<16x4xf32>, vector<16x16xf32> -> vector<16x16xf32>
    %106 = vector.broadcast %17 : vector<1x16xf32> to vector<16x16xf32>
    %107 = arith.addf %105, %106 : vector<16x16xf32>
    %cst_38 = arith.constant dense<0xFF800000> : vector<16xf32>
    %108 = vector.multi_reduction <maximumf>, %107, %cst_38 [1] : vector<16x16xf32> to vector<16xf32>
    %109 = vector.shape_cast %108 : vector<16xf32> to vector<16x1xf32>
    %110 = vector.broadcast %109 : vector<16x1xf32> to vector<16x16xf32>
    %111 = arith.subf %107, %110 : vector<16x16xf32>
    %112 = math.exp %111 : vector<16x16xf32>
    %cst_39 = arith.constant dense<0.000000e+00> : vector<16xf32>
    %113 = vector.multi_reduction <add>, %112, %cst_39 [1] : vector<16x16xf32> to vector<16xf32>
    %114 = vector.shape_cast %113 : vector<16xf32> to vector<16x1xf32>
    %115 = tpu.reciprocal %114 {approx = true} : vector<16x1xf32> -> vector<16x1xf32>
    %116 = vector.broadcast %115 : vector<16x1xf32> to vector<16x16xf32>
    %117 = arith.mulf %112, %116 : vector<16x16xf32>
    %118 = vector.extract_strided_slice %41 {offsets = [0, 12], sizes = [16, 4], strides = [1, 1]} : vector<16x16xf32> to vector<16x4xf32>
    %cst_40 = arith.constant dense<0.000000e+00> : vector<16x4xf32>
    %119 = tpu.matmul %117, %118, %cst_40 {dimension_numbers = #tpu.dot_dimension_numbers<[1], [0], [0], [1], [0, 0, 1, 1], [], []>} : vector<16x16xf32>, vector<16x4xf32>, vector<16x4xf32> -> vector<16x4xf32>
    %120 = vector.extract_strided_slice %43 {offsets = [12, 0], sizes = [4, 16], strides = [1, 1]} : vector<16x16xf32> to vector<4x16xf32>
    %cst_41 = arith.constant dense<0.000000e+00> : vector<16x16xf32>
    %121 = tpu.matmul %119, %120, %cst_41 {dimension_numbers = #tpu.dot_dimension_numbers<[1], [0], [0], [1], [0, 0, 1, 1], [], []>} : vector<16x4xf32>, vector<4x16xf32>, vector<16x16xf32> -> vector<16x16xf32>
    %122 = arith.addf %102, %121 : vector<16x16xf32>
    %123 = vector.broadcast %24 : vector<1x16xf32> to vector<16x16xf32>
    %124 = arith.addf %122, %123 : vector<16x16xf32>
    %125 = arith.addf %6, %124 : vector<16x16xf32>
    %cst_42 = arith.constant dense<0.000000e+00> : vector<16xf32>
    %126 = vector.multi_reduction <add>, %125, %cst_42 [1] : vector<16x16xf32> to vector<16xf32>
    %127 = vector.shape_cast %126 : vector<16xf32> to vector<16x1xf32>
    %cst_43 = arith.constant 1.600000e+01 : f32
    %128 = vector.broadcast %cst_43 : f32 to vector<16x1xf32>
    %129 = arith.divf %127, %128 : vector<16x1xf32>
    %130 = vector.broadcast %129 : vector<16x1xf32> to vector<16x16xf32>
    %131 = arith.subf %125, %130 : vector<16x16xf32>
    %132 = arith.mulf %131, %131 : vector<16x16xf32>
    %cst_44 = arith.constant dense<0.000000e+00> : vector<16xf32>
    %133 = vector.multi_reduction <add>, %132, %cst_44 [1] : vector<16x16xf32> to vector<16xf32>
    %134 = vector.shape_cast %133 : vector<16xf32> to vector<16x1xf32>
    %cst_45 = arith.constant 1.600000e+01 : f32
    %135 = vector.broadcast %cst_45 : f32 to vector<16x1xf32>
    %136 = arith.divf %134, %135 : vector<16x1xf32>
    %137 = vector.broadcast %129 : vector<16x1xf32> to vector<16x16xf32>
    %138 = arith.subf %125, %137 : vector<16x16xf32>
    %cst_46 = arith.constant 9.99999974E-6 : f32
    %139 = vector.broadcast %cst_46 : f32 to vector<16x1xf32>
    %140 = arith.addf %136, %139 : vector<16x1xf32>
    %141 = math.rsqrt %140 : vector<16x1xf32>
    %142 = vector.broadcast %141 : vector<16x1xf32> to vector<16x16xf32>
    %143 = arith.mulf %138, %142 : vector<16x16xf32>
    %144 = vector.broadcast %25 : vector<1x16xf32> to vector<16x16xf32>
    %145 = arith.mulf %143, %144 : vector<16x16xf32>
    %146 = vector.broadcast %26 : vector<1x16xf32> to vector<16x16xf32>
    %147 = arith.addf %145, %146 : vector<16x16xf32>
    %c0_47 = arith.constant 0 : index
    %c0_48 = arith.constant 0 : index
    %c0_49 = arith.constant 0 : index
    %148 = vector.load %arg9[%c0_47, %c0_48, %c0_49] : memref<2x16x32xf32, #tpu.memory_space<vmem>>, vector<1x16x32xf32>
    %149 = vector.shape_cast %148 : vector<1x16x32xf32> to vector<16x32xf32>
    %cst_50 = arith.constant dense<0.000000e+00> : vector<16x32xf32>
    %150 = tpu.matmul %147, %149, %cst_50 {dimension_numbers = #tpu.dot_dimension_numbers<[1], [0], [0], [1], [0, 0, 1, 1], [], []>} : vector<16x16xf32>, vector<16x32xf32>, vector<16x32xf32> -> vector<16x32xf32>
    %c0_51 = arith.constant 0 : index
    %c0_52 = arith.constant 0 : index
    %c0_53 = arith.constant 0 : index
    %151 = vector.load %arg10[%c0_51, %c0_52, %c0_53] : memref<2x1x32xf32, #tpu.memory_space<vmem>>, vector<1x1x32xf32>
    %152 = vector.shape_cast %151 : vector<1x1x32xf32> to vector<1x32xf32>
    %153 = vector.broadcast %152 : vector<1x32xf32> to vector<16x32xf32>
    %154 = arith.addf %150, %153 : vector<16x32xf32>
    %cst_54 = arith.constant 0.000000e+00 : f32
    %155 = vector.broadcast %cst_54 : f32 to vector<16x32xf32>
    %156 = arith.maximumf %154, %155 : vector<16x32xf32>
    %c0_55 = arith.constant 0 : index
    %c0_56 = arith.constant 0 : index
    %c0_57 = arith.constant 0 : index
    %157 = vector.load %arg11[%c0_55, %c0_56, %c0_57] : memref<2x32x16xf32, #tpu.memory_space<vmem>>, vector<1x32x16xf32>
    %158 = vector.shape_cast %157 : vector<1x32x16xf32> to vector<32x16xf32>
    %cst_58 = arith.constant dense<0.000000e+00> : vector<16x16xf32>
    %159 = tpu.matmul %156, %158, %cst_58 {dimension_numbers = #tpu.dot_dimension_numbers<[1], [0], [0], [1], [0, 0, 1, 1], [], []>} : vector<16x32xf32>, vector<32x16xf32>, vector<16x16xf32> -> vector<16x16xf32>
    %160 = vector.broadcast %27 : vector<1x16xf32> to vector<16x16xf32>
    %161 = arith.addf %159, %160 : vector<16x16xf32>
    %162 = arith.addf %147, %161 : vector<16x16xf32>
    %cst_59 = arith.constant dense<0.000000e+00> : vector<16xf32>
    %163 = vector.multi_reduction <add>, %162, %cst_59 [1] : vector<16x16xf32> to vector<16xf32>
    %164 = vector.shape_cast %163 : vector<16xf32> to vector<16x1xf32>
    %cst_60 = arith.constant 1.600000e+01 : f32
    %165 = vector.broadcast %cst_60 : f32 to vector<16x1xf32>
    %166 = arith.divf %164, %165 : vector<16x1xf32>
    %167 = vector.broadcast %166 : vector<16x1xf32> to vector<16x16xf32>
    %168 = arith.subf %162, %167 : vector<16x16xf32>
    %169 = arith.mulf %168, %168 : vector<16x16xf32>
    %cst_61 = arith.constant dense<0.000000e+00> : vector<16xf32>
    %170 = vector.multi_reduction <add>, %169, %cst_61 [1] : vector<16x16xf32> to vector<16xf32>
    %171 = vector.shape_cast %170 : vector<16xf32> to vector<16x1xf32>
    %cst_62 = arith.constant 1.600000e+01 : f32
    %172 = vector.broadcast %cst_62 : f32 to vector<16x1xf32>
    %173 = arith.divf %171, %172 : vector<16x1xf32>
    %174 = vector.broadcast %166 : vector<16x1xf32> to vector<16x16xf32>
    %175 = arith.subf %162, %174 : vector<16x16xf32>
    %cst_63 = arith.constant 9.99999974E-6 : f32
    %176 = vector.broadcast %cst_63 : f32 to vector<16x1xf32>
    %177 = arith.addf %173, %176 : vector<16x1xf32>
    %178 = math.rsqrt %177 : vector<16x1xf32>
    %179 = vector.broadcast %178 : vector<16x1xf32> to vector<16x16xf32>
    %180 = arith.mulf %175, %179 : vector<16x16xf32>
    %181 = vector.broadcast %28 : vector<1x16xf32> to vector<16x16xf32>
    %182 = arith.mulf %180, %181 : vector<16x16xf32>
    %183 = vector.broadcast %29 : vector<1x16xf32> to vector<16x16xf32>
    %184 = arith.addf %182, %183 : vector<16x16xf32>
    %c1 = arith.constant 1 : index
    %c0_64 = arith.constant 0 : index
    %c0_65 = arith.constant 0 : index
    %185 = vector.load %arg12[%c1, %c0_64, %c0_65] : memref<2x6x16xf32, #tpu.memory_space<vmem>>, vector<1x6x16xf32>
    %186 = vector.shape_cast %185 : vector<1x6x16xf32> to vector<6x16xf32>
    %187 = vector.extract_strided_slice %186 {offsets = [0, 0], sizes = [1, 16], strides = [1, 1]} : vector<6x16xf32> to vector<1x16xf32>
    %188 = vector.extract_strided_slice %186 {offsets = [1, 0], sizes = [1, 16], strides = [1, 1]} : vector<6x16xf32> to vector<1x16xf32>
    %189 = vector.extract_strided_slice %186 {offsets = [2, 0], sizes = [1, 16], strides = [1, 1]} : vector<6x16xf32> to vector<1x16xf32>
    %190 = vector.extract_strided_slice %186 {offsets = [3, 0], sizes = [1, 16], strides = [1, 1]} : vector<6x16xf32> to vector<1x16xf32>
    %191 = vector.extract_strided_slice %186 {offsets = [4, 0], sizes = [1, 16], strides = [1, 1]} : vector<6x16xf32> to vector<1x16xf32>
    %192 = vector.extract_strided_slice %186 {offsets = [5, 0], sizes = [1, 16], strides = [1, 1]} : vector<6x16xf32> to vector<1x16xf32>
    %c1_66 = arith.constant 1 : index
    %c0_67 = arith.constant 0 : index
    %c0_68 = arith.constant 0 : index
    %193 = vector.load %arg6[%c1_66, %c0_67, %c0_68] : memref<2x16x48xf32, #tpu.memory_space<vmem>>, vector<1x16x48xf32>
    %194 = vector.shape_cast %193 : vector<1x16x48xf32> to vector<16x48xf32>
    %cst_69 = arith.constant dense<0.000000e+00> : vector<16x48xf32>
    %195 = tpu.matmul %184, %194, %cst_69 {dimension_numbers = #tpu.dot_dimension_numbers<[1], [0], [0], [1], [0, 0, 1, 1], [], []>} : vector<16x16xf32>, vector<16x48xf32>, vector<16x48xf32> -> vector<16x48xf32>
    %c1_70 = arith.constant 1 : index
    %c0_71 = arith.constant 0 : index
    %c0_72 = arith.constant 0 : index
    %196 = vector.load %arg7[%c1_70, %c0_71, %c0_72] : memref<2x1x48xf32, #tpu.memory_space<vmem>>, vector<1x1x48xf32>
    %197 = vector.shape_cast %196 : vector<1x1x48xf32> to vector<1x48xf32>
    %198 = vector.broadcast %197 : vector<1x48xf32> to vector<16x48xf32>
    %199 = arith.addf %195, %198 : vector<16x48xf32>
    %200 = vector.extract_strided_slice %199 {offsets = [0, 0], sizes = [16, 16], strides = [1, 1]} : vector<16x48xf32> to vector<16x16xf32>
    %cst_73 = arith.constant 5.000000e-01 : f32
    %201 = vector.broadcast %cst_73 : f32 to vector<16x16xf32>
    %202 = arith.mulf %200, %201 : vector<16x16xf32>
    %203 = vector.extract_strided_slice %199 {offsets = [0, 16], sizes = [16, 16], strides = [1, 1]} : vector<16x48xf32> to vector<16x16xf32>
    %204 = vector.extract_strided_slice %199 {offsets = [0, 32], sizes = [16, 16], strides = [1, 1]} : vector<16x48xf32> to vector<16x16xf32>
    %c1_74 = arith.constant 1 : index
    %c0_75 = arith.constant 0 : index
    %c0_76 = arith.constant 0 : index
    %205 = vector.load %arg8[%c1_74, %c0_75, %c0_76] : memref<2x16x16xf32, #tpu.memory_space<vmem>>, vector<1x16x16xf32>
    %206 = vector.shape_cast %205 : vector<1x16x16xf32> to vector<16x16xf32>
    %207 = vector.extract_strided_slice %202 {offsets = [0, 0], sizes = [16, 4], strides = [1, 1]} : vector<16x16xf32> to vector<16x4xf32>
    %208 = vector.extract_strided_slice %203 {offsets = [0, 0], sizes = [16, 4], strides = [1, 1]} : vector<16x16xf32> to vector<16x4xf32>
    %cst_77 = arith.constant dense<0.000000e+00> : vector<16x16xf32>
    %209 = tpu.matmul %207, %208, %cst_77 {dimension_numbers = #tpu.dot_dimension_numbers<[1], [1], [0], [0], [0, 0, 1, 0], [], []>} : vector<16x4xf32>, vector<16x4xf32>, vector<16x16xf32> -> vector<16x16xf32>
    %210 = vector.broadcast %17 : vector<1x16xf32> to vector<16x16xf32>
    %211 = arith.addf %209, %210 : vector<16x16xf32>
    %cst_78 = arith.constant dense<0xFF800000> : vector<16xf32>
    %212 = vector.multi_reduction <maximumf>, %211, %cst_78 [1] : vector<16x16xf32> to vector<16xf32>
    %213 = vector.shape_cast %212 : vector<16xf32> to vector<16x1xf32>
    %214 = vector.broadcast %213 : vector<16x1xf32> to vector<16x16xf32>
    %215 = arith.subf %211, %214 : vector<16x16xf32>
    %216 = math.exp %215 : vector<16x16xf32>
    %cst_79 = arith.constant dense<0.000000e+00> : vector<16xf32>
    %217 = vector.multi_reduction <add>, %216, %cst_79 [1] : vector<16x16xf32> to vector<16xf32>
    %218 = vector.shape_cast %217 : vector<16xf32> to vector<16x1xf32>
    %219 = tpu.reciprocal %218 {approx = true} : vector<16x1xf32> -> vector<16x1xf32>
    %220 = vector.broadcast %219 : vector<16x1xf32> to vector<16x16xf32>
    %221 = arith.mulf %216, %220 : vector<16x16xf32>
    %222 = vector.extract_strided_slice %204 {offsets = [0, 0], sizes = [16, 4], strides = [1, 1]} : vector<16x16xf32> to vector<16x4xf32>
    %cst_80 = arith.constant dense<0.000000e+00> : vector<16x4xf32>
    %223 = tpu.matmul %221, %222, %cst_80 {dimension_numbers = #tpu.dot_dimension_numbers<[1], [0], [0], [1], [0, 0, 1, 1], [], []>} : vector<16x16xf32>, vector<16x4xf32>, vector<16x4xf32> -> vector<16x4xf32>
    %224 = vector.extract_strided_slice %206 {offsets = [0, 0], sizes = [4, 16], strides = [1, 1]} : vector<16x16xf32> to vector<4x16xf32>
    %cst_81 = arith.constant dense<0.000000e+00> : vector<16x16xf32>
    %225 = tpu.matmul %223, %224, %cst_81 {dimension_numbers = #tpu.dot_dimension_numbers<[1], [0], [0], [1], [0, 0, 1, 1], [], []>} : vector<16x4xf32>, vector<4x16xf32>, vector<16x16xf32> -> vector<16x16xf32>
    %226 = vector.extract_strided_slice %202 {offsets = [0, 4], sizes = [16, 4], strides = [1, 1]} : vector<16x16xf32> to vector<16x4xf32>
    %227 = vector.extract_strided_slice %203 {offsets = [0, 4], sizes = [16, 4], strides = [1, 1]} : vector<16x16xf32> to vector<16x4xf32>
    %cst_82 = arith.constant dense<0.000000e+00> : vector<16x16xf32>
    %228 = tpu.matmul %226, %227, %cst_82 {dimension_numbers = #tpu.dot_dimension_numbers<[1], [1], [0], [0], [0, 0, 1, 0], [], []>} : vector<16x4xf32>, vector<16x4xf32>, vector<16x16xf32> -> vector<16x16xf32>
    %229 = vector.broadcast %17 : vector<1x16xf32> to vector<16x16xf32>
    %230 = arith.addf %228, %229 : vector<16x16xf32>
    %cst_83 = arith.constant dense<0xFF800000> : vector<16xf32>
    %231 = vector.multi_reduction <maximumf>, %230, %cst_83 [1] : vector<16x16xf32> to vector<16xf32>
    %232 = vector.shape_cast %231 : vector<16xf32> to vector<16x1xf32>
    %233 = vector.broadcast %232 : vector<16x1xf32> to vector<16x16xf32>
    %234 = arith.subf %230, %233 : vector<16x16xf32>
    %235 = math.exp %234 : vector<16x16xf32>
    %cst_84 = arith.constant dense<0.000000e+00> : vector<16xf32>
    %236 = vector.multi_reduction <add>, %235, %cst_84 [1] : vector<16x16xf32> to vector<16xf32>
    %237 = vector.shape_cast %236 : vector<16xf32> to vector<16x1xf32>
    %238 = tpu.reciprocal %237 {approx = true} : vector<16x1xf32> -> vector<16x1xf32>
    %239 = vector.broadcast %238 : vector<16x1xf32> to vector<16x16xf32>
    %240 = arith.mulf %235, %239 : vector<16x16xf32>
    %241 = vector.extract_strided_slice %204 {offsets = [0, 4], sizes = [16, 4], strides = [1, 1]} : vector<16x16xf32> to vector<16x4xf32>
    %cst_85 = arith.constant dense<0.000000e+00> : vector<16x4xf32>
    %242 = tpu.matmul %240, %241, %cst_85 {dimension_numbers = #tpu.dot_dimension_numbers<[1], [0], [0], [1], [0, 0, 1, 1], [], []>} : vector<16x16xf32>, vector<16x4xf32>, vector<16x4xf32> -> vector<16x4xf32>
    %243 = vector.extract_strided_slice %206 {offsets = [4, 0], sizes = [4, 16], strides = [1, 1]} : vector<16x16xf32> to vector<4x16xf32>
    %cst_86 = arith.constant dense<0.000000e+00> : vector<16x16xf32>
    %244 = tpu.matmul %242, %243, %cst_86 {dimension_numbers = #tpu.dot_dimension_numbers<[1], [0], [0], [1], [0, 0, 1, 1], [], []>} : vector<16x4xf32>, vector<4x16xf32>, vector<16x16xf32> -> vector<16x16xf32>
    %245 = arith.addf %225, %244 : vector<16x16xf32>
    %246 = vector.extract_strided_slice %202 {offsets = [0, 8], sizes = [16, 4], strides = [1, 1]} : vector<16x16xf32> to vector<16x4xf32>
    %247 = vector.extract_strided_slice %203 {offsets = [0, 8], sizes = [16, 4], strides = [1, 1]} : vector<16x16xf32> to vector<16x4xf32>
    %cst_87 = arith.constant dense<0.000000e+00> : vector<16x16xf32>
    %248 = tpu.matmul %246, %247, %cst_87 {dimension_numbers = #tpu.dot_dimension_numbers<[1], [1], [0], [0], [0, 0, 1, 0], [], []>} : vector<16x4xf32>, vector<16x4xf32>, vector<16x16xf32> -> vector<16x16xf32>
    %249 = vector.broadcast %17 : vector<1x16xf32> to vector<16x16xf32>
    %250 = arith.addf %248, %249 : vector<16x16xf32>
    %cst_88 = arith.constant dense<0xFF800000> : vector<16xf32>
    %251 = vector.multi_reduction <maximumf>, %250, %cst_88 [1] : vector<16x16xf32> to vector<16xf32>
    %252 = vector.shape_cast %251 : vector<16xf32> to vector<16x1xf32>
    %253 = vector.broadcast %252 : vector<16x1xf32> to vector<16x16xf32>
    %254 = arith.subf %250, %253 : vector<16x16xf32>
    %255 = math.exp %254 : vector<16x16xf32>
    %cst_89 = arith.constant dense<0.000000e+00> : vector<16xf32>
    %256 = vector.multi_reduction <add>, %255, %cst_89 [1] : vector<16x16xf32> to vector<16xf32>
    %257 = vector.shape_cast %256 : vector<16xf32> to vector<16x1xf32>
    %258 = tpu.reciprocal %257 {approx = true} : vector<16x1xf32> -> vector<16x1xf32>
    %259 = vector.broadcast %258 : vector<16x1xf32> to vector<16x16xf32>
    %260 = arith.mulf %255, %259 : vector<16x16xf32>
    %261 = vector.extract_strided_slice %204 {offsets = [0, 8], sizes = [16, 4], strides = [1, 1]} : vector<16x16xf32> to vector<16x4xf32>
    %cst_90 = arith.constant dense<0.000000e+00> : vector<16x4xf32>
    %262 = tpu.matmul %260, %261, %cst_90 {dimension_numbers = #tpu.dot_dimension_numbers<[1], [0], [0], [1], [0, 0, 1, 1], [], []>} : vector<16x16xf32>, vector<16x4xf32>, vector<16x4xf32> -> vector<16x4xf32>
    %263 = vector.extract_strided_slice %206 {offsets = [8, 0], sizes = [4, 16], strides = [1, 1]} : vector<16x16xf32> to vector<4x16xf32>
    %cst_91 = arith.constant dense<0.000000e+00> : vector<16x16xf32>
    %264 = tpu.matmul %262, %263, %cst_91 {dimension_numbers = #tpu.dot_dimension_numbers<[1], [0], [0], [1], [0, 0, 1, 1], [], []>} : vector<16x4xf32>, vector<4x16xf32>, vector<16x16xf32> -> vector<16x16xf32>
    %265 = arith.addf %245, %264 : vector<16x16xf32>
    %266 = vector.extract_strided_slice %202 {offsets = [0, 12], sizes = [16, 4], strides = [1, 1]} : vector<16x16xf32> to vector<16x4xf32>
    %267 = vector.extract_strided_slice %203 {offsets = [0, 12], sizes = [16, 4], strides = [1, 1]} : vector<16x16xf32> to vector<16x4xf32>
    %cst_92 = arith.constant dense<0.000000e+00> : vector<16x16xf32>
    %268 = tpu.matmul %266, %267, %cst_92 {dimension_numbers = #tpu.dot_dimension_numbers<[1], [1], [0], [0], [0, 0, 1, 0], [], []>} : vector<16x4xf32>, vector<16x4xf32>, vector<16x16xf32> -> vector<16x16xf32>
    %269 = vector.broadcast %17 : vector<1x16xf32> to vector<16x16xf32>
    %270 = arith.addf %268, %269 : vector<16x16xf32>
    %cst_93 = arith.constant dense<0xFF800000> : vector<16xf32>
    %271 = vector.multi_reduction <maximumf>, %270, %cst_93 [1] : vector<16x16xf32> to vector<16xf32>
    %272 = vector.shape_cast %271 : vector<16xf32> to vector<16x1xf32>
    %273 = vector.broadcast %272 : vector<16x1xf32> to vector<16x16xf32>
    %274 = arith.subf %270, %273 : vector<16x16xf32>
    %275 = math.exp %274 : vector<16x16xf32>
    %cst_94 = arith.constant dense<0.000000e+00> : vector<16xf32>
    %276 = vector.multi_reduction <add>, %275, %cst_94 [1] : vector<16x16xf32> to vector<16xf32>
    %277 = vector.shape_cast %276 : vector<16xf32> to vector<16x1xf32>
    %278 = tpu.reciprocal %277 {approx = true} : vector<16x1xf32> -> vector<16x1xf32>
    %279 = vector.broadcast %278 : vector<16x1xf32> to vector<16x16xf32>
    %280 = arith.mulf %275, %279 : vector<16x16xf32>
    %281 = vector.extract_strided_slice %204 {offsets = [0, 12], sizes = [16, 4], strides = [1, 1]} : vector<16x16xf32> to vector<16x4xf32>
    %cst_95 = arith.constant dense<0.000000e+00> : vector<16x4xf32>
    %282 = tpu.matmul %280, %281, %cst_95 {dimension_numbers = #tpu.dot_dimension_numbers<[1], [0], [0], [1], [0, 0, 1, 1], [], []>} : vector<16x16xf32>, vector<16x4xf32>, vector<16x4xf32> -> vector<16x4xf32>
    %283 = vector.extract_strided_slice %206 {offsets = [12, 0], sizes = [4, 16], strides = [1, 1]} : vector<16x16xf32> to vector<4x16xf32>
    %cst_96 = arith.constant dense<0.000000e+00> : vector<16x16xf32>
    %284 = tpu.matmul %282, %283, %cst_96 {dimension_numbers = #tpu.dot_dimension_numbers<[1], [0], [0], [1], [0, 0, 1, 1], [], []>} : vector<16x4xf32>, vector<4x16xf32>, vector<16x16xf32> -> vector<16x16xf32>
    %285 = arith.addf %265, %284 : vector<16x16xf32>
    %286 = vector.broadcast %187 : vector<1x16xf32> to vector<16x16xf32>
    %287 = arith.addf %285, %286 : vector<16x16xf32>
    %288 = arith.addf %184, %287 : vector<16x16xf32>
    %cst_97 = arith.constant dense<0.000000e+00> : vector<16xf32>
    %289 = vector.multi_reduction <add>, %288, %cst_97 [1] : vector<16x16xf32> to vector<16xf32>
    %290 = vector.shape_cast %289 : vector<16xf32> to vector<16x1xf32>
    %cst_98 = arith.constant 1.600000e+01 : f32
    %291 = vector.broadcast %cst_98 : f32 to vector<16x1xf32>
    %292 = arith.divf %290, %291 : vector<16x1xf32>
    %293 = vector.broadcast %292 : vector<16x1xf32> to vector<16x16xf32>
    %294 = arith.subf %288, %293 : vector<16x16xf32>
    %295 = arith.mulf %294, %294 : vector<16x16xf32>
    %cst_99 = arith.constant dense<0.000000e+00> : vector<16xf32>
    %296 = vector.multi_reduction <add>, %295, %cst_99 [1] : vector<16x16xf32> to vector<16xf32>
    %297 = vector.shape_cast %296 : vector<16xf32> to vector<16x1xf32>
    %cst_100 = arith.constant 1.600000e+01 : f32
    %298 = vector.broadcast %cst_100 : f32 to vector<16x1xf32>
    %299 = arith.divf %297, %298 : vector<16x1xf32>
    %300 = vector.broadcast %292 : vector<16x1xf32> to vector<16x16xf32>
    %301 = arith.subf %288, %300 : vector<16x16xf32>
    %cst_101 = arith.constant 9.99999974E-6 : f32
    %302 = vector.broadcast %cst_101 : f32 to vector<16x1xf32>
    %303 = arith.addf %299, %302 : vector<16x1xf32>
    %304 = math.rsqrt %303 : vector<16x1xf32>
    %305 = vector.broadcast %304 : vector<16x1xf32> to vector<16x16xf32>
    %306 = arith.mulf %301, %305 : vector<16x16xf32>
    %307 = vector.broadcast %188 : vector<1x16xf32> to vector<16x16xf32>
    %308 = arith.mulf %306, %307 : vector<16x16xf32>
    %309 = vector.broadcast %189 : vector<1x16xf32> to vector<16x16xf32>
    %310 = arith.addf %308, %309 : vector<16x16xf32>
    %c1_102 = arith.constant 1 : index
    %c0_103 = arith.constant 0 : index
    %c0_104 = arith.constant 0 : index
    %311 = vector.load %arg9[%c1_102, %c0_103, %c0_104] : memref<2x16x32xf32, #tpu.memory_space<vmem>>, vector<1x16x32xf32>
    %312 = vector.shape_cast %311 : vector<1x16x32xf32> to vector<16x32xf32>
    %cst_105 = arith.constant dense<0.000000e+00> : vector<16x32xf32>
    %313 = tpu.matmul %310, %312, %cst_105 {dimension_numbers = #tpu.dot_dimension_numbers<[1], [0], [0], [1], [0, 0, 1, 1], [], []>} : vector<16x16xf32>, vector<16x32xf32>, vector<16x32xf32> -> vector<16x32xf32>
    %c1_106 = arith.constant 1 : index
    %c0_107 = arith.constant 0 : index
    %c0_108 = arith.constant 0 : index
    %314 = vector.load %arg10[%c1_106, %c0_107, %c0_108] : memref<2x1x32xf32, #tpu.memory_space<vmem>>, vector<1x1x32xf32>
    %315 = vector.shape_cast %314 : vector<1x1x32xf32> to vector<1x32xf32>
    %316 = vector.broadcast %315 : vector<1x32xf32> to vector<16x32xf32>
    %317 = arith.addf %313, %316 : vector<16x32xf32>
    %cst_109 = arith.constant 0.000000e+00 : f32
    %318 = vector.broadcast %cst_109 : f32 to vector<16x32xf32>
    %319 = arith.maximumf %317, %318 : vector<16x32xf32>
    %c1_110 = arith.constant 1 : index
    %c0_111 = arith.constant 0 : index
    %c0_112 = arith.constant 0 : index
    %320 = vector.load %arg11[%c1_110, %c0_111, %c0_112] : memref<2x32x16xf32, #tpu.memory_space<vmem>>, vector<1x32x16xf32>
    %321 = vector.shape_cast %320 : vector<1x32x16xf32> to vector<32x16xf32>
    %cst_113 = arith.constant dense<0.000000e+00> : vector<16x16xf32>
    %322 = tpu.matmul %319, %321, %cst_113 {dimension_numbers = #tpu.dot_dimension_numbers<[1], [0], [0], [1], [0, 0, 1, 1], [], []>} : vector<16x32xf32>, vector<32x16xf32>, vector<16x16xf32> -> vector<16x16xf32>
    %323 = vector.broadcast %190 : vector<1x16xf32> to vector<16x16xf32>
    %324 = arith.addf %322, %323 : vector<16x16xf32>
    %325 = arith.addf %310, %324 : vector<16x16xf32>
    %cst_114 = arith.constant dense<0.000000e+00> : vector<16xf32>
    %326 = vector.multi_reduction <add>, %325, %cst_114 [1] : vector<16x16xf32> to vector<16xf32>
    %327 = vector.shape_cast %326 : vector<16xf32> to vector<16x1xf32>
    %cst_115 = arith.constant 1.600000e+01 : f32
    %328 = vector.broadcast %cst_115 : f32 to vector<16x1xf32>
    %329 = arith.divf %327, %328 : vector<16x1xf32>
    %330 = vector.broadcast %329 : vector<16x1xf32> to vector<16x16xf32>
    %331 = arith.subf %325, %330 : vector<16x16xf32>
    %332 = arith.mulf %331, %331 : vector<16x16xf32>
    %cst_116 = arith.constant dense<0.000000e+00> : vector<16xf32>
    %333 = vector.multi_reduction <add>, %332, %cst_116 [1] : vector<16x16xf32> to vector<16xf32>
    %334 = vector.shape_cast %333 : vector<16xf32> to vector<16x1xf32>
    %cst_117 = arith.constant 1.600000e+01 : f32
    %335 = vector.broadcast %cst_117 : f32 to vector<16x1xf32>
    %336 = arith.divf %334, %335 : vector<16x1xf32>
    %337 = vector.broadcast %329 : vector<16x1xf32> to vector<16x16xf32>
    %338 = arith.subf %325, %337 : vector<16x16xf32>
    %cst_118 = arith.constant 9.99999974E-6 : f32
    %339 = vector.broadcast %cst_118 : f32 to vector<16x1xf32>
    %340 = arith.addf %336, %339 : vector<16x1xf32>
    %341 = math.rsqrt %340 : vector<16x1xf32>
    %342 = vector.broadcast %341 : vector<16x1xf32> to vector<16x16xf32>
    %343 = arith.mulf %338, %342 : vector<16x16xf32>
    %344 = vector.broadcast %191 : vector<1x16xf32> to vector<16x16xf32>
    %345 = arith.mulf %343, %344 : vector<16x16xf32>
    %346 = vector.broadcast %192 : vector<1x16xf32> to vector<16x16xf32>
    %347 = arith.addf %345, %346 : vector<16x16xf32>
    %348 = vector.broadcast %21 : vector<16x1xf32> to vector<16x16xf32>
    %349 = arith.mulf %347, %348 : vector<16x16xf32>
    %cst_119 = arith.constant dense<0.000000e+00> : vector<16xf32>
    %350 = vector.multi_reduction <add>, %349, %cst_119 [0] : vector<16x16xf32> to vector<16xf32>
    %351 = vector.shape_cast %350 : vector<16xf32> to vector<1x16xf32>
    %352 = arith.sitofp %10 : i32 to f32
    %cst_120 = arith.constant 1.000000e+00 : f32
    %353 = arith.addf %352, %cst_120 : f32
    %354 = vector.broadcast %353 : f32 to vector<1x16xf32>
    %355 = arith.divf %351, %354 : vector<1x16xf32>
    %c0_121 = arith.constant 0 : index
    %c0_122 = arith.constant 0 : index
    %c0_123 = arith.constant 0 : index
    %356 = vector.load %arg3[%c0_121, %c0_122, %c0_123] : memref<1x1x4xf32, #tpu.memory_space<vmem>>, vector<1x1x4xf32>
    %357 = vector.shape_cast %356 : vector<1x1x4xf32> to vector<1x4xf32>
    %c0_124 = arith.constant 0 : index
    %c0_125 = arith.constant 0 : index
    %358 = vector.load %arg13[%c0_124, %c0_125] : memref<4x8xf32, #tpu.memory_space<vmem>>, vector<4x8xf32>
    %cst_126 = arith.constant dense<0.000000e+00> : vector<1x8xf32>
    %359 = tpu.matmul %357, %358, %cst_126 {dimension_numbers = #tpu.dot_dimension_numbers<[1], [0], [0], [1], [0, 0, 1, 1], [], []>} : vector<1x4xf32>, vector<4x8xf32>, vector<1x8xf32> -> vector<1x8xf32>
    %c0_127 = arith.constant 0 : index
    %c0_128 = arith.constant 0 : index
    %360 = vector.load %arg14[%c0_127, %c0_128] : memref<1x8xf32, #tpu.memory_space<vmem>>, vector<1x8xf32>
    %361 = arith.addf %359, %360 : vector<1x8xf32>
    %c0_129 = arith.constant 0 : index
    %c0_130 = arith.constant 0 : index
    %362 = vector.load %arg15[%c0_129, %c0_130] : memref<24x24xf32, #tpu.memory_space<vmem>>, vector<16x24xf32>
    %cst_131 = arith.constant dense<0.000000e+00> : vector<1x24xf32>
    %363 = tpu.matmul %355, %362, %cst_131 {dimension_numbers = #tpu.dot_dimension_numbers<[1], [0], [0], [1], [0, 0, 1, 1], [], []>} : vector<1x16xf32>, vector<16x24xf32>, vector<1x24xf32> -> vector<1x24xf32>
    %c16 = arith.constant 16 : index
    %c0_132 = arith.constant 0 : index
    %364 = vector.load %arg15[%c16, %c0_132] : memref<24x24xf32, #tpu.memory_space<vmem>>, vector<8x24xf32>
    %cst_133 = arith.constant dense<0.000000e+00> : vector<1x24xf32>
    %365 = tpu.matmul %361, %364, %cst_133 {dimension_numbers = #tpu.dot_dimension_numbers<[1], [0], [0], [1], [0, 0, 1, 1], [], []>} : vector<1x8xf32>, vector<8x24xf32>, vector<1x24xf32> -> vector<1x24xf32>
    %366 = arith.addf %363, %365 : vector<1x24xf32>
    %c0_134 = arith.constant 0 : index
    %c0_135 = arith.constant 0 : index
    %367 = vector.load %arg16[%c0_134, %c0_135] : memref<1x24xf32, #tpu.memory_space<vmem>>, vector<1x24xf32>
    %368 = arith.addf %366, %367 : vector<1x24xf32>
    %cst_136 = arith.constant 0.000000e+00 : f32
    %369 = vector.broadcast %cst_136 : f32 to vector<1x24xf32>
    %370 = arith.maximumf %368, %369 : vector<1x24xf32>
    %c0_137 = arith.constant 0 : index
    %c0_138 = arith.constant 0 : index
    %371 = vector.load %arg17[%c0_137, %c0_138] : memref<24x3xf32, #tpu.memory_space<vmem>>, vector<24x3xf32>
    %cst_139 = arith.constant dense<0.000000e+00> : vector<1x3xf32>
    %372 = tpu.matmul %370, %371, %cst_139 {dimension_numbers = #tpu.dot_dimension_numbers<[1], [0], [0], [1], [0, 0, 1, 1], [], []>} : vector<1x24xf32>, vector<24x3xf32>, vector<1x3xf32> -> vector<1x3xf32>
    %c0_140 = arith.constant 0 : index
    %c0_141 = arith.constant 0 : index
    %373 = vector.load %arg18[%c0_140, %c0_141] : memref<1x3xf32, #tpu.memory_space<vmem>>, vector<1x3xf32>
    %374 = arith.addf %372, %373 : vector<1x3xf32>
    %375 = vector.shape_cast %374 : vector<1x3xf32> to vector<1x1x3xf32>
    %c0_142 = arith.constant 0 : index
    %c0_143 = arith.constant 0 : index
    %c0_144 = arith.constant 0 : index
    %376 = vector.load %arg19[%c0_142, %c0_143, %c0_144] : memref<1x1x3xf32, #tpu.memory_space<vmem>>, vector<1x1x3xf32>
    tpu.vector_store %arg19[%c0_142, %c0_143, %c0_144], %375 {strides = array<i32>} : memref<1x1x3xf32, #tpu.memory_space<vmem>>, vector<1x1x3xf32>,
    return
  }
  func.func @transform_0(%arg0: i32, %arg1: memref<2xi32, #tpu.memory_space<smem>>) -> (i32, i32, i32) {
    %c0_i32 = arith.constant 0 : i32
    %c0_i32_0 = arith.constant 0 : i32
    %c0_i32_1 = arith.constant 0 : i32
    return %arg0, %c0_i32, %c0_i32_0 : i32, i32, i32
  }
  func.func @transform_1(%arg0: i32, %arg1: memref<2xi32, #tpu.memory_space<smem>>) -> (i32, i32, i32) {
    %c0_i32 = arith.constant 0 : i32
    %c0_i32_0 = arith.constant 0 : i32
    %c0_i32_1 = arith.constant 0 : i32
    return %arg0, %c0_i32, %c0_i32_0 : i32, i32, i32
  }
  func.func @transform_2(%arg0: i32, %arg1: memref<2xi32, #tpu.memory_space<smem>>) -> (i32, i32) {
    %c0_i32 = arith.constant 0 : i32
    %c0_i32_0 = arith.constant 0 : i32
    %c0_i32_1 = arith.constant 0 : i32
    return %c0_i32, %c0_i32_0 : i32, i32
  }
  func.func @transform_3(%arg0: i32, %arg1: memref<2xi32, #tpu.memory_space<smem>>) -> (i32, i32) {
    %c0_i32 = arith.constant 0 : i32
    %c0_i32_0 = arith.constant 0 : i32
    %c0_i32_1 = arith.constant 0 : i32
    return %c0_i32, %c0_i32_0 : i32, i32
  }
  func.func @transform_4(%arg0: i32, %arg1: memref<2xi32, #tpu.memory_space<smem>>) -> (i32, i32, i32) {
    %c0_i32 = arith.constant 0 : i32
    %c0_i32_0 = arith.constant 0 : i32
    %c0_i32_1 = arith.constant 0 : i32
    %c0_i32_2 = arith.constant 0 : i32
    return %c0_i32, %c0_i32_0, %c0_i32_1 : i32, i32, i32
  }
  func.func @transform_5(%arg0: i32, %arg1: memref<2xi32, #tpu.memory_space<smem>>) -> (i32, i32, i32) {
    %c0_i32 = arith.constant 0 : i32
    %c0_i32_0 = arith.constant 0 : i32
    %c0_i32_1 = arith.constant 0 : i32
    %c0_i32_2 = arith.constant 0 : i32
    return %c0_i32, %c0_i32_0, %c0_i32_1 : i32, i32, i32
  }
  func.func @transform_6(%arg0: i32, %arg1: memref<2xi32, #tpu.memory_space<smem>>) -> (i32, i32, i32) {
    %c0_i32 = arith.constant 0 : i32
    %c0_i32_0 = arith.constant 0 : i32
    %c0_i32_1 = arith.constant 0 : i32
    %c0_i32_2 = arith.constant 0 : i32
    return %c0_i32, %c0_i32_0, %c0_i32_1 : i32, i32, i32
  }
  func.func @transform_7(%arg0: i32, %arg1: memref<2xi32, #tpu.memory_space<smem>>) -> (i32, i32, i32) {
    %c0_i32 = arith.constant 0 : i32
    %c0_i32_0 = arith.constant 0 : i32
    %c0_i32_1 = arith.constant 0 : i32
    %c0_i32_2 = arith.constant 0 : i32
    return %c0_i32, %c0_i32_0, %c0_i32_1 : i32, i32, i32
  }
  func.func @transform_8(%arg0: i32, %arg1: memref<2xi32, #tpu.memory_space<smem>>) -> (i32, i32, i32) {
    %c0_i32 = arith.constant 0 : i32
    %c0_i32_0 = arith.constant 0 : i32
    %c0_i32_1 = arith.constant 0 : i32
    %c0_i32_2 = arith.constant 0 : i32
    return %c0_i32, %c0_i32_0, %c0_i32_1 : i32, i32, i32
  }
  func.func @transform_9(%arg0: i32, %arg1: memref<2xi32, #tpu.memory_space<smem>>) -> (i32, i32, i32) {
    %c0_i32 = arith.constant 0 : i32
    %c0_i32_0 = arith.constant 0 : i32
    %c0_i32_1 = arith.constant 0 : i32
    %c0_i32_2 = arith.constant 0 : i32
    return %c0_i32, %c0_i32_0, %c0_i32_1 : i32, i32, i32
  }
  func.func @transform_10(%arg0: i32, %arg1: memref<2xi32, #tpu.memory_space<smem>>) -> (i32, i32, i32) {
    %c0_i32 = arith.constant 0 : i32
    %c0_i32_0 = arith.constant 0 : i32
    %c0_i32_1 = arith.constant 0 : i32
    %c0_i32_2 = arith.constant 0 : i32
    return %c0_i32, %c0_i32_0, %c0_i32_1 : i32, i32, i32
  }
  func.func @transform_11(%arg0: i32, %arg1: memref<2xi32, #tpu.memory_space<smem>>) -> (i32, i32) {
    %c0_i32 = arith.constant 0 : i32
    %c0_i32_0 = arith.constant 0 : i32
    %c0_i32_1 = arith.constant 0 : i32
    return %c0_i32, %c0_i32_0 : i32, i32
  }
  func.func @transform_12(%arg0: i32, %arg1: memref<2xi32, #tpu.memory_space<smem>>) -> (i32, i32) {
    %c0_i32 = arith.constant 0 : i32
    %c0_i32_0 = arith.constant 0 : i32
    %c0_i32_1 = arith.constant 0 : i32
    return %c0_i32, %c0_i32_0 : i32, i32
  }
  func.func @transform_13(%arg0: i32, %arg1: memref<2xi32, #tpu.memory_space<smem>>) -> (i32, i32) {
    %c0_i32 = arith.constant 0 : i32
    %c0_i32_0 = arith.constant 0 : i32
    %c0_i32_1 = arith.constant 0 : i32
    return %c0_i32, %c0_i32_0 : i32, i32
  }
  func.func @transform_14(%arg0: i32, %arg1: memref<2xi32, #tpu.memory_space<smem>>) -> (i32, i32) {
    %c0_i32 = arith.constant 0 : i32
    %c0_i32_0 = arith.constant 0 : i32
    %c0_i32_1 = arith.constant 0 : i32
    return %c0_i32, %c0_i32_0 : i32, i32
  }
  func.func @transform_15(%arg0: i32, %arg1: memref<2xi32, #tpu.memory_space<smem>>) -> (i32, i32) {
    %c0_i32 = arith.constant 0 : i32
    %c0_i32_0 = arith.constant 0 : i32
    %c0_i32_1 = arith.constant 0 : i32
    return %c0_i32, %c0_i32_0 : i32, i32
  }
  func.func @transform_16(%arg0: i32, %arg1: memref<2xi32, #tpu.memory_space<smem>>) -> (i32, i32) {
    %c0_i32 = arith.constant 0 : i32
    %c0_i32_0 = arith.constant 0 : i32
    %c0_i32_1 = arith.constant 0 : i32
    return %c0_i32, %c0_i32_0 : i32, i32
  }
  func.func @transform_17(%arg0: i32, %arg1: memref<2xi32, #tpu.memory_space<smem>>) -> (i32, i32, i32) {
    %c0_i32 = arith.constant 0 : i32
    %c0_i32_0 = arith.constant 0 : i32
    %c0_i32_1 = arith.constant 0 : i32
    return %arg0, %c0_i32, %c0_i32_0 : i32, i32, i32
  }
}

</mosaic_0001>

<llo_original>
// kernel: tpu_custom_call.1
$region0: #{tpu_custom_call.1}
  #allocation0 [shape = 'u32[]', space=smem, size = 0x4, offset = 0x4, fixed_abs, tag = 'smem constant byte address 0x4 - core index']
  #allocation1 [shape = 'u32[144,128]{1,0:T(1,128)}', space=vmem, size = 0x12000, scoped, tag = 'internal scratch']
  #allocation2 [shape = 's32[1]{0}', space=sflag, size = 0x4, scoped, tag = 'scoped memory for tpu_custom_call.1']
  #allocation3 [shape = 'u8[512]{0}', space=smem, size = 0x200, scoped, tag = 'prefetched SMEM operand 0']
  %s0 = inlined_call_operand.vmem [shape: s32[2], index: 0, kind: input, shape index: {}]
  %s1 = inlined_call_operand.vmem [shape: f32[2,16,9], index: 1, kind: input, shape index: {}]
  %s2 = inlined_call_operand.vmem [shape: f32[2,1,4], index: 2, kind: input, shape index: {}]
  %s3 = inlined_call_operand.vmem [shape: f32[9,16], index: 3, kind: input, shape index: {}]
  %s4 = inlined_call_operand.vmem [shape: f32[1,16], index: 4, kind: input, shape index: {}]
  %s5 = inlined_call_operand.vmem [shape: f32[2,16,48], index: 5, kind: input, shape index: {}]
  %s6 = inlined_call_operand.vmem [shape: f32[2,1,48], index: 6, kind: input, shape index: {}]
  %s7 = inlined_call_operand.vmem [shape: f32[2,16,16], index: 7, kind: input, shape index: {}]
  %s8 = inlined_call_operand.vmem [shape: f32[2,16,32], index: 8, kind: input, shape index: {}]
  %s9 = inlined_call_operand.vmem [shape: f32[2,1,32], index: 9, kind: input, shape index: {}]
  %s10 = inlined_call_operand.vmem [shape: f32[2,32,16], index: 10, kind: input, shape index: {}]
  %s11 = inlined_call_operand.vmem [shape: f32[2,6,16], index: 11, kind: input, shape index: {}]
  %s12 = inlined_call_operand.vmem [shape: f32[4,8], index: 12, kind: input, shape index: {}]
  %s13 = inlined_call_operand.vmem [shape: f32[1,8], index: 13, kind: input, shape index: {}]
  %s14 = inlined_call_operand.vmem [shape: f32[24,24], index: 14, kind: input, shape index: {}]
  %s15 = inlined_call_operand.vmem [shape: f32[1,24], index: 15, kind: input, shape index: {}]
  %s16 = inlined_call_operand.vmem [shape: f32[24,3], index: 16, kind: input, shape index: {}]
  %s17 = inlined_call_operand.vmem [shape: f32[1,3], index: 17, kind: input, shape index: {}]
  %s18 = inlined_call_operand.hbm [shape: f32[2,1,3], index: 18, kind: output, shape index: {}]
  %s19 = sld [smem:[#allocation0]]
  $region101: #{tpu_custom_call.1} parent=0
    _
  %s21 = ssub.s32 1, %s19
  %s22 = scalar_select 0, %s21, %s19
  %s23 = sshll.u32 %s0, 4
  %s24 = int_to_ptr.vmem [resolvable:$true] %s23
  %26 = dma.vmem_to_smem %s24, 16, [#allocation3], [#allocation2]
  %27 = dma.done [#allocation2], 16
  %28 = sfence
  $region1: #{tpu_custom_call.1} parent=0
    #allocation4 [shape = 'u8[1024]{0}', space=vmem, size = 0x400, scoped, tag = 'output window, operand 0']
    #allocation5 [shape = 's32[2]{0}', space=sflag, size = 0x8, scoped, tag = 'scoped memory for tpu_custom_call.1']
    %29 = vsyncpa [#allocation5], 0
    %s30 = scalar_lea.sflag [#allocation5], 1
    %31 = vsyncpa %s30, 0
    loop: start=0, step=1, limit=4
    $region2: #{tpu_custom_call.1} parent=1 // loop_pre_header
      _
    $region3: #{tpu_custom_call.1} parent=1 // loop_header
      %s33 = sphi 0, %s37
      %p34 = scmp.ge.s32.totalorder %s33, 4
      %s43 = sphi 0, %s45
      %s46 = sphi 0, %s43
      %s47 = sphi 0, %s46
      %s63 = sphi 0, %s47
      %s69 = sphi 0, %s71
      %s72 = sphi 0, %s69
      %s73 = sphi 0, %s72
      %s89 = sphi 0, %s73
      %s93 = sphi 0, %s93
      %s95 = sphi 0, %s93
      %s96 = sphi 0, %s95
      %s110 = sphi 0, %s96
      %s114 = sphi 0, %s114
      %s116 = sphi 0, %s114
      %s117 = sphi 0, %s116
      %s131 = sphi 0, %s117
      %s135 = sphi 0, %s135
      %s137 = sphi 0, %s135
      %s138 = sphi 0, %s137
      %s152 = sphi 0, %s138
      %s156 = sphi 0, %s156
      %s158 = sphi 0, %s156
      %s159 = sphi 0, %s158
      %s173 = sphi 0, %s159
      %s177 = sphi 0, %s177
      %s179 = sphi 0, %s177
      %s180 = sphi 0, %s179
      %s194 = sphi 0, %s180
      %s198 = sphi 0, %s198
      %s200 = sphi 0, %s198
      %s201 = sphi 0, %s200
      %s215 = sphi 0, %s201
      %s219 = sphi 0, %s219
      %s221 = sphi 0, %s219
      %s222 = sphi 0, %s221
      %s236 = sphi 0, %s222
      %s240 = sphi 0, %s240
      %s242 = sphi 0, %s240
      %s243 = sphi 0, %s242
      %s257 = sphi 0, %s243
      %s261 = sphi 0, %s261
      %s263 = sphi 0, %s261
      %s264 = sphi 0, %s263
      %s278 = sphi 0, %s264
      %s282 = sphi 0, %s282
      %s284 = sphi 0, %s282
      %s285 = sphi 0, %s284
      %s299 = sphi 0, %s285
      %s303 = sphi 0, %s303
      %s305 = sphi 0, %s303
      %s306 = sphi 0, %s305
      %s320 = sphi 0, %s306
      %s324 = sphi 0, %s324
      %s326 = sphi 0, %s324
      %s327 = sphi 0, %s326
      %s341 = sphi 0, %s327
      %s345 = sphi 0, %s345
      %s347 = sphi 0, %s345
      %s348 = sphi 0, %s347
      %s362 = sphi 0, %s348
      %s366 = sphi 0, %s366
      %s368 = sphi 0, %s366
      %s369 = sphi 0, %s368
      %s383 = sphi 0, %s369
      %s387 = sphi 0, %s387
      %s389 = sphi 0, %s387
      %s390 = sphi 0, %s389
      %s404 = sphi 0, %s390
      %s410 = sphi 0, %s412
      %s413 = sphi 0, %s410
      %s414 = sphi 0, %s413
      %s430 = sphi 0, %s414
    $region4: #{tpu_custom_call.1} parent=1 // loop_header_branch
      %36 = sbr.rel (%p34) target = $region8
    $region5: #{tpu_custom_call.1} parent=1 // loop_body
      %s38 = ssub.s32 %s33, 1
      %s39 = ssub.s32 %s33, 2
      %s40 = sadd.s32 %s33, 1
      %s41 = ssub.s32 %s33, %s40
      %p42 = scmp.eq.s32.totalorder %s41, 0
      %s44 = sadd.s32 %s43, 1
      %s45 = scalar_select %p42, %s43, %s44
      %p48 = pneg %p42
      %p49 = scmp.eq.s32.totalorder %s33, 1
      %p50 = por %p48, %p49
      %p51 = scmp.ne.s32.totalorder %s43, %s46
      %p52 = scmp.eq.s32.totalorder %s33, 0
      %p53 = por %p51, %p52
      %p54 = scmp.ne.s32.totalorder %s43, %s46
      %p55 = scmp.eq.s32.totalorder %s38, 1
      %p56 = por %p54, %p55
      %p57 = scmp.ne.s32.totalorder %s46, %s47
      %p58 = scmp.eq.s32.totalorder %s38, 0
      %p59 = por %p57, %p58
      %p60 = scmp.ne.s32.totalorder %s46, %s47
      %p61 = scmp.eq.s32.totalorder %s39, 1
      %p62 = por %p60, %p61
      %p64 = scmp.ne.s32.totalorder %s47, %s63
      %p65 = scmp.eq.s32.totalorder %s39, 0
      %p66 = por %p64, %p65
      %s67 = ssub.s32 %s33, %s40
      %p68 = scmp.eq.s32.totalorder %s67, 0
      %s70 = sadd.s32 %s69, 1
      %s71 = scalar_select %p68, %s69, %s70
      %p74 = pneg %p68
      %p75 = scmp.eq.s32.totalorder %s33, 1
      %p76 = por %p74, %p75
      %p77 = scmp.ne.s32.totalorder %s69, %s72
      %p78 = scmp.eq.s32.totalorder %s33, 0
      %p79 = por %p77, %p78
      %p80 = scmp.ne.s32.totalorder %s69, %s72
      %p81 = scmp.eq.s32.totalorder %s38, 1
      %p82 = por %p80, %p81
      %p83 = scmp.ne.s32.totalorder %s72, %s73
      %p84 = scmp.eq.s32.totalorder %s38, 0
      %p85 = por %p83, %p84
      %p86 = scmp.ne.s32.totalorder %s72, %s73
      %p87 = scmp.eq.s32.totalorder %s39, 1
      %p88 = por %p86, %p87
      %p90 = scmp.ne.s32.totalorder %s73, %s89
      %p91 = scmp.eq.s32.totalorder %s39, 0
      %p92 = por %p90, %p91
      %s94 = sadd.s32 %s93, 1
      %p97 = scmp.eq.s32.totalorder %s33, 1
      %p98 = scmp.ne.s32.totalorder %s93, %s95
      %p99 = scmp.eq.s32.totalorder %s33, 0
      %p100 = por %p98, %p99
      %p101 = scmp.ne.s32.totalorder %s93, %s95
      %p102 = scmp.eq.s32.totalorder %s38, 1
      %p103 = por %p101, %p102
      %p104 = scmp.ne.s32.totalorder %s95, %s96
      %p105 = scmp.eq.s32.totalorder %s38, 0
      %p106 = por %p104, %p105
      %p107 = scmp.ne.s32.totalorder %s95, %s96
      %p108 = scmp.eq.s32.totalorder %s39, 1
      %p109 = por %p107, %p108
      %p111 = scmp.ne.s32.totalorder %s96, %s110
      %p112 = scmp.eq.s32.totalorder %s39, 0
      %p113 = por %p111, %p112
      %s115 = sadd.s32 %s114, 1
      %p118 = scmp.eq.s32.totalorder %s33, 1
      %p119 = scmp.ne.s32.totalorder %s114, %s116
      %p120 = scmp.eq.s32.totalorder %s33, 0
      %p121 = por %p119, %p120
      %p122 = scmp.ne.s32.totalorder %s114, %s116
      %p123 = scmp.eq.s32.totalorder %s38, 1
      %p124 = por %p122, %p123
      %p125 = scmp.ne.s32.totalorder %s116, %s117
      %p126 = scmp.eq.s32.totalorder %s38, 0
      %p127 = por %p125, %p126
      %p128 = scmp.ne.s32.totalorder %s116, %s117
      %p129 = scmp.eq.s32.totalorder %s39, 1
      %p130 = por %p128, %p129
      %p132 = scmp.ne.s32.totalorder %s117, %s131
      %p133 = scmp.eq.s32.totalorder %s39, 0
      %p134 = por %p132, %p133
      %s136 = sadd.s32 %s135, 1
      %p139 = scmp.eq.s32.totalorder %s33, 1
      %p140 = scmp.ne.s32.totalorder %s135, %s137
      %p141 = scmp.eq.s32.totalorder %s33, 0
      %p142 = por %p140, %p141
      %p143 = scmp.ne.s32.totalorder %s135, %s137
      %p144 = scmp.eq.s32.totalorder %s38, 1
      %p145 = por %p143, %p144
      %p146 = scmp.ne.s32.totalorder %s137, %s138
      %p147 = scmp.eq.s32.totalorder %s38, 0
      %p148 = por %p146, %p147
      %p149 = scmp.ne.s32.totalorder %s137, %s138
      %p150 = scmp.eq.s32.totalorder %s39, 1
      %p151 = por %p149, %p150
      %p153 = scmp.ne.s32.totalorder %s138, %s152
      %p154 = scmp.eq.s32.totalorder %s39, 0
      %p155 = por %p153, %p154
      %s157 = sadd.s32 %s156, 1
      %p160 = scmp.eq.s32.totalorder %s33, 1
      %p161 = scmp.ne.s32.totalorder %s156, %s158
      %p162 = scmp.eq.s32.totalorder %s33, 0
      %p163 = por %p161, %p162
      %p164 = scmp.ne.s32.totalorder %s156, %s158
      %p165 = scmp.eq.s32.totalorder %s38, 1
      %p166 = por %p164, %p165
      %p167 = scmp.ne.s32.totalorder %s158, %s159
      %p168 = scmp.eq.s32.totalorder %s38, 0
      %p169 = por %p167, %p168
      %p170 = scmp.ne.s32.totalorder %s158, %s159
      %p171 = scmp.eq.s32.totalorder %s39, 1
      %p172 = por %p170, %p171
      %p174 = scmp.ne.s32.totalorder %s159, %s173
      %p175 = scmp.eq.s32.totalorder %s39, 0
      %p176 = por %p174, %p175
      %s178 = sadd.s32 %s177, 1
      %p181 = scmp.eq.s32.totalorder %s33, 1
      %p182 = scmp.ne.s32.totalorder %s177, %s179
      %p183 = scmp.eq.s32.totalorder %s33, 0
      %p184 = por %p182, %p183
      %p185 = scmp.ne.s32.totalorder %s177, %s179
      %p186 = scmp.eq.s32.totalorder %s38, 1
      %p187 = por %p185, %p186
      %p188 = scmp.ne.s32.totalorder %s179, %s180
      %p189 = scmp.eq.s32.totalorder %s38, 0
      %p190 = por %p188, %p189
      %p191 = scmp.ne.s32.totalorder %s179, %s180
      %p192 = scmp.eq.s32.totalorder %s39, 1
      %p193 = por %p191, %p192
      %p195 = scmp.ne.s32.totalorder %s180, %s194
      %p196 = scmp.eq.s32.totalorder %s39, 0
      %p197 = por %p195, %p196
      %s199 = sadd.s32 %s198, 1
      %p202 = scmp.eq.s32.totalorder %s33, 1
      %p203 = scmp.ne.s32.totalorder %s198, %s200
      %p204 = scmp.eq.s32.totalorder %s33, 0
      %p205 = por %p203, %p204
      %p206 = scmp.ne.s32.totalorder %s198, %s200
      %p207 = scmp.eq.s32.totalorder %s38, 1
      %p208 = por %p206, %p207
      %p209 = scmp.ne.s32.totalorder %s200, %s201
      %p210 = scmp.eq.s32.totalorder %s38, 0
      %p211 = por %p209, %p210
      %p212 = scmp.ne.s32.totalorder %s200, %s201
      %p213 = scmp.eq.s32.totalorder %s39, 1
      %p214 = por %p212, %p213
      %p216 = scmp.ne.s32.totalorder %s201, %s215
      %p217 = scmp.eq.s32.totalorder %s39, 0
      %p218 = por %p216, %p217
      %s220 = sadd.s32 %s219, 1
      %p223 = scmp.eq.s32.totalorder %s33, 1
      %p224 = scmp.ne.s32.totalorder %s219, %s221
      %p225 = scmp.eq.s32.totalorder %s33, 0
      %p226 = por %p224, %p225
      %p227 = scmp.ne.s32.totalorder %s219, %s221
      %p228 = scmp.eq.s32.totalorder %s38, 1
      %p229 = por %p227, %p228
      %p230 = scmp.ne.s32.totalorder %s221, %s222
      %p231 = scmp.eq.s32.totalorder %s38, 0
      %p232 = por %p230, %p231
      %p233 = scmp.ne.s32.totalorder %s221, %s222
      %p234 = scmp.eq.s32.totalorder %s39, 1
      %p235 = por %p233, %p234
      %p237 = scmp.ne.s32.totalorder %s222, %s236
      %p238 = scmp.eq.s32.totalorder %s39, 0
      %p239 = por %p237, %p238
      %s241 = sadd.s32 %s240, 1
      %p244 = scmp.eq.s32.totalorder %s33, 1
      %p245 = scmp.ne.s32.totalorder %s240, %s242
      %p246 = scmp.eq.s32.totalorder %s33, 0
      %p247 = por %p245, %p246
      %p248 = scmp.ne.s32.totalorder %s240, %s242
      %p249 = scmp.eq.s32.totalorder %s38, 1
      %p250 = por %p248, %p249
      %p251 = scmp.ne.s32.totalorder %s242, %s243
      %p252 = scmp.eq.s32.totalorder %s38, 0
      %p253 = por %p251, %p252
      %p254 = scmp.ne.s32.totalorder %s242, %s243
      %p255 = scmp.eq.s32.totalorder %s39, 1
      %p256 = por %p254, %p255
      %p258 = scmp.ne.s32.totalorder %s243, %s257
      %p259 = scmp.eq.s32.totalorder %s39, 0
      %p260 = por %p258, %p259
      %s262 = sadd.s32 %s261, 1
      %p265 = scmp.eq.s32.totalorder %s33, 1
      %p266 = scmp.ne.s32.totalorder %s261, %s263
      %p267 = scmp.eq.s32.totalorder %s33, 0
      %p268 = por %p266, %p267
      %p269 = scmp.ne.s32.totalorder %s261, %s263
      %p270 = scmp.eq.s32.totalorder %s38, 1
      %p271 = por %p269, %p270
      %p272 = scmp.ne.s32.totalorder %s263, %s264
      %p273 = scmp.eq.s32.totalorder %s38, 0
      %p274 = por %p272, %p273
      %p275 = scmp.ne.s32.totalorder %s263, %s264
      %p276 = scmp.eq.s32.totalorder %s39, 1
      %p277 = por %p275, %p276
      %p279 = scmp.ne.s32.totalorder %s264, %s278
      %p280 = scmp.eq.s32.totalorder %s39, 0
      %p281 = por %p279, %p280
      %s283 = sadd.s32 %s282, 1
      %p286 = scmp.eq.s32.totalorder %s33, 1
      %p287 = scmp.ne.s32.totalorder %s282, %s284
      %p288 = scmp.eq.s32.totalorder %s33, 0
      %p289 = por %p287, %p288
      %p290 = scmp.ne.s32.totalorder %s282, %s284
      %p291 = scmp.eq.s32.totalorder %s38, 1
      %p292 = por %p290, %p291
      %p293 = scmp.ne.s32.totalorder %s284, %s285
      %p294 = scmp.eq.s32.totalorder %s38, 0
      %p295 = por %p293, %p294
      %p296 = scmp.ne.s32.totalorder %s284, %s285
      %p297 = scmp.eq.s32.totalorder %s39, 1
      %p298 = por %p296, %p297
      %p300 = scmp.ne.s32.totalorder %s285, %s299
      %p301 = scmp.eq.s32.totalorder %s39, 0
      %p302 = por %p300, %p301
      %s304 = sadd.s32 %s303, 1
      %p307 = scmp.eq.s32.totalorder %s33, 1
      %p308 = scmp.ne.s32.totalorder %s303, %s305
      %p309 = scmp.eq.s32.totalorder %s33, 0
      %p310 = por %p308, %p309
      %p311 = scmp.ne.s32.totalorder %s303, %s305
      %p312 = scmp.eq.s32.totalorder %s38, 1
      %p313 = por %p311, %p312
      %p314 = scmp.ne.s32.totalorder %s305, %s306
      %p315 = scmp.eq.s32.totalorder %s38, 0
      %p316 = por %p314, %p315
      %p317 = scmp.ne.s32.totalorder %s305, %s306
      %p318 = scmp.eq.s32.totalorder %s39, 1
      %p319 = por %p317, %p318
      %p321 = scmp.ne.s32.totalorder %s306, %s320
      %p322 = scmp.eq.s32.totalorder %s39, 0
      %p323 = por %p321, %p322
      %s325 = sadd.s32 %s324, 1
      %p328 = scmp.eq.s32.totalorder %s33, 1
      %p329 = scmp.ne.s32.totalorder %s324, %s326
      %p330 = scmp.eq.s32.totalorder %s33, 0
      %p331 = por %p329, %p330
      %p332 = scmp.ne.s32.totalorder %s324, %s326
      %p333 = scmp.eq.s32.totalorder %s38, 1
      %p334 = por %p332, %p333
      %p335 = scmp.ne.s32.totalorder %s326, %s327
      %p336 = scmp.eq.s32.totalorder %s38, 0
      %p337 = por %p335, %p336
      %p338 = scmp.ne.s32.totalorder %s326, %s327
      %p339 = scmp.eq.s32.totalorder %s39, 1
      %p340 = por %p338, %p339
      %p342 = scmp.ne.s32.totalorder %s327, %s341
      %p343 = scmp.eq.s32.totalorder %s39, 0
      %p344 = por %p342, %p343
      %s346 = sadd.s32 %s345, 1
      %p349 = scmp.eq.s32.totalorder %s33, 1
      %p350 = scmp.ne.s32.totalorder %s345, %s347
      %p351 = scmp.eq.s32.totalorder %s33, 0
      %p352 = por %p350, %p351
      %p353 = scmp.ne.s32.totalorder %s345, %s347
      %p354 = scmp.eq.s32.totalorder %s38, 1
      %p355 = por %p353, %p354
      %p356 = scmp.ne.s32.totalorder %s347, %s348
      %p357 = scmp.eq.s32.totalorder %s38, 0
      %p358 = por %p356, %p357
      %p359 = scmp.ne.s32.totalorder %s347, %s348
      %p360 = scmp.eq.s32.totalorder %s39, 1
      %p361 = por %p359, %p360
      %p363 = scmp.ne.s32.totalorder %s348, %s362
      %p364 = scmp.eq.s32.totalorder %s39, 0
      %p365 = por %p363, %p364
      %s367 = sadd.s32 %s366, 1
      %p370 = scmp.eq.s32.totalorder %s33, 1
      %p371 = scmp.ne.s32.totalorder %s366, %s368
      %p372 = scmp.eq.s32.totalorder %s33, 0
      %p373 = por %p371, %p372
      %p374 = scmp.ne.s32.totalorder %s366, %s368
      %p375 = scmp.eq.s32.totalorder %s38, 1
      %p376 = por %p374, %p375
      %p377 = scmp.ne.s32.totalorder %s368, %s369
      %p378 = scmp.eq.s32.totalorder %s38, 0
      %p379 = por %p377, %p378
      %p380 = scmp.ne.s32.totalorder %s368, %s369
      %p381 = scmp.eq.s32.totalorder %s39, 1
      %p382 = por %p380, %p381
      %p384 = scmp.ne.s32.totalorder %s369, %s383
      %p385 = scmp.eq.s32.totalorder %s39, 0
      %p386 = por %p384, %p385
      %s388 = sadd.s32 %s387, 1
      %p391 = scmp.eq.s32.totalorder %s33, 1
      %p392 = scmp.ne.s32.totalorder %s387, %s389
      %p393 = scmp.eq.s32.totalorder %s33, 0
      %p394 = por %p392, %p393
      %p395 = scmp.ne.s32.totalorder %s387, %s389
      %p396 = scmp.eq.s32.totalorder %s38, 1
      %p397 = por %p395, %p396
      %p398 = scmp.ne.s32.totalorder %s389, %s390
      %p399 = scmp.eq.s32.totalorder %s38, 0
      %p400 = por %p398, %p399
      %p401 = scmp.ne.s32.totalorder %s389, %s390
      %p402 = scmp.eq.s32.totalorder %s39, 1
      %p403 = por %p401, %p402
      %p405 = scmp.ne.s32.totalorder %s390, %s404
      %p406 = scmp.eq.s32.totalorder %s39, 0
      %p407 = por %p405, %p406
      %s408 = ssub.s32 %s33, %s40
      %p409 = scmp.eq.s32.totalorder %s408, 0
      %s411 = sadd.s32 %s410, 1
      %s412 = scalar_select %p409, %s410, %s411
      %p415 = pneg %p409
      %p416 = scmp.eq.s32.totalorder %s33, 1
      %p417 = por %p415, %p416
      %p418 = scmp.ne.s32.totalorder %s410, %s413
      %p419 = scmp.eq.s32.totalorder %s33, 0
      %p420 = por %p418, %p419
      %p421 = scmp.ne.s32.totalorder %s410, %s413
      %p422 = scmp.eq.s32.totalorder %s38, 1
      %p423 = por %p421, %p422
      %p424 = scmp.ne.s32.totalorder %s413, %s414
      %p425 = scmp.eq.s32.totalorder %s38, 0
      %p426 = por %p424, %p425
      %p427 = scmp.ne.s32.totalorder %s413, %s414
      %p428 = scmp.eq.s32.totalorder %s39, 1
      %p429 = por %p427, %p428
      %p431 = scmp.ne.s32.totalorder %s414, %s430
      %p432 = scmp.eq.s32.totalorder %s39, 0
      %p433 = por %p431, %p432
      %p434 = scmp.le.s32.totalorder 1, %s33
      %p435 = scmp.lt.s32.totalorder %s33, 3
      %p436 = pnand %p434, %p435
      %p437 = pneg %p436
      // Predicated region
      $region9: #{tpu_custom_call.1} parent=5 // pred_check
        _
      $region10: #{tpu_custom_call.1} parent=5 // pred_check_branch
        %439 = sbr.rel (%p436) target = $region12
      $region11: #{tpu_custom_call.1} parent=5 // pred_region
        %s440 = ssub.s32 %s33, 1
        // Predicated region
        $region13: #{tpu_custom_call.1} parent=11 // pred_check
          %p441 = pneg %p106
        $region14: #{tpu_custom_call.1} parent=11 // pred_check_branch
          %443 = sbr.rel (%p441) target = $region16
        $region15: #{tpu_custom_call.1} parent=11 // pred_region
          _
        $region16: #{tpu_custom_call.1} parent=11 // pred_fallthru
          _
        // Predicated region
        $region17: #{tpu_custom_call.1} parent=11 // pred_check
          %p444 = pneg %p127
        $region18: #{tpu_custom_call.1} parent=11 // pred_check_branch
          %446 = sbr.rel (%p444) target = $region20
        $region19: #{tpu_custom_call.1} parent=11 // pred_region
          _
        $region20: #{tpu_custom_call.1} parent=11 // pred_fallthru
          _
        // Predicated region
        $region21: #{tpu_custom_call.1} parent=11 // pred_check
          %p447 = pneg %p148
        $region22: #{tpu_custom_call.1} parent=11 // pred_check_branch
          %449 = sbr.rel (%p447) target = $region24
        $region23: #{tpu_custom_call.1} parent=11 // pred_region
          _
        $region24: #{tpu_custom_call.1} parent=11 // pred_fallthru
          _
        // Predicated region
        $region25: #{tpu_custom_call.1} parent=11 // pred_check
          %p450 = pneg %p169
        $region26: #{tpu_custom_call.1} parent=11 // pred_check_branch
          %452 = sbr.rel (%p450) target = $region28
        $region27: #{tpu_custom_call.1} parent=11 // pred_region
          _
        $region28: #{tpu_custom_call.1} parent=11 // pred_fallthru
          _
        // Predicated region
        $region29: #{tpu_custom_call.1} parent=11 // pred_check
          %p453 = pneg %p190
        $region30: #{tpu_custom_call.1} parent=11 // pred_check_branch
          %455 = sbr.rel (%p453) target = $region32
        $region31: #{tpu_custom_call.1} parent=11 // pred_region
          _
        $region32: #{tpu_custom_call.1} parent=11 // pred_fallthru
          _
        // Predicated region
        $region33: #{tpu_custom_call.1} parent=11 // pred_check
          %p456 = pneg %p211
        $region34: #{tpu_custom_call.1} parent=11 // pred_check_branch
          %458 = sbr.rel (%p456) target = $region36
        $region35: #{tpu_custom_call.1} parent=11 // pred_region
          _
        $region36: #{tpu_custom_call.1} parent=11 // pred_fallthru
          _
        // Predicated region
        $region37: #{tpu_custom_call.1} parent=11 // pred_check
          %p459 = pneg %p232
        $region38: #{tpu_custom_call.1} parent=11 // pred_check_branch
          %461 = sbr.rel (%p459) target = $region40
        $region39: #{tpu_custom_call.1} parent=11 // pred_region
          _
        $region40: #{tpu_custom_call.1} parent=11 // pred_fallthru
          _
        // Predicated region
        $region41: #{tpu_custom_call.1} parent=11 // pred_check
          %p462 = pneg %p253
        $region42: #{tpu_custom_call.1} parent=11 // pred_check_branch
          %464 = sbr.rel (%p462) target = $region44
        $region43: #{tpu_custom_call.1} parent=11 // pred_region
          _
        $region44: #{tpu_custom_call.1} parent=11 // pred_fallthru
          _
        // Predicated region
        $region45: #{tpu_custom_call.1} parent=11 // pred_check
          %p465 = pneg %p274
        $region46: #{tpu_custom_call.1} parent=11 // pred_check_branch
          %467 = sbr.rel (%p465) target = $region48
        $region47: #{tpu_custom_call.1} parent=11 // pred_region
          _
        $region48: #{tpu_custom_call.1} parent=11 // pred_fallthru
          _
        // Predicated region
        $region49: #{tpu_custom_call.1} parent=11 // pred_check
          %p468 = pneg %p295
        $region50: #{tpu_custom_call.1} parent=11 // pred_check_branch
          %470 = sbr.rel (%p468) target = $region52
        $region51: #{tpu_custom_call.1} parent=11 // pred_region
          _
        $region52: #{tpu_custom_call.1} parent=11 // pred_fallthru
          _
        // Predicated region
        $region53: #{tpu_custom_call.1} parent=11 // pred_check
          %p471 = pneg %p316
        $region54: #{tpu_custom_call.1} parent=11 // pred_check_branch
          %473 = sbr.rel (%p471) target = $region56
        $region55: #{tpu_custom_call.1} parent=11 // pred_region
          _
        $region56: #{tpu_custom_call.1} parent=11 // pred_fallthru
          _
        // Predicated region
        $region57: #{tpu_custom_call.1} parent=11 // pred_check
          %p474 = pneg %p337
        $region58: #{tpu_custom_call.1} parent=11 // pred_check_branch
          %476 = sbr.rel (%p474) target = $region60
        $region59: #{tpu_custom_call.1} parent=11 // pred_region
          _
        $region60: #{tpu_custom_call.1} parent=11 // pred_fallthru
          _
        // Predicated region
        $region61: #{tpu_custom_call.1} parent=11 // pred_check
          %p477 = pneg %p358
        $region62: #{tpu_custom_call.1} parent=11 // pred_check_branch
          %479 = sbr.rel (%p477) target = $region64
        $region63: #{tpu_custom_call.1} parent=11 // pred_region
          _
        $region64: #{tpu_custom_call.1} parent=11 // pred_fallthru
          _
        // Predicated region
        $region65: #{tpu_custom_call.1} parent=11 // pred_check
          %p480 = pneg %p379
        $region66: #{tpu_custom_call.1} parent=11 // pred_check_branch
          %482 = sbr.rel (%p480) target = $region68
        $region67: #{tpu_custom_call.1} parent=11 // pred_region
          _
        $region68: #{tpu_custom_call.1} parent=11 // pred_fallthru
          _
        // Predicated region
        $region69: #{tpu_custom_call.1} parent=11 // pred_check
          %p483 = pneg %p400
        $region70: #{tpu_custom_call.1} parent=11 // pred_check_branch
          %485 = sbr.rel (%p483) target = $region72
        $region71: #{tpu_custom_call.1} parent=11 // pred_region
          _
        $region72: #{tpu_custom_call.1} parent=11 // pred_fallthru
          _
      $region12: #{tpu_custom_call.1} parent=5 // pred_fallthru
        _
      %p486 = scmp.lt.s32.totalorder %s33, 2
      // Predicated region
      $region73: #{tpu_custom_call.1} parent=5 // pred_check
        %p487 = pneg %p486
      $region74: #{tpu_custom_call.1} parent=5 // pred_check_branch
        %489 = sbr.rel (%p487) target = $region76
      $region75: #{tpu_custom_call.1} parent=5 // pred_region
        // Predicated region
        $region77: #{tpu_custom_call.1} parent=75 // pred_check
          %p490 = pneg %p53
        $region78: #{tpu_custom_call.1} parent=75 // pred_check_branch
          %492 = sbr.rel (%p490) target = $region80
        $region79: #{tpu_custom_call.1} parent=75 // pred_region
          %p493 = scmp.lt.s32.totalorder %s33, 1
          %s494 = scalar_select %p493, %s33, 1
          %s495 = smul.addr %s494, 2
          %s496 = smul.addr %s495, 8
          %s497 = scalar_lea.vmem %s1, %s496
        $region80: #{tpu_custom_call.1} parent=75 // pred_fallthru
          _
        // Predicated region
        $region81: #{tpu_custom_call.1} parent=75 // pred_check
          %p498 = pneg %p79
        $region82: #{tpu_custom_call.1} parent=75 // pred_check_branch
          %500 = sbr.rel (%p498) target = $region84
        $region83: #{tpu_custom_call.1} parent=75 // pred_region
          %p501 = scmp.lt.s32.totalorder %s33, 1
          %s502 = scalar_select %p501, %s33, 1
          %s503 = scalar_lea.vmem %s2, %s502
        $region84: #{tpu_custom_call.1} parent=75 // pred_fallthru
          _
      $region76: #{tpu_custom_call.1} parent=5 // pred_fallthru
        _
      %p504 = scmp.le.s32.totalorder 1, %s33
      %p505 = scmp.lt.s32.totalorder %s33, 3
      %p506 = pnand %p504, %p505
      %p507 = pneg %p506
      // Predicated region
      $region85: #{tpu_custom_call.1} parent=5 // pred_check
        _
      $region86: #{tpu_custom_call.1} parent=5 // pred_check_branch
        %509 = sbr.rel (%p506) target = $region88
      $region87: #{tpu_custom_call.1} parent=5 // pred_region
        %s510 = ssub.s32 %s33, 1
        %p511 = scmp.lt.s32.totalorder %s38, 1
        %s512 = scalar_select %p511, %s38, 1
        %s513 = smul.addr %s512, 2
        %s514 = smul.addr %s513, 8
        %s515 = scalar_lea.vmem %s1, %s514
        %p516 = pneg %p59
        %p517 = pneg %p56
        %p518 = scmp.lt.s32.totalorder %s38, 1
        %s519 = scalar_select %p518, %s38, 1
        %s520 = scalar_lea.vmem %s2, %s519
        %p521 = pneg %p85
        %p522 = pneg %p82
        %p523 = pneg %p106
        %p524 = pneg %p103
        %p525 = pneg %p127
        %p526 = pneg %p124
        %p527 = pneg %p148
        %p528 = pneg %p145
        %p529 = pneg %p169
        %p530 = pneg %p166
        %p531 = pneg %p190
        %p532 = pneg %p187
        %p533 = pneg %p211
        %p534 = pneg %p208
        %p535 = pneg %p232
        %p536 = pneg %p229
        %p537 = pneg %p253
        %p538 = pneg %p250
        %p539 = pneg %p274
        %p540 = pneg %p271
        %p541 = pneg %p295
        %p542 = pneg %p292
        %p543 = pneg %p316
        %p544 = pneg %p313
        %p545 = pneg %p337
        %p546 = pneg %p334
        %p547 = pneg %p358
        %p548 = pneg %p355
        %p549 = pneg %p379
        %p550 = pneg %p376
        %p551 = pneg %p400
        %p552 = pneg %p397
        %p553 = pneg %p426
        %p554 = pneg %p423
        %s555 = sand.u32 %s413, 1
        %s556 = scalar_lea.sflag [#allocation5], %s555
        %s557 = sand.u32 %s413, 1
        %s558 = scalar_lea.vmem [#allocation4], %s557
        %p559 = scmp.lt.s32.totalorder %s38, 1
        %s560 = scalar_select %p559, %s38, 1
        %s561 = smul.addr %s560, 2
        %s562 = smul.addr %s561, 8
        %s563 = scalar_lea.vmem %s1, %s562
        %p564 = scmp.lt.s32.totalorder %s38, 1
        %s565 = scalar_select %p564, %s38, 1
        %s566 = scalar_lea.vmem %s2, %s565
        %v567 = vld [vmem:[%s563] sm:$0xff]
        %v568 = vld [vmem:[%s563 + $0x8] sm:$0xff]
        %v569 = vld [vmem:[%s3] sm:$0xff]
        %v570 = vld [vmem:[%s3 + $0x8] sm:$0x1]
        %v571 = vld [vmem:[%s4] sm:$0x1]
        %v573 = vlaneseq
        %v574 = vshrl.u32 %v573, 7
        %v575 = vsub.s32 0, %v574
        %v576 = vrot.slane %v571, %v575
        %vm578 = vcmask 72704
        %v580 = vsel %vm578, %v567, 0
        %v583 = vsel %vm578, %v568, 0
        %vm585 = vcmask 1040384
        %v587 = vsel %vm585, %v570, 0
        %589 = vmatprep.subr.mxu0 0.0
        %590 = vmatpush1.msra.mxu0 %v569
        %591 = vmatprep.subr.mxu0 0.0
        %592 = vmatpush1.msra.mxu0 %v587
        %593 = vmatprep.subr.mxu0 0.0
        %594 = vmatpush1.msra.mxu0 0.0
        %595 = vmatprep.subr.mxu0 0.0
        %596 = vmatpush1.msra.mxu0 0.0
        %597 = vmatprep.subr.mxu0 0.0
        %598 = vmatpush1.msra.mxu0 0.0
        %599 = vmatprep.subr.mxu0 0.0
        %600 = vmatpush1.msra.mxu0 0.0
        %601 = vmatprep.subr.mxu0 0.0
        %602 = vmatpush1.msra.mxu0 0.0
        %603 = vmatprep.subr.mxu0 0.0
        %604 = vmatpush1.msra.mxu0 0.0
        %605 = vmatprep.subr.mxu0 0.0
        %606 = vmatpush1.msra.mxu0 0.0
        %607 = vmatprep.subr.mxu0 0.0
        %608 = vmatpush1.msra.mxu0 0.0
        %609 = vmatprep.subr.mxu0 0.0
        %610 = vmatpush1.msra.mxu0 0.0
        %611 = vmatprep.subr.mxu0 0.0
        %612 = vmatpush1.msra.mxu0 0.0
        %613 = vmatprep.subr.mxu0 0.0
        %614 = vmatpush1.msra.mxu0 0.0
        %615 = vmatprep.subr.mxu0 0.0
        %616 = vmatpush1.msra.mxu0 0.0
        %617 = vmatprep.subr.mxu0 0.0
        %618 = vmatpush1.msra.mxu0 0.0
        %619 = vmatprep.subr.mxu0 0.0
        %620 = vmatpush1.msra.mxu0 0.0
        %621 = vmatprep.subr.mxu0 0.0
        %622 = vmatpush1.msra.mxu0 0.0
        %623 = vmatprep.subr.mxu0 0.0
        %624 = vmatpush1.msra.mxu0 0.0
        %625 = vmatprep.subr.mxu0 0.0
        %626 = vmatpush1.msra.mxu0 0.0
        %627 = vmatprep.subr.mxu0 0.0
        %628 = vmatpush1.msra.mxu0 0.0
        %629 = vmatprep.subr.mxu0 0.0
        %630 = vmatpush1.msra.mxu0 0.0
        %631 = vmatprep.subr.mxu0 0.0
        %632 = vmatpush1.msra.mxu0 0.0
        %633 = vmatprep.subr.mxu0 0.0
        %634 = vmatpush1.msra.mxu0 0.0
        %635 = vmatprep.subr.mxu0 0.0
        %636 = vmatpush1.msra.mxu0 0.0
        %637 = vmatprep.subr.mxu0 0.0
        %638 = vmatpush1.msra.mxu0 0.0
        %639 = vmatprep.subr.mxu0 0.0
        %640 = vmatpush1.msra.mxu0 0.0
        %641 = vmatprep.subr.mxu0 0.0
        %642 = vmatpush1.msra.mxu0 0.0
        %643 = vmatprep.subr.mxu0 0.0
        %644 = vmatpush1.msra.mxu0 0.0
        %645 = vmatprep.subr.mxu0 0.0
        %646 = vmatpush1.msra.mxu0 0.0
        %647 = vmatprep.subr.mxu0 0.0
        %648 = vmatpush1.msra.mxu0 0.0
        %649 = vmatprep.subr.mxu0 0.0
        %650 = vmatpush1.msra.mxu0 0.0
        %651 = vmatprep.subr.mxu0 0.0
        %652 = vmatpush1.msra.mxu0 0.0
        %653 = vmatprep.mubr.f32.mxu0 0.0
        %654 = vmatmul.mubr.f32.gmra.mrb[0].mxu0 %v580
        %v655 = vpop.f32.mrb[0].mxu0
        %v656 = vadd.f32 %v576, %v655
        %v657 = vpop.f32.mrb[0].mxu0
        %658 = vmatprep.mubr.f32.mxu0 0.0
        %659 = vmatmul.mubr.f32.gmra.mrb[0].mxu0 %v583
        %v660 = vpop.f32.mrb[0].mxu0
        %v661 = vadd.f32 %v576, %v660
        %v662 = vpop.f32.mrb[0].mxu0
        %663 = vdwg.mxu0
        %s664 = sld [smem:[#allocation3 + %s38]]
        %v665 = vlaneseq
        %v666 = vand.u32 %v665, 127
        %v667 = vlaneseq
        %v668 = vshrl.u32 %v667, 7
        %v669 = vadd.s32 %v668, 8
        %v670 = vstv %s664
        %vm671 = vcmp.lt.s32.totalorder %v666, %v670
        %v672 = vsel %vm671, 0.0, -1e+09
        %vm673 = vcmp.lt.s32.totalorder %v668, %v670
        %vm674 = vcmp.lt.s32.totalorder %v669, %v670
        %v675 = vsel %vm673, 1, 0
        %v676 = vsel %vm674, 1, 0
        %v677 = vcvt.s32.f32 %v675
        %v678 = vcvt.s32.f32 %v676
        %v679 = vld [vmem:[%s11] sm:$0x3f]
        %v680 = vld [vmem:[%s5] sm:$0xff]
        %v681 = vld [vmem:[%s5 + $0x8] sm:$0xff]
        %v682 = vld [vmem:[%s6] sm:$0x1]
        %v684 = vlaneseq
        %v685 = vshrl.u32 %v684, 7
        %v686 = vsub.s32 0, %v685
        %v687 = vrot.slane %v682, %v686
        %vm689 = vcmask 130048
        %v691 = vsel %vm689, %v656, 0
        %v694 = vsel %vm689, %v661, 0
        %696 = vmatprep.subr.mxu0 0.0
        %697 = vmatpush1.msra.mxu0 %v680
        %698 = vmatprep.subr.mxu0 0.0
        %699 = vmatpush1.msra.mxu0 %v681
        %700 = vmatprep.subr.mxu0 0.0
        %701 = vmatpush1.msra.mxu0 0.0
        %702 = vmatprep.subr.mxu0 0.0
        %703 = vmatpush1.msra.mxu0 0.0
        %704 = vmatprep.subr.mxu0 0.0
        %705 = vmatpush1.msra.mxu0 0.0
        %706 = vmatprep.subr.mxu0 0.0
        %707 = vmatpush1.msra.mxu0 0.0
        %708 = vmatprep.subr.mxu0 0.0
        %709 = vmatpush1.msra.mxu0 0.0
        %710 = vmatprep.subr.mxu0 0.0
        %711 = vmatpush1.msra.mxu0 0.0
        %712 = vmatprep.subr.mxu0 0.0
        %713 = vmatpush1.msra.mxu0 0.0
        %714 = vmatprep.subr.mxu0 0.0
        %715 = vmatpush1.msra.mxu0 0.0
        %716 = vmatprep.subr.mxu0 0.0
        %717 = vmatpush1.msra.mxu0 0.0
        %718 = vmatprep.subr.mxu0 0.0
        %719 = vmatpush1.msra.mxu0 0.0
        %720 = vmatprep.subr.mxu0 0.0
        %721 = vmatpush1.msra.mxu0 0.0
        %722 = vmatprep.subr.mxu0 0.0
        %723 = vmatpush1.msra.mxu0 0.0
        %724 = vmatprep.subr.mxu0 0.0
        %725 = vmatpush1.msra.mxu0 0.0
        %726 = vmatprep.subr.mxu0 0.0
        %727 = vmatpush1.msra.mxu0 0.0
        %728 = vmatprep.subr.mxu0 0.0
        %729 = vmatpush1.msra.mxu0 0.0
        %730 = vmatprep.subr.mxu0 0.0
        %731 = vmatpush1.msra.mxu0 0.0
        %732 = vmatprep.subr.mxu0 0.0
        %733 = vmatpush1.msra.mxu0 0.0
        %734 = vmatprep.subr.mxu0 0.0
        %735 = vmatpush1.msra.mxu0 0.0
        %736 = vmatprep.subr.mxu0 0.0
        %737 = vmatpush1.msra.mxu0 0.0
        %738 = vmatprep.subr.mxu0 0.0
        %739 = vmatpush1.msra.mxu0 0.0
        %740 = vmatprep.subr.mxu0 0.0
        %741 = vmatpush1.msra.mxu0 0.0
        %742 = vmatprep.subr.mxu0 0.0
        %743 = vmatpush1.msra.mxu0 0.0
        %744 = vmatprep.subr.mxu0 0.0
        %745 = vmatpush1.msra.mxu0 0.0
        %746 = vmatprep.subr.mxu0 0.0
        %747 = vmatpush1.msra.mxu0 0.0
        %748 = vmatprep.subr.mxu0 0.0
        %749 = vmatpush1.msra.mxu0 0.0
        %750 = vmatprep.subr.mxu0 0.0
        %751 = vmatpush1.msra.mxu0 0.0
        %752 = vmatprep.subr.mxu0 0.0
        %753 = vmatpush1.msra.mxu0 0.0
        %754 = vmatprep.subr.mxu0 0.0
        %755 = vmatpush1.msra.mxu0 0.0
        %756 = vmatprep.subr.mxu0 0.0
        %757 = vmatpush1.msra.mxu0 0.0
        %758 = vmatprep.subr.mxu0 0.0
        %759 = vmatpush1.msra.mxu0 0.0
        %760 = vmatprep.mubr.f32.mxu0 0.0
        %761 = vmatmul.mubr.f32.gmra.mrb[0].mxu0 %v691
        %v762 = vpop.f32.mrb[0].mxu0
        %v763 = vadd.f32 %v687, %v762
        %v764 = vpop.f32.mrb[0].mxu0
        %765 = vmatprep.mubr.f32.mxu0 0.0
        %766 = vmatmul.mubr.f32.gmra.mrb[0].mxu0 %v694
        %v767 = vpop.f32.mrb[0].mxu0
        %v768 = vadd.f32 %v687, %v767
        %v769 = vpop.f32.mrb[0].mxu0
        %770 = vdwg.mxu0
        %v771 = vmul.f32 %v763, 0.5
        %v772 = vmul.f32 %v768, 0.5
        %v773 = vld [vmem:[%s7] sm:$0xff]
        %v774 = vld [vmem:[%s7 + $0x8] sm:$0xff]
        %777 = vrot.lane.b32.xlu0 %v763, 112
        %v778 = vpop.permute.xlu0 %777
        %779 = vrot.lane.b32.xlu0 %v768, 112
        %v780 = vpop.permute.xlu0 %779
        %vm781 = vcmask 31744
        %v783 = vsel %vm781, %v771, 0
        %v786 = vsel %vm781, %v772, 0
        %v788 = vsel %vm781, %v778, 0
        %v790 = vsel %vm781, %v780, 0
        %792 = vmatprep.subr.mxu0 0.0
        %793 = vmatpush1.xpose.msra.mxu0 %v788
        %794 = vmatprep.subr.mxu0 0.0
        %795 = vmatpush1.xpose.msra.mxu0 %v790
        %796 = vmatprep.subr.mxu0 0.0
        %797 = vmatpush1.xpose.msra.mxu0 0.0
        %798 = vmatprep.subr.mxu0 0.0
        %799 = vmatpush1.xpose.msra.mxu0 0.0
        %800 = vmatprep.subr.mxu0 0.0
        %801 = vmatpush1.xpose.msra.mxu0 0.0
        %802 = vmatprep.subr.mxu0 0.0
        %803 = vmatpush1.xpose.msra.mxu0 0.0
        %804 = vmatprep.subr.mxu0 0.0
        %805 = vmatpush1.xpose.msra.mxu0 0.0
        %806 = vmatprep.subr.mxu0 0.0
        %807 = vmatpush1.xpose.msra.mxu0 0.0
        %808 = vmatprep.subr.mxu0 0.0
        %809 = vmatpush1.xpose.msra.mxu0 0.0
        %810 = vmatprep.subr.mxu0 0.0
        %811 = vmatpush1.xpose.msra.mxu0 0.0
        %812 = vmatprep.subr.mxu0 0.0
        %813 = vmatpush1.xpose.msra.mxu0 0.0
        %814 = vmatprep.subr.mxu0 0.0
        %815 = vmatpush1.xpose.msra.mxu0 0.0
        %816 = vmatprep.subr.mxu0 0.0
        %817 = vmatpush1.xpose.msra.mxu0 0.0
        %818 = vmatprep.subr.mxu0 0.0
        %819 = vmatpush1.xpose.msra.mxu0 0.0
        %820 = vmatprep.subr.mxu0 0.0
        %821 = vmatpush1.xpose.msra.mxu0 0.0
        %822 = vmatprep.subr.mxu0 0.0
        %823 = vmatpush1.xpose.msra.mxu0 0.0
        %824 = vmatprep.subr.mxu0 0.0
        %825 = vmatpush1.xpose.msra.mxu0 0.0
        %826 = vmatprep.subr.mxu0 0.0
        %827 = vmatpush1.xpose.msra.mxu0 0.0
        %828 = vmatprep.subr.mxu0 0.0
        %829 = vmatpush1.xpose.msra.mxu0 0.0
        %830 = vmatprep.subr.mxu0 0.0
        %831 = vmatpush1.xpose.msra.mxu0 0.0
        %832 = vmatprep.subr.mxu0 0.0
        %833 = vmatpush1.xpose.msra.mxu0 0.0
        %834 = vmatprep.subr.mxu0 0.0
        %835 = vmatpush1.xpose.msra.mxu0 0.0
        %836 = vmatprep.subr.mxu0 0.0
        %837 = vmatpush1.xpose.msra.mxu0 0.0
        %838 = vmatprep.subr.mxu0 0.0
        %839 = vmatpush1.xpose.msra.mxu0 0.0
        %840 = vmatprep.subr.mxu0 0.0
        %841 = vmatpush1.xpose.msra.mxu0 0.0
        %842 = vmatprep.subr.mxu0 0.0
        %843 = vmatpush1.xpose.msra.mxu0 0.0
        %844 = vmatprep.subr.mxu0 0.0
        %845 = vmatpush1.xpose.msra.mxu0 0.0
        %846 = vmatprep.subr.mxu0 0.0
        %847 = vmatpush1.xpose.msra.mxu0 0.0
        %848 = vmatprep.subr.mxu0 0.0
        %849 = vmatpush1.xpose.msra.mxu0 0.0
        %850 = vmatprep.subr.mxu0 0.0
        %851 = vmatpush1.xpose.msra.mxu0 0.0
        %852 = vmatprep.subr.mxu0 0.0
        %853 = vmatpush1.xpose.msra.mxu0 0.0
        %854 = vmatprep.subr.mxu0 0.0
        %855 = vmatpush1.xpose.msra.mxu0 0.0
        %856 = vmatprep.mubr.f32.mxu0 0.0
        %857 = vmatmul.mubr.f32.gmra.mrb[0].mxu0 %v783
        %v858 = vpop.f32.mrb[0].mxu0
        %v859 = vadd.f32 %v672, %v858
        %v860 = vpop.f32.mrb[0].mxu0
        %861 = vmatprep.mubr.f32.mxu0 0.0
        %862 = vmatmul.mubr.f32.gmra.mrb[0].mxu0 %v786
        %v863 = vpop.f32.mrb[0].mxu0
        %v864 = vadd.f32 %v672, %v863
        %v865 = vpop.f32.mrb[0].mxu0
        %866 = vdwg.mxu0
        %v867 = vsel %vm689, %v859, -inf
        %868 = vmax.xlane.f32.xlu0 %v867
        %v869 = vpop.xlane.xlu0 %868
        %v870 = vsel %vm689, %v864, -inf
        %871 = vmax.xlane.f32.xlu0 %v870
        %v872 = vpop.xlane.xlu0 %871
        %v873 = vsub.f32 %v859, %v869
        %v874 = vsub.f32 %v864, %v872
        %v875 = vmul.f32 %v873, 1.442695
        %v876 = vpow.pop %v875
        %v877 = vmul.f32 %v874, 1.442695
        %v878 = vpow.pop %v877
        %v879 = vsel %vm689, %v876, 0.0
        %880 = vadd.xlane.f32.xlu0 %v879
        %v881 = vpop.xlane.xlu0 %880
        %v882 = vsel %vm689, %v878, 0.0
        %883 = vadd.xlane.f32.xlu0 %v882
        %v884 = vpop.xlane.xlu0 %883
        %v885 = vrcp.pop %v881
        %v886 = vrcp.pop %v884
        %v887 = vmul.f32 %v876, %v885
        %v888 = vmul.f32 %v878, %v886
        %889 = vrot.lane.b32.xlu0 %v763, 96
        %v890 = vpop.permute.xlu0 %889
        %891 = vrot.lane.b32.xlu0 %v768, 96
        %v892 = vpop.permute.xlu0 %891
        %v896 = vsel %vm689, %v887, 0
        %v899 = vsel %vm689, %v888, 0
        %901 = vmatprep.subr.mxu0 0.0
        %902 = vmatpush1.msra.mxu0 %v890
        %903 = vmatprep.subr.mxu0 0.0
        %904 = vmatpush1.msra.mxu0 %v892
        %905 = vmatprep.subr.mxu0 0.0
        %906 = vmatpush1.msra.mxu0 0.0
        %907 = vmatprep.subr.mxu0 0.0
        %908 = vmatpush1.msra.mxu0 0.0
        %909 = vmatprep.subr.mxu0 0.0
        %910 = vmatpush1.msra.mxu0 0.0
        %911 = vmatprep.subr.mxu0 0.0
        %912 = vmatpush1.msra.mxu0 0.0
        %913 = vmatprep.subr.mxu0 0.0
        %914 = vmatpush1.msra.mxu0 0.0
        %915 = vmatprep.subr.mxu0 0.0
        %916 = vmatpush1.msra.mxu0 0.0
        %917 = vmatprep.subr.mxu0 0.0
        %918 = vmatpush1.msra.mxu0 0.0
        %919 = vmatprep.subr.mxu0 0.0
        %920 = vmatpush1.msra.mxu0 0.0
        %921 = vmatprep.subr.mxu0 0.0
        %922 = vmatpush1.msra.mxu0 0.0
        %923 = vmatprep.subr.mxu0 0.0
        %924 = vmatpush1.msra.mxu0 0.0
        %925 = vmatprep.subr.mxu0 0.0
        %926 = vmatpush1.msra.mxu0 0.0
        %927 = vmatprep.subr.mxu0 0.0
        %928 = vmatpush1.msra.mxu0 0.0
        %929 = vmatprep.subr.mxu0 0.0
        %930 = vmatpush1.msra.mxu0 0.0
        %931 = vmatprep.subr.mxu0 0.0
        %932 = vmatpush1.msra.mxu0 0.0
        %933 = vmatprep.subr.mxu0 0.0
        %934 = vmatpush1.msra.mxu0 0.0
        %935 = vmatprep.subr.mxu0 0.0
        %936 = vmatpush1.msra.mxu0 0.0
        %937 = vmatprep.subr.mxu0 0.0
        %938 = vmatpush1.msra.mxu0 0.0
        %939 = vmatprep.subr.mxu0 0.0
        %940 = vmatpush1.msra.mxu0 0.0
        %941 = vmatprep.subr.mxu0 0.0
        %942 = vmatpush1.msra.mxu0 0.0
        %943 = vmatprep.subr.mxu0 0.0
        %944 = vmatpush1.msra.mxu0 0.0
        %945 = vmatprep.subr.mxu0 0.0
        %946 = vmatpush1.msra.mxu0 0.0
        %947 = vmatprep.subr.mxu0 0.0
        %948 = vmatpush1.msra.mxu0 0.0
        %949 = vmatprep.subr.mxu0 0.0
        %950 = vmatpush1.msra.mxu0 0.0
        %951 = vmatprep.subr.mxu0 0.0
        %952 = vmatpush1.msra.mxu0 0.0
        %953 = vmatprep.subr.mxu0 0.0
        %954 = vmatpush1.msra.mxu0 0.0
        %955 = vmatprep.subr.mxu0 0.0
        %956 = vmatpush1.msra.mxu0 0.0
        %957 = vmatprep.subr.mxu0 0.0
        %958 = vmatpush1.msra.mxu0 0.0
        %959 = vmatprep.subr.mxu0 0.0
        %960 = vmatpush1.msra.mxu0 0.0
        %961 = vmatprep.subr.mxu0 0.0
        %962 = vmatpush1.msra.mxu0 0.0
        %963 = vmatprep.subr.mxu0 0.0
        %964 = vmatpush1.msra.mxu0 0.0
        %965 = vmatprep.mubr.f32.mxu0 0.0
        %966 = vmatmul.mubr.f32.gmra.mrb[0].mxu0 %v896
        %v967 = vpop.f32.mrb[0].mxu0
        %v968 = vadd.f32 0.0, %v967
        %v969 = vpop.f32.mrb[0].mxu0
        %970 = vmatprep.mubr.f32.mxu0 0.0
        %971 = vmatmul.mubr.f32.gmra.mrb[0].mxu0 %v899
        %v972 = vpop.f32.mrb[0].mxu0
        %v973 = vadd.f32 0.0, %v972
        %v974 = vpop.f32.mrb[0].mxu0
        %975 = vdwg.mxu0
        %976 = vrot.lane.b32.xlu0 %v771, 124
        %v977 = vpop.permute.xlu0 %976
        %978 = vrot.lane.b32.xlu0 %v772, 124
        %v979 = vpop.permute.xlu0 %978
        %980 = vrot.lane.b32.xlu0 %v763, 108
        %v981 = vpop.permute.xlu0 %980
        %982 = vrot.lane.b32.xlu0 %v768, 108
        %v983 = vpop.permute.xlu0 %982
        %v984 = vsel %vm781, %v977, 0
        %v986 = vsel %vm781, %v979, 0
        %v988 = vsel %vm781, %v981, 0
        %v990 = vsel %vm781, %v983, 0
        %992 = vmatprep.subr.mxu0 0.0
        %993 = vmatpush1.xpose.msra.mxu0 %v988
        %994 = vmatprep.subr.mxu0 0.0
        %995 = vmatpush1.xpose.msra.mxu0 %v990
        %996 = vmatprep.subr.mxu0 0.0
        %997 = vmatpush1.xpose.msra.mxu0 0.0
        %998 = vmatprep.subr.mxu0 0.0
        %999 = vmatpush1.xpose.msra.mxu0 0.0
        %1000 = vmatprep.subr.mxu0 0.0
        %1001 = vmatpush1.xpose.msra.mxu0 0.0
        %1002 = vmatprep.subr.mxu0 0.0
        %1003 = vmatpush1.xpose.msra.mxu0 0.0
        %1004 = vmatprep.subr.mxu0 0.0
        %1005 = vmatpush1.xpose.msra.mxu0 0.0
        %1006 = vmatprep.subr.mxu0 0.0
        %1007 = vmatpush1.xpose.msra.mxu0 0.0
        %1008 = vmatprep.subr.mxu0 0.0
        %1009 = vmatpush1.xpose.msra.mxu0 0.0
        %1010 = vmatprep.subr.mxu0 0.0
        %1011 = vmatpush1.xpose.msra.mxu0 0.0
        %1012 = vmatprep.subr.mxu0 0.0
        %1013 = vmatpush1.xpose.msra.mxu0 0.0
        %1014 = vmatprep.subr.mxu0 0.0
        %1015 = vmatpush1.xpose.msra.mxu0 0.0
        %1016 = vmatprep.subr.mxu0 0.0
        %1017 = vmatpush1.xpose.msra.mxu0 0.0
        %1018 = vmatprep.subr.mxu0 0.0
        %1019 = vmatpush1.xpose.msra.mxu0 0.0
        %1020 = vmatprep.subr.mxu0 0.0
        %1021 = vmatpush1.xpose.msra.mxu0 0.0
        %1022 = vmatprep.subr.mxu0 0.0
        %1023 = vmatpush1.xpose.msra.mxu0 0.0
        %1024 = vmatprep.subr.mxu0 0.0
        %1025 = vmatpush1.xpose.msra.mxu0 0.0
        %1026 = vmatprep.subr.mxu0 0.0
        %1027 = vmatpush1.xpose.msra.mxu0 0.0
        %1028 = vmatprep.subr.mxu0 0.0
        %1029 = vmatpush1.xpose.msra.mxu0 0.0
        %1030 = vmatprep.subr.mxu0 0.0
        %1031 = vmatpush1.xpose.msra.mxu0 0.0
        %1032 = vmatprep.subr.mxu0 0.0
        %1033 = vmatpush1.xpose.msra.mxu0 0.0
        %1034 = vmatprep.subr.mxu0 0.0
        %1035 = vmatpush1.xpose.msra.mxu0 0.0
        %1036 = vmatprep.subr.mxu0 0.0
        %1037 = vmatpush1.xpose.msra.mxu0 0.0
        %1038 = vmatprep.subr.mxu0 0.0
        %1039 = vmatpush1.xpose.msra.mxu0 0.0
        %1040 = vmatprep.subr.mxu0 0.0
        %1041 = vmatpush1.xpose.msra.mxu0 0.0
        %1042 = vmatprep.subr.mxu0 0.0
        %1043 = vmatpush1.xpose.msra.mxu0 0.0
        %1044 = vmatprep.subr.mxu0 0.0
        %1045 = vmatpush1.xpose.msra.mxu0 0.0
        %1046 = vmatprep.subr.mxu0 0.0
        %1047 = vmatpush1.xpose.msra.mxu0 0.0
        %1048 = vmatprep.subr.mxu0 0.0
        %1049 = vmatpush1.xpose.msra.mxu0 0.0
        %1050 = vmatprep.subr.mxu0 0.0
        %1051 = vmatpush1.xpose.msra.mxu0 0.0
        %1052 = vmatprep.subr.mxu0 0.0
        %1053 = vmatpush1.xpose.msra.mxu0 0.0
        %1054 = vmatprep.subr.mxu0 0.0
        %1055 = vmatpush1.xpose.msra.mxu0 0.0
        %1056 = vmatprep.mubr.f32.mxu0 0.0
        %1057 = vmatmul.mubr.f32.gmra.mrb[0].mxu0 %v984
        %v1058 = vpop.f32.mrb[0].mxu0
        %v1059 = vadd.f32 %v672, %v1058
        %v1060 = vpop.f32.mrb[0].mxu0
        %1061 = vmatprep.mubr.f32.mxu0 0.0
        %1062 = vmatmul.mubr.f32.gmra.mrb[0].mxu0 %v986
        %v1063 = vpop.f32.mrb[0].mxu0
        %v1064 = vadd.f32 %v672, %v1063
        %v1065 = vpop.f32.mrb[0].mxu0
        %1066 = vdwg.mxu0
        %v1067 = vsel %vm689, %v1059, -inf
        %1068 = vmax.xlane.f32.xlu0 %v1067
        %v1069 = vpop.xlane.xlu0 %1068
        %v1070 = vsel %vm689, %v1064, -inf
        %1071 = vmax.xlane.f32.xlu0 %v1070
        %v1072 = vpop.xlane.xlu0 %1071
        %v1073 = vsub.f32 %v1059, %v1069
        %v1074 = vsub.f32 %v1064, %v1072
        %v1075 = vmul.f32 %v1073, 1.442695
        %v1076 = vpow.pop %v1075
        %v1077 = vmul.f32 %v1074, 1.442695
        %v1078 = vpow.pop %v1077
        %v1079 = vsel %vm689, %v1076, 0.0
        %1080 = vadd.xlane.f32.xlu0 %v1079
        %v1081 = vpop.xlane.xlu0 %1080
        %v1082 = vsel %vm689, %v1078, 0.0
        %1083 = vadd.xlane.f32.xlu0 %v1082
        %v1084 = vpop.xlane.xlu0 %1083
        %v1085 = vrcp.pop %v1081
        %v1086 = vrcp.pop %v1084
        %v1087 = vmul.f32 %v1076, %v1085
        %v1088 = vmul.f32 %v1078, %v1086
        %1089 = vrot.lane.b32.xlu0 %v763, 92
        %v1090 = vpop.permute.xlu0 %1089
        %1091 = vrot.lane.b32.xlu0 %v768, 92
        %v1092 = vpop.permute.xlu0 %1091
        %v1096 = vsel %vm689, %v1087, 0
        %v1099 = vsel %vm689, %v1088, 0
        %1101 = vmatprep.subr.mxu0 0.0
        %1102 = vmatpush1.msra.mxu0 %v1090
        %1103 = vmatprep.subr.mxu0 0.0
        %1104 = vmatpush1.msra.mxu0 %v1092
        %1105 = vmatprep.subr.mxu0 0.0
        %1106 = vmatpush1.msra.mxu0 0.0
        %1107 = vmatprep.subr.mxu0 0.0
        %1108 = vmatpush1.msra.mxu0 0.0
        %1109 = vmatprep.subr.mxu0 0.0
        %1110 = vmatpush1.msra.mxu0 0.0
        %1111 = vmatprep.subr.mxu0 0.0
        %1112 = vmatpush1.msra.mxu0 0.0
        %1113 = vmatprep.subr.mxu0 0.0
        %1114 = vmatpush1.msra.mxu0 0.0
        %1115 = vmatprep.subr.mxu0 0.0
        %1116 = vmatpush1.msra.mxu0 0.0
        %1117 = vmatprep.subr.mxu0 0.0
        %1118 = vmatpush1.msra.mxu0 0.0
        %1119 = vmatprep.subr.mxu0 0.0
        %1120 = vmatpush1.msra.mxu0 0.0
        %1121 = vmatprep.subr.mxu0 0.0
        %1122 = vmatpush1.msra.mxu0 0.0
        %1123 = vmatprep.subr.mxu0 0.0
        %1124 = vmatpush1.msra.mxu0 0.0
        %1125 = vmatprep.subr.mxu0 0.0
        %1126 = vmatpush1.msra.mxu0 0.0
        %1127 = vmatprep.subr.mxu0 0.0
        %1128 = vmatpush1.msra.mxu0 0.0
        %1129 = vmatprep.subr.mxu0 0.0
        %1130 = vmatpush1.msra.mxu0 0.0
        %1131 = vmatprep.subr.mxu0 0.0
        %1132 = vmatpush1.msra.mxu0 0.0
        %1133 = vmatprep.subr.mxu0 0.0
        %1134 = vmatpush1.msra.mxu0 0.0
        %1135 = vmatprep.subr.mxu0 0.0
        %1136 = vmatpush1.msra.mxu0 0.0
        %1137 = vmatprep.subr.mxu0 0.0
        %1138 = vmatpush1.msra.mxu0 0.0
        %1139 = vmatprep.subr.mxu0 0.0
        %1140 = vmatpush1.msra.mxu0 0.0
        %1141 = vmatprep.subr.mxu0 0.0
        %1142 = vmatpush1.msra.mxu0 0.0
        %1143 = vmatprep.subr.mxu0 0.0
        %1144 = vmatpush1.msra.mxu0 0.0
        %1145 = vmatprep.subr.mxu0 0.0
        %1146 = vmatpush1.msra.mxu0 0.0
        %1147 = vmatprep.subr.mxu0 0.0
        %1148 = vmatpush1.msra.mxu0 0.0
        %1149 = vmatprep.subr.mxu0 0.0
        %1150 = vmatpush1.msra.mxu0 0.0
        %1151 = vmatprep.subr.mxu0 0.0
        %1152 = vmatpush1.msra.mxu0 0.0
        %1153 = vmatprep.subr.mxu0 0.0
        %1154 = vmatpush1.msra.mxu0 0.0
        %1155 = vmatprep.subr.mxu0 0.0
        %1156 = vmatpush1.msra.mxu0 0.0
        %1157 = vmatprep.subr.mxu0 0.0
        %1158 = vmatpush1.msra.mxu0 0.0
        %1159 = vmatprep.subr.mxu0 0.0
        %1160 = vmatpush1.msra.mxu0 0.0
        %1161 = vmatprep.subr.mxu0 0.0
        %1162 = vmatpush1.msra.mxu0 0.0
        %1163 = vmatprep.subr.mxu0 0.0
        %1164 = vmatpush1.msra.mxu0 0.0
        %1165 = vmatprep.mubr.f32.mxu0 0.0
        %1166 = vmatmul.mubr.f32.gmra.mrb[0].mxu0 %v1096
        %v1167 = vpop.f32.mrb[0].mxu0
        %v1168 = vadd.f32 0.0, %v1167
        %v1169 = vpop.f32.mrb[0].mxu0
        %1170 = vmatprep.mubr.f32.mxu0 0.0
        %1171 = vmatmul.mubr.f32.gmra.mrb[0].mxu0 %v1099
        %v1172 = vpop.f32.mrb[0].mxu0
        %v1173 = vadd.f32 0.0, %v1172
        %v1174 = vpop.f32.mrb[0].mxu0
        %1175 = vdwg.mxu0
        %v1177 = vrot.slane %v773, 4
        %v1179 = vsel %vm781, %v1168, 0
        %v1182 = vsel %vm781, %v1173, 0
        %vm1184 = vcmask 1043456
        %v1185 = vsel %vm1184, %v1177, 0
        %1187 = vmatprep.subr.mxu0 0.0
        %1188 = vmatpush1.msra.mxu0 %v1185
        %1189 = vmatprep.subr.mxu0 0.0
        %1190 = vmatpush1.msra.mxu0 0.0
        %1191 = vmatprep.subr.mxu0 0.0
        %1192 = vmatpush1.msra.mxu0 0.0
        %1193 = vmatprep.subr.mxu0 0.0
        %1194 = vmatpush1.msra.mxu0 0.0
        %1195 = vmatprep.subr.mxu0 0.0
        %1196 = vmatpush1.msra.mxu0 0.0
        %1197 = vmatprep.subr.mxu0 0.0
        %1198 = vmatpush1.msra.mxu0 0.0
        %1199 = vmatprep.subr.mxu0 0.0
        %1200 = vmatpush1.msra.mxu0 0.0
        %1201 = vmatprep.subr.mxu0 0.0
        %1202 = vmatpush1.msra.mxu0 0.0
        %1203 = vmatprep.subr.mxu0 0.0
        %1204 = vmatpush1.msra.mxu0 0.0
        %1205 = vmatprep.subr.mxu0 0.0
        %1206 = vmatpush1.msra.mxu0 0.0
        %1207 = vmatprep.subr.mxu0 0.0
        %1208 = vmatpush1.msra.mxu0 0.0
        %1209 = vmatprep.subr.mxu0 0.0
        %1210 = vmatpush1.msra.mxu0 0.0
        %1211 = vmatprep.subr.mxu0 0.0
        %1212 = vmatpush1.msra.mxu0 0.0
        %1213 = vmatprep.subr.mxu0 0.0
        %1214 = vmatpush1.msra.mxu0 0.0
        %1215 = vmatprep.subr.mxu0 0.0
        %1216 = vmatpush1.msra.mxu0 0.0
        %1217 = vmatprep.subr.mxu0 0.0
        %1218 = vmatpush1.msra.mxu0 0.0
        %1219 = vmatprep.subr.mxu0 0.0
        %1220 = vmatpush1.msra.mxu0 0.0
        %1221 = vmatprep.subr.mxu0 0.0
        %1222 = vmatpush1.msra.mxu0 0.0
        %1223 = vmatprep.subr.mxu0 0.0
        %1224 = vmatpush1.msra.mxu0 0.0
        %1225 = vmatprep.subr.mxu0 0.0
        %1226 = vmatpush1.msra.mxu0 0.0
        %1227 = vmatprep.subr.mxu0 0.0
        %1228 = vmatpush1.msra.mxu0 0.0
        %1229 = vmatprep.subr.mxu0 0.0
        %1230 = vmatpush1.msra.mxu0 0.0
        %1231 = vmatprep.subr.mxu0 0.0
        %1232 = vmatpush1.msra.mxu0 0.0
        %1233 = vmatprep.subr.mxu0 0.0
        %1234 = vmatpush1.msra.mxu0 0.0
        %1235 = vmatprep.subr.mxu0 0.0
        %1236 = vmatpush1.msra.mxu0 0.0
        %1237 = vmatprep.subr.mxu0 0.0
        %1238 = vmatpush1.msra.mxu0 0.0
        %1239 = vmatprep.subr.mxu0 0.0
        %1240 = vmatpush1.msra.mxu0 0.0
        %1241 = vmatprep.subr.mxu0 0.0
        %1242 = vmatpush1.msra.mxu0 0.0
        %1243 = vmatprep.subr.mxu0 0.0
        %1244 = vmatpush1.msra.mxu0 0.0
        %1245 = vmatprep.subr.mxu0 0.0
        %1246 = vmatpush1.msra.mxu0 0.0
        %1247 = vmatprep.subr.mxu0 0.0
        %1248 = vmatpush1.msra.mxu0 0.0
        %1249 = vmatprep.subr.mxu0 0.0
        %1250 = vmatpush1.msra.mxu0 0.0
        %1251 = vmatprep.mubr.f32.mxu0 0.0
        %1252 = vmatmul.mubr.f32.gmra.mrb[0].mxu0 %v1179
        %v1253 = vpop.f32.mrb[0].mxu0
        %v1254 = vadd.f32 0.0, %v1253
        %v1255 = vpop.f32.mrb[0].mxu0
        %1256 = vmatprep.mubr.f32.mxu0 0.0
        %1257 = vmatmul.mubr.f32.gmra.mrb[0].mxu0 %v1182
        %v1258 = vpop.f32.mrb[0].mxu0
        %v1259 = vadd.f32 0.0, %v1258
        %v1260 = vpop.f32.mrb[0].mxu0
        %1261 = vdwg.mxu0
        %v1263 = vsel %vm781, %v968, 0
        %v1266 = vsel %vm781, %v973, 0
        %v1268 = vsel %vm1184, %v773, 0
        %1270 = vmatprep.subr.mxu0 0.0
        %1271 = vmatpush1.msra.mxu0 %v1268
        %1272 = vmatprep.subr.mxu0 0.0
        %1273 = vmatpush1.msra.mxu0 0.0
        %1274 = vmatprep.subr.mxu0 0.0
        %1275 = vmatpush1.msra.mxu0 0.0
        %1276 = vmatprep.subr.mxu0 0.0
        %1277 = vmatpush1.msra.mxu0 0.0
        %1278 = vmatprep.subr.mxu0 0.0
        %1279 = vmatpush1.msra.mxu0 0.0
        %1280 = vmatprep.subr.mxu0 0.0
        %1281 = vmatpush1.msra.mxu0 0.0
        %1282 = vmatprep.subr.mxu0 0.0
        %1283 = vmatpush1.msra.mxu0 0.0
        %1284 = vmatprep.subr.mxu0 0.0
        %1285 = vmatpush1.msra.mxu0 0.0
        %1286 = vmatprep.subr.mxu0 0.0
        %1287 = vmatpush1.msra.mxu0 0.0
        %1288 = vmatprep.subr.mxu0 0.0
        %1289 = vmatpush1.msra.mxu0 0.0
        %1290 = vmatprep.subr.mxu0 0.0
        %1291 = vmatpush1.msra.mxu0 0.0
        %1292 = vmatprep.subr.mxu0 0.0
        %1293 = vmatpush1.msra.mxu0 0.0
        %1294 = vmatprep.subr.mxu0 0.0
        %1295 = vmatpush1.msra.mxu0 0.0
        %1296 = vmatprep.subr.mxu0 0.0
        %1297 = vmatpush1.msra.mxu0 0.0
        %1298 = vmatprep.subr.mxu0 0.0
        %1299 = vmatpush1.msra.mxu0 0.0
        %1300 = vmatprep.subr.mxu0 0.0
        %1301 = vmatpush1.msra.mxu0 0.0
        %1302 = vmatprep.subr.mxu0 0.0
        %1303 = vmatpush1.msra.mxu0 0.0
        %1304 = vmatprep.subr.mxu0 0.0
        %1305 = vmatpush1.msra.mxu0 0.0
        %1306 = vmatprep.subr.mxu0 0.0
        %1307 = vmatpush1.msra.mxu0 0.0
        %1308 = vmatprep.subr.mxu0 0.0
        %1309 = vmatpush1.msra.mxu0 0.0
        %1310 = vmatprep.subr.mxu0 0.0
        %1311 = vmatpush1.msra.mxu0 0.0
        %1312 = vmatprep.subr.mxu0 0.0
        %1313 = vmatpush1.msra.mxu0 0.0
        %1314 = vmatprep.subr.mxu0 0.0
        %1315 = vmatpush1.msra.mxu0 0.0
        %1316 = vmatprep.subr.mxu0 0.0
        %1317 = vmatpush1.msra.mxu0 0.0
        %1318 = vmatprep.subr.mxu0 0.0
        %1319 = vmatpush1.msra.mxu0 0.0
        %1320 = vmatprep.subr.mxu0 0.0
        %1321 = vmatpush1.msra.mxu0 0.0
        %1322 = vmatprep.subr.mxu0 0.0
        %1323 = vmatpush1.msra.mxu0 0.0
        %1324 = vmatprep.subr.mxu0 0.0
        %1325 = vmatpush1.msra.mxu0 0.0
        %1326 = vmatprep.subr.mxu0 0.0
        %1327 = vmatpush1.msra.mxu0 0.0
        %1328 = vmatprep.subr.mxu0 0.0
        %1329 = vmatpush1.msra.mxu0 0.0
        %1330 = vmatprep.subr.mxu0 0.0
        %1331 = vmatpush1.msra.mxu0 0.0
        %1332 = vmatprep.subr.mxu0 0.0
        %1333 = vmatpush1.msra.mxu0 0.0
        %1334 = vmatprep.mubr.f32.mxu0 0.0
        %1335 = vmatmul.mubr.f32.gmra.mrb[0].mxu0 %v1263
        %v1336 = vpop.f32.mrb[0].mxu0
        %v1337 = vadd.f32 %v1254, %v1336
        %v1338 = vpop.f32.mrb[0].mxu0
        %1339 = vmatprep.mubr.f32.mxu0 0.0
        %1340 = vmatmul.mubr.f32.gmra.mrb[0].mxu0 %v1266
        %v1341 = vpop.f32.mrb[0].mxu0
        %v1342 = vadd.f32 %v1259, %v1341
        %v1343 = vpop.f32.mrb[0].mxu0
        %1344 = vdwg.mxu0
        %1345 = vrot.lane.b32.xlu0 %v771, 120
        %v1346 = vpop.permute.xlu0 %1345
        %1347 = vrot.lane.b32.xlu0 %v772, 120
        %v1348 = vpop.permute.xlu0 %1347
        %1349 = vrot.lane.b32.xlu0 %v763, 104
        %v1350 = vpop.permute.xlu0 %1349
        %1351 = vrot.lane.b32.xlu0 %v768, 104
        %v1352 = vpop.permute.xlu0 %1351
        %v1353 = vsel %vm781, %v1346, 0
        %v1355 = vsel %vm781, %v1348, 0
        %v1357 = vsel %vm781, %v1350, 0
        %v1359 = vsel %vm781, %v1352, 0
        %1361 = vmatprep.subr.mxu0 0.0
        %1362 = vmatpush1.xpose.msra.mxu0 %v1357
        %1363 = vmatprep.subr.mxu0 0.0
        %1364 = vmatpush1.xpose.msra.mxu0 %v1359
        %1365 = vmatprep.subr.mxu0 0.0
        %1366 = vmatpush1.xpose.msra.mxu0 0.0
        %1367 = vmatprep.subr.mxu0 0.0
        %1368 = vmatpush1.xpose.msra.mxu0 0.0
        %1369 = vmatprep.subr.mxu0 0.0
        %1370 = vmatpush1.xpose.msra.mxu0 0.0
        %1371 = vmatprep.subr.mxu0 0.0
        %1372 = vmatpush1.xpose.msra.mxu0 0.0
        %1373 = vmatprep.subr.mxu0 0.0
        %1374 = vmatpush1.xpose.msra.mxu0 0.0
        %1375 = vmatprep.subr.mxu0 0.0
        %1376 = vmatpush1.xpose.msra.mxu0 0.0
        %1377 = vmatprep.subr.mxu0 0.0
        %1378 = vmatpush1.xpose.msra.mxu0 0.0
        %1379 = vmatprep.subr.mxu0 0.0
        %1380 = vmatpush1.xpose.msra.mxu0 0.0
        %1381 = vmatprep.subr.mxu0 0.0
        %1382 = vmatpush1.xpose.msra.mxu0 0.0
        %1383 = vmatprep.subr.mxu0 0.0
        %1384 = vmatpush1.xpose.msra.mxu0 0.0
        %1385 = vmatprep.subr.mxu0 0.0
        %1386 = vmatpush1.xpose.msra.mxu0 0.0
        %1387 = vmatprep.subr.mxu0 0.0
        %1388 = vmatpush1.xpose.msra.mxu0 0.0
        %1389 = vmatprep.subr.mxu0 0.0
        %1390 = vmatpush1.xpose.msra.mxu0 0.0
        %1391 = vmatprep.subr.mxu0 0.0
        %1392 = vmatpush1.xpose.msra.mxu0 0.0
        %1393 = vmatprep.subr.mxu0 0.0
        %1394 = vmatpush1.xpose.msra.mxu0 0.0
        %1395 = vmatprep.subr.mxu0 0.0
        %1396 = vmatpush1.xpose.msra.mxu0 0.0
        %1397 = vmatprep.subr.mxu0 0.0
        %1398 = vmatpush1.xpose.msra.mxu0 0.0
        %1399 = vmatprep.subr.mxu0 0.0
        %1400 = vmatpush1.xpose.msra.mxu0 0.0
        %1401 = vmatprep.subr.mxu0 0.0
        %1402 = vmatpush1.xpose.msra.mxu0 0.0
        %1403 = vmatprep.subr.mxu0 0.0
        %1404 = vmatpush1.xpose.msra.mxu0 0.0
        %1405 = vmatprep.subr.mxu0 0.0
        %1406 = vmatpush1.xpose.msra.mxu0 0.0
        %1407 = vmatprep.subr.mxu0 0.0
        %1408 = vmatpush1.xpose.msra.mxu0 0.0
        %1409 = vmatprep.subr.mxu0 0.0
        %1410 = vmatpush1.xpose.msra.mxu0 0.0
        %1411 = vmatprep.subr.mxu0 0.0
        %1412 = vmatpush1.xpose.msra.mxu0 0.0
        %1413 = vmatprep.subr.mxu0 0.0
        %1414 = vmatpush1.xpose.msra.mxu0 0.0
        %1415 = vmatprep.subr.mxu0 0.0
        %1416 = vmatpush1.xpose.msra.mxu0 0.0
        %1417 = vmatprep.subr.mxu0 0.0
        %1418 = vmatpush1.xpose.msra.mxu0 0.0
        %1419 = vmatprep.subr.mxu0 0.0
        %1420 = vmatpush1.xpose.msra.mxu0 0.0
        %1421 = vmatprep.subr.mxu0 0.0
        %1422 = vmatpush1.xpose.msra.mxu0 0.0
        %1423 = vmatprep.subr.mxu0 0.0
        %1424 = vmatpush1.xpose.msra.mxu0 0.0
        %1425 = vmatprep.mubr.f32.mxu0 0.0
        %1426 = vmatmul.mubr.f32.gmra.mrb[0].mxu0 %v1353
        %v1427 = vpop.f32.mrb[0].mxu0
        %v1428 = vadd.f32 %v672, %v1427
        %v1429 = vpop.f32.mrb[0].mxu0
        %1430 = vmatprep.mubr.f32.mxu0 0.0
        %1431 = vmatmul.mubr.f32.gmra.mrb[0].mxu0 %v1355
        %v1432 = vpop.f32.mrb[0].mxu0
        %v1433 = vadd.f32 %v672, %v1432
        %v1434 = vpop.f32.mrb[0].mxu0
        %1435 = vdwg.mxu0
        %v1436 = vsel %vm689, %v1428, -inf
        %1437 = vmax.xlane.f32.xlu0 %v1436
        %v1438 = vpop.xlane.xlu0 %1437
        %v1439 = vsel %vm689, %v1433, -inf
        %1440 = vmax.xlane.f32.xlu0 %v1439
        %v1441 = vpop.xlane.xlu0 %1440
        %v1442 = vsub.f32 %v1428, %v1438
        %v1443 = vsub.f32 %v1433, %v1441
        %v1444 = vmul.f32 %v1442, 1.442695
        %v1445 = vpow.pop %v1444
        %v1446 = vmul.f32 %v1443, 1.442695
        %v1447 = vpow.pop %v1446
        %v1448 = vsel %vm689, %v1445, 0.0
        %1449 = vadd.xlane.f32.xlu0 %v1448
        %v1450 = vpop.xlane.xlu0 %1449
        %v1451 = vsel %vm689, %v1447, 0.0
        %1452 = vadd.xlane.f32.xlu0 %v1451
        %v1453 = vpop.xlane.xlu0 %1452
        %v1454 = vrcp.pop %v1450
        %v1455 = vrcp.pop %v1453
        %v1456 = vmul.f32 %v1445, %v1454
        %v1457 = vmul.f32 %v1447, %v1455
        %1458 = vrot.lane.b32.xlu0 %v763, 88
        %v1459 = vpop.permute.xlu0 %1458
        %1460 = vrot.lane.b32.xlu0 %v768, 88
        %v1461 = vpop.permute.xlu0 %1460
        %v1465 = vsel %vm689, %v1456, 0
        %v1468 = vsel %vm689, %v1457, 0
        %1470 = vmatprep.subr.mxu0 0.0
        %1471 = vmatpush1.msra.mxu0 %v1459
        %1472 = vmatprep.subr.mxu0 0.0
        %1473 = vmatpush1.msra.mxu0 %v1461
        %1474 = vmatprep.subr.mxu0 0.0
        %1475 = vmatpush1.msra.mxu0 0.0
        %1476 = vmatprep.subr.mxu0 0.0
        %1477 = vmatpush1.msra.mxu0 0.0
        %1478 = vmatprep.subr.mxu0 0.0
        %1479 = vmatpush1.msra.mxu0 0.0
        %1480 = vmatprep.subr.mxu0 0.0
        %1481 = vmatpush1.msra.mxu0 0.0
        %1482 = vmatprep.subr.mxu0 0.0
        %1483 = vmatpush1.msra.mxu0 0.0
        %1484 = vmatprep.subr.mxu0 0.0
        %1485 = vmatpush1.msra.mxu0 0.0
        %1486 = vmatprep.subr.mxu0 0.0
        %1487 = vmatpush1.msra.mxu0 0.0
        %1488 = vmatprep.subr.mxu0 0.0
        %1489 = vmatpush1.msra.mxu0 0.0
        %1490 = vmatprep.subr.mxu0 0.0
        %1491 = vmatpush1.msra.mxu0 0.0
        %1492 = vmatprep.subr.mxu0 0.0
        %1493 = vmatpush1.msra.mxu0 0.0
        %1494 = vmatprep.subr.mxu0 0.0
        %1495 = vmatpush1.msra.mxu0 0.0
        %1496 = vmatprep.subr.mxu0 0.0
        %1497 = vmatpush1.msra.mxu0 0.0
        %1498 = vmatprep.subr.mxu0 0.0
        %1499 = vmatpush1.msra.mxu0 0.0
        %1500 = vmatprep.subr.mxu0 0.0
        %1501 = vmatpush1.msra.mxu0 0.0
        %1502 = vmatprep.subr.mxu0 0.0
        %1503 = vmatpush1.msra.mxu0 0.0
        %1504 = vmatprep.subr.mxu0 0.0
        %1505 = vmatpush1.msra.mxu0 0.0
        %1506 = vmatprep.subr.mxu0 0.0
        %1507 = vmatpush1.msra.mxu0 0.0
        %1508 = vmatprep.subr.mxu0 0.0
        %1509 = vmatpush1.msra.mxu0 0.0
        %1510 = vmatprep.subr.mxu0 0.0
        %1511 = vmatpush1.msra.mxu0 0.0
        %1512 = vmatprep.subr.mxu0 0.0
        %1513 = vmatpush1.msra.mxu0 0.0
        %1514 = vmatprep.subr.mxu0 0.0
        %1515 = vmatpush1.msra.mxu0 0.0
        %1516 = vmatprep.subr.mxu0 0.0
        %1517 = vmatpush1.msra.mxu0 0.0
        %1518 = vmatprep.subr.mxu0 0.0
        %1519 = vmatpush1.msra.mxu0 0.0
        %1520 = vmatprep.subr.mxu0 0.0
        %1521 = vmatpush1.msra.mxu0 0.0
        %1522 = vmatprep.subr.mxu0 0.0
        %1523 = vmatpush1.msra.mxu0 0.0
        %1524 = vmatprep.subr.mxu0 0.0
        %1525 = vmatpush1.msra.mxu0 0.0
        %1526 = vmatprep.subr.mxu0 0.0
        %1527 = vmatpush1.msra.mxu0 0.0
        %1528 = vmatprep.subr.mxu0 0.0
        %1529 = vmatpush1.msra.mxu0 0.0
        %1530 = vmatprep.subr.mxu0 0.0
        %1531 = vmatpush1.msra.mxu0 0.0
        %1532 = vmatprep.subr.mxu0 0.0
        %1533 = vmatpush1.msra.mxu0 0.0
        %1534 = vmatprep.mubr.f32.mxu0 0.0
        %1535 = vmatmul.mubr.f32.gmra.mrb[0].mxu0 %v1465
        %v1536 = vpop.f32.mrb[0].mxu0
        %v1537 = vadd.f32 0.0, %v1536
        %v1538 = vpop.f32.mrb[0].mxu0
        %1539 = vmatprep.mubr.f32.mxu0 0.0
        %1540 = vmatmul.mubr.f32.gmra.mrb[0].mxu0 %v1468
        %v1541 = vpop.f32.mrb[0].mxu0
        %v1542 = vadd.f32 0.0, %v1541
        %v1543 = vpop.f32.mrb[0].mxu0
        %1544 = vdwg.mxu0
        %v1546 = vsel %vm781, %v1537, 0
        %v1549 = vsel %vm781, %v1542, 0
        %v1552 = vsel %vm1184, %v774, 0
        %1554 = vmatprep.subr.mxu0 0.0
        %1555 = vmatpush1.msra.mxu0 %v1552
        %1556 = vmatprep.subr.mxu0 0.0
        %1557 = vmatpush1.msra.mxu0 0.0
        %1558 = vmatprep.subr.mxu0 0.0
        %1559 = vmatpush1.msra.mxu0 0.0
        %1560 = vmatprep.subr.mxu0 0.0
        %1561 = vmatpush1.msra.mxu0 0.0
        %1562 = vmatprep.subr.mxu0 0.0
        %1563 = vmatpush1.msra.mxu0 0.0
        %1564 = vmatprep.subr.mxu0 0.0
        %1565 = vmatpush1.msra.mxu0 0.0
        %1566 = vmatprep.subr.mxu0 0.0
        %1567 = vmatpush1.msra.mxu0 0.0
        %1568 = vmatprep.subr.mxu0 0.0
        %1569 = vmatpush1.msra.mxu0 0.0
        %1570 = vmatprep.subr.mxu0 0.0
        %1571 = vmatpush1.msra.mxu0 0.0
        %1572 = vmatprep.subr.mxu0 0.0
        %1573 = vmatpush1.msra.mxu0 0.0
        %1574 = vmatprep.subr.mxu0 0.0
        %1575 = vmatpush1.msra.mxu0 0.0
        %1576 = vmatprep.subr.mxu0 0.0
        %1577 = vmatpush1.msra.mxu0 0.0
        %1578 = vmatprep.subr.mxu0 0.0
        %1579 = vmatpush1.msra.mxu0 0.0
        %1580 = vmatprep.subr.mxu0 0.0
        %1581 = vmatpush1.msra.mxu0 0.0
        %1582 = vmatprep.subr.mxu0 0.0
        %1583 = vmatpush1.msra.mxu0 0.0
        %1584 = vmatprep.subr.mxu0 0.0
        %1585 = vmatpush1.msra.mxu0 0.0
        %1586 = vmatprep.subr.mxu0 0.0
        %1587 = vmatpush1.msra.mxu0 0.0
        %1588 = vmatprep.subr.mxu0 0.0
        %1589 = vmatpush1.msra.mxu0 0.0
        %1590 = vmatprep.subr.mxu0 0.0
        %1591 = vmatpush1.msra.mxu0 0.0
        %1592 = vmatprep.subr.mxu0 0.0
        %1593 = vmatpush1.msra.mxu0 0.0
        %1594 = vmatprep.subr.mxu0 0.0
        %1595 = vmatpush1.msra.mxu0 0.0
        %1596 = vmatprep.subr.mxu0 0.0
        %1597 = vmatpush1.msra.mxu0 0.0
        %1598 = vmatprep.subr.mxu0 0.0
        %1599 = vmatpush1.msra.mxu0 0.0
        %1600 = vmatprep.subr.mxu0 0.0
        %1601 = vmatpush1.msra.mxu0 0.0
        %1602 = vmatprep.subr.mxu0 0.0
        %1603 = vmatpush1.msra.mxu0 0.0
        %1604 = vmatprep.subr.mxu0 0.0
        %1605 = vmatpush1.msra.mxu0 0.0
        %1606 = vmatprep.subr.mxu0 0.0
        %1607 = vmatpush1.msra.mxu0 0.0
        %1608 = vmatprep.subr.mxu0 0.0
        %1609 = vmatpush1.msra.mxu0 0.0
        %1610 = vmatprep.subr.mxu0 0.0
        %1611 = vmatpush1.msra.mxu0 0.0
        %1612 = vmatprep.subr.mxu0 0.0
        %1613 = vmatpush1.msra.mxu0 0.0
        %1614 = vmatprep.subr.mxu0 0.0
        %1615 = vmatpush1.msra.mxu0 0.0
        %1616 = vmatprep.subr.mxu0 0.0
        %1617 = vmatpush1.msra.mxu0 0.0
        %1618 = vmatprep.mubr.f32.mxu0 0.0
        %1619 = vmatmul.mubr.f32.gmra.mrb[0].mxu0 %v1546
        %v1620 = vpop.f32.mrb[0].mxu0
        %v1621 = vadd.f32 0.0, %v1620
        %v1622 = vpop.f32.mrb[0].mxu0
        %1623 = vmatprep.mubr.f32.mxu0 0.0
        %1624 = vmatmul.mubr.f32.gmra.mrb[0].mxu0 %v1549
        %v1625 = vpop.f32.mrb[0].mxu0
        %v1626 = vadd.f32 0.0, %v1625
        %v1627 = vpop.f32.mrb[0].mxu0
        %1628 = vdwg.mxu0
        %v1629 = vadd.f32 %v1337, %v1621
        %v1630 = vadd.f32 %v1342, %v1626
        %1631 = vrot.lane.b32.xlu0 %v771, 116
        %v1632 = vpop.permute.xlu0 %1631
        %1633 = vrot.lane.b32.xlu0 %v772, 116
        %v1634 = vpop.permute.xlu0 %1633
        %1635 = vrot.lane.b32.xlu0 %v763, 100
        %v1636 = vpop.permute.xlu0 %1635
        %1637 = vrot.lane.b32.xlu0 %v768, 100
        %v1638 = vpop.permute.xlu0 %1637
        %v1639 = vsel %vm781, %v1632, 0
        %v1641 = vsel %vm781, %v1634, 0
        %v1643 = vsel %vm781, %v1636, 0
        %v1645 = vsel %vm781, %v1638, 0
        %1647 = vmatprep.subr.mxu0 0.0
        %1648 = vmatpush1.xpose.msra.mxu0 %v1643
        %1649 = vmatprep.subr.mxu0 0.0
        %1650 = vmatpush1.xpose.msra.mxu0 %v1645
        %1651 = vmatprep.subr.mxu0 0.0
        %1652 = vmatpush1.xpose.msra.mxu0 0.0
        %1653 = vmatprep.subr.mxu0 0.0
        %1654 = vmatpush1.xpose.msra.mxu0 0.0
        %1655 = vmatprep.subr.mxu0 0.0
        %1656 = vmatpush1.xpose.msra.mxu0 0.0
        %1657 = vmatprep.subr.mxu0 0.0
        %1658 = vmatpush1.xpose.msra.mxu0 0.0
        %1659 = vmatprep.subr.mxu0 0.0
        %1660 = vmatpush1.xpose.msra.mxu0 0.0
        %1661 = vmatprep.subr.mxu0 0.0
        %1662 = vmatpush1.xpose.msra.mxu0 0.0
        %1663 = vmatprep.subr.mxu0 0.0
        %1664 = vmatpush1.xpose.msra.mxu0 0.0
        %1665 = vmatprep.subr.mxu0 0.0
        %1666 = vmatpush1.xpose.msra.mxu0 0.0
        %1667 = vmatprep.subr.mxu0 0.0
        %1668 = vmatpush1.xpose.msra.mxu0 0.0
        %1669 = vmatprep.subr.mxu0 0.0
        %1670 = vmatpush1.xpose.msra.mxu0 0.0
        %1671 = vmatprep.subr.mxu0 0.0
        %1672 = vmatpush1.xpose.msra.mxu0 0.0
        %1673 = vmatprep.subr.mxu0 0.0
        %1674 = vmatpush1.xpose.msra.mxu0 0.0
        %1675 = vmatprep.subr.mxu0 0.0
        %1676 = vmatpush1.xpose.msra.mxu0 0.0
        %1677 = vmatprep.subr.mxu0 0.0
        %1678 = vmatpush1.xpose.msra.mxu0 0.0
        %1679 = vmatprep.subr.mxu0 0.0
        %1680 = vmatpush1.xpose.msra.mxu0 0.0
        %1681 = vmatprep.subr.mxu0 0.0
        %1682 = vmatpush1.xpose.msra.mxu0 0.0
        %1683 = vmatprep.subr.mxu0 0.0
        %1684 = vmatpush1.xpose.msra.mxu0 0.0
        %1685 = vmatprep.subr.mxu0 0.0
        %1686 = vmatpush1.xpose.msra.mxu0 0.0
        %1687 = vmatprep.subr.mxu0 0.0
        %1688 = vmatpush1.xpose.msra.mxu0 0.0
        %1689 = vmatprep.subr.mxu0 0.0
        %1690 = vmatpush1.xpose.msra.mxu0 0.0
        %1691 = vmatprep.subr.mxu0 0.0
        %1692 = vmatpush1.xpose.msra.mxu0 0.0
        %1693 = vmatprep.subr.mxu0 0.0
        %1694 = vmatpush1.xpose.msra.mxu0 0.0
        %1695 = vmatprep.subr.mxu0 0.0
        %1696 = vmatpush1.xpose.msra.mxu0 0.0
        %1697 = vmatprep.subr.mxu0 0.0
        %1698 = vmatpush1.xpose.msra.mxu0 0.0
        %1699 = vmatprep.subr.mxu0 0.0
        %1700 = vmatpush1.xpose.msra.mxu0 0.0
        %1701 = vmatprep.subr.mxu0 0.0
        %1702 = vmatpush1.xpose.msra.mxu0 0.0
        %1703 = vmatprep.subr.mxu0 0.0
        %1704 = vmatpush1.xpose.msra.mxu0 0.0
        %1705 = vmatprep.subr.mxu0 0.0
        %1706 = vmatpush1.xpose.msra.mxu0 0.0
        %1707 = vmatprep.subr.mxu0 0.0
        %1708 = vmatpush1.xpose.msra.mxu0 0.0
        %1709 = vmatprep.subr.mxu0 0.0
        %1710 = vmatpush1.xpose.msra.mxu0 0.0
        %1711 = vmatprep.mubr.f32.mxu0 0.0
        %1712 = vmatmul.mubr.f32.gmra.mrb[0].mxu0 %v1639
        %v1713 = vpop.f32.mrb[0].mxu0
        %v1714 = vadd.f32 %v672, %v1713
        %v1715 = vpop.f32.mrb[0].mxu0
        %1716 = vmatprep.mubr.f32.mxu0 0.0
        %1717 = vmatmul.mubr.f32.gmra.mrb[0].mxu0 %v1641
        %v1718 = vpop.f32.mrb[0].mxu0
        %v1719 = vadd.f32 %v672, %v1718
        %v1720 = vpop.f32.mrb[0].mxu0
        %1721 = vdwg.mxu0
        %v1722 = vsel %vm689, %v1714, -inf
        %1723 = vmax.xlane.f32.xlu0 %v1722
        %v1724 = vpop.xlane.xlu0 %1723
        %v1725 = vsel %vm689, %v1719, -inf
        %1726 = vmax.xlane.f32.xlu0 %v1725
        %v1727 = vpop.xlane.xlu0 %1726
        %v1728 = vsub.f32 %v1714, %v1724
        %v1729 = vsub.f32 %v1719, %v1727
        %v1730 = vmul.f32 %v1728, 1.442695
        %v1731 = vpow.pop %v1730
        %v1732 = vmul.f32 %v1729, 1.442695
        %v1733 = vpow.pop %v1732
        %v1734 = vsel %vm689, %v1731, 0.0
        %1735 = vadd.xlane.f32.xlu0 %v1734
        %v1736 = vpop.xlane.xlu0 %1735
        %v1737 = vsel %vm689, %v1733, 0.0
        %1738 = vadd.xlane.f32.xlu0 %v1737
        %v1739 = vpop.xlane.xlu0 %1738
        %v1740 = vrcp.pop %v1736
        %v1741 = vrcp.pop %v1739
        %v1742 = vmul.f32 %v1731, %v1740
        %v1743 = vmul.f32 %v1733, %v1741
        %1744 = vrot.lane.b32.xlu0 %v763, 84
        %v1745 = vpop.permute.xlu0 %1744
        %1746 = vrot.lane.b32.xlu0 %v768, 84
        %v1747 = vpop.permute.xlu0 %1746
        %v1751 = vsel %vm689, %v1742, 0
        %v1754 = vsel %vm689, %v1743, 0
        %1756 = vmatprep.subr.mxu0 0.0
        %1757 = vmatpush1.msra.mxu0 %v1745
        %1758 = vmatprep.subr.mxu0 0.0
        %1759 = vmatpush1.msra.mxu0 %v1747
        %1760 = vmatprep.subr.mxu0 0.0
        %1761 = vmatpush1.msra.mxu0 0.0
        %1762 = vmatprep.subr.mxu0 0.0
        %1763 = vmatpush1.msra.mxu0 0.0
        %1764 = vmatprep.subr.mxu0 0.0
        %1765 = vmatpush1.msra.mxu0 0.0
        %1766 = vmatprep.subr.mxu0 0.0
        %1767 = vmatpush1.msra.mxu0 0.0
        %1768 = vmatprep.subr.mxu0 0.0
        %1769 = vmatpush1.msra.mxu0 0.0
        %1770 = vmatprep.subr.mxu0 0.0
        %1771 = vmatpush1.msra.mxu0 0.0
        %1772 = vmatprep.subr.mxu0 0.0
        %1773 = vmatpush1.msra.mxu0 0.0
        %1774 = vmatprep.subr.mxu0 0.0
        %1775 = vmatpush1.msra.mxu0 0.0
        %1776 = vmatprep.subr.mxu0 0.0
        %1777 = vmatpush1.msra.mxu0 0.0
        %1778 = vmatprep.subr.mxu0 0.0
        %1779 = vmatpush1.msra.mxu0 0.0
        %1780 = vmatprep.subr.mxu0 0.0
        %1781 = vmatpush1.msra.mxu0 0.0
        %1782 = vmatprep.subr.mxu0 0.0
        %1783 = vmatpush1.msra.mxu0 0.0
        %1784 = vmatprep.subr.mxu0 0.0
        %1785 = vmatpush1.msra.mxu0 0.0
        %1786 = vmatprep.subr.mxu0 0.0
        %1787 = vmatpush1.msra.mxu0 0.0
        %1788 = vmatprep.subr.mxu0 0.0
        %1789 = vmatpush1.msra.mxu0 0.0
        %1790 = vmatprep.subr.mxu0 0.0
        %1791 = vmatpush1.msra.mxu0 0.0
        %1792 = vmatprep.subr.mxu0 0.0
        %1793 = vmatpush1.msra.mxu0 0.0
        %1794 = vmatprep.subr.mxu0 0.0
        %1795 = vmatpush1.msra.mxu0 0.0
        %1796 = vmatprep.subr.mxu0 0.0
        %1797 = vmatpush1.msra.mxu0 0.0
        %1798 = vmatprep.subr.mxu0 0.0
        %1799 = vmatpush1.msra.mxu0 0.0
        %1800 = vmatprep.subr.mxu0 0.0
        %1801 = vmatpush1.msra.mxu0 0.0
        %1802 = vmatprep.subr.mxu0 0.0
        %1803 = vmatpush1.msra.mxu0 0.0
        %1804 = vmatprep.subr.mxu0 0.0
        %1805 = vmatpush1.msra.mxu0 0.0
        %1806 = vmatprep.subr.mxu0 0.0
        %1807 = vmatpush1.msra.mxu0 0.0
        %1808 = vmatprep.subr.mxu0 0.0
        %1809 = vmatpush1.msra.mxu0 0.0
        %1810 = vmatprep.subr.mxu0 0.0
        %1811 = vmatpush1.msra.mxu0 0.0
        %1812 = vmatprep.subr.mxu0 0.0
        %1813 = vmatpush1.msra.mxu0 0.0
        %1814 = vmatprep.subr.mxu0 0.0
        %1815 = vmatpush1.msra.mxu0 0.0
        %1816 = vmatprep.subr.mxu0 0.0
        %1817 = vmatpush1.msra.mxu0 0.0
        %1818 = vmatprep.subr.mxu0 0.0
        %1819 = vmatpush1.msra.mxu0 0.0
        %1820 = vmatprep.mubr.f32.mxu0 0.0
        %1821 = vmatmul.mubr.f32.gmra.mrb[0].mxu0 %v1751
        %v1822 = vpop.f32.mrb[0].mxu0
        %v1823 = vadd.f32 0.0, %v1822
        %v1824 = vpop.f32.mrb[0].mxu0
        %1825 = vmatprep.mubr.f32.mxu0 0.0
        %1826 = vmatmul.mubr.f32.gmra.mrb[0].mxu0 %v1754
        %v1827 = vpop.f32.mrb[0].mxu0
        %v1828 = vadd.f32 0.0, %v1827
        %v1829 = vpop.f32.mrb[0].mxu0
        %1830 = vdwg.mxu0
        %v1831 = vrot.slane %v774, 4
        %v1833 = vsel %vm781, %v1823, 0
        %v1836 = vsel %vm781, %v1828, 0
        %v1838 = vsel %vm1184, %v1831, 0
        %1840 = vmatprep.subr.mxu0 0.0
        %1841 = vmatpush1.msra.mxu0 %v1838
        %1842 = vmatprep.subr.mxu0 0.0
        %1843 = vmatpush1.msra.mxu0 0.0
        %1844 = vmatprep.subr.mxu0 0.0
        %1845 = vmatpush1.msra.mxu0 0.0
        %1846 = vmatprep.subr.mxu0 0.0
        %1847 = vmatpush1.msra.mxu0 0.0
        %1848 = vmatprep.subr.mxu0 0.0
        %1849 = vmatpush1.msra.mxu0 0.0
        %1850 = vmatprep.subr.mxu0 0.0
        %1851 = vmatpush1.msra.mxu0 0.0
        %1852 = vmatprep.subr.mxu0 0.0
        %1853 = vmatpush1.msra.mxu0 0.0
        %1854 = vmatprep.subr.mxu0 0.0
        %1855 = vmatpush1.msra.mxu0 0.0
        %1856 = vmatprep.subr.mxu0 0.0
        %1857 = vmatpush1.msra.mxu0 0.0
        %1858 = vmatprep.subr.mxu0 0.0
        %1859 = vmatpush1.msra.mxu0 0.0
        %1860 = vmatprep.subr.mxu0 0.0
        %1861 = vmatpush1.msra.mxu0 0.0
        %1862 = vmatprep.subr.mxu0 0.0
        %1863 = vmatpush1.msra.mxu0 0.0
        %1864 = vmatprep.subr.mxu0 0.0
        %1865 = vmatpush1.msra.mxu0 0.0
        %1866 = vmatprep.subr.mxu0 0.0
        %1867 = vmatpush1.msra.mxu0 0.0
        %1868 = vmatprep.subr.mxu0 0.0
        %1869 = vmatpush1.msra.mxu0 0.0
        %1870 = vmatprep.subr.mxu0 0.0
        %1871 = vmatpush1.msra.mxu0 0.0
        %1872 = vmatprep.subr.mxu0 0.0
        %1873 = vmatpush1.msra.mxu0 0.0
        %1874 = vmatprep.subr.mxu0 0.0
        %1875 = vmatpush1.msra.mxu0 0.0
        %1876 = vmatprep.subr.mxu0 0.0
        %1877 = vmatpush1.msra.mxu0 0.0
        %1878 = vmatprep.subr.mxu0 0.0
        %1879 = vmatpush1.msra.mxu0 0.0
        %1880 = vmatprep.subr.mxu0 0.0
        %1881 = vmatpush1.msra.mxu0 0.0
        %1882 = vmatprep.subr.mxu0 0.0
        %1883 = vmatpush1.msra.mxu0 0.0
        %1884 = vmatprep.subr.mxu0 0.0
        %1885 = vmatpush1.msra.mxu0 0.0
        %1886 = vmatprep.subr.mxu0 0.0
        %1887 = vmatpush1.msra.mxu0 0.0
        %1888 = vmatprep.subr.mxu0 0.0
        %1889 = vmatpush1.msra.mxu0 0.0
        %1890 = vmatprep.subr.mxu0 0.0
        %1891 = vmatpush1.msra.mxu0 0.0
        %1892 = vmatprep.subr.mxu0 0.0
        %1893 = vmatpush1.msra.mxu0 0.0
        %1894 = vmatprep.subr.mxu0 0.0
        %1895 = vmatpush1.msra.mxu0 0.0
        %1896 = vmatprep.subr.mxu0 0.0
        %1897 = vmatpush1.msra.mxu0 0.0
        %1898 = vmatprep.subr.mxu0 0.0
        %1899 = vmatpush1.msra.mxu0 0.0
        %1900 = vmatprep.subr.mxu0 0.0
        %1901 = vmatpush1.msra.mxu0 0.0
        %1902 = vmatprep.subr.mxu0 0.0
        %1903 = vmatpush1.msra.mxu0 0.0
        %1904 = vmatprep.mubr.f32.mxu0 0.0
        %1905 = vmatmul.mubr.f32.gmra.mrb[0].mxu0 %v1833
        %v1906 = vpop.f32.mrb[0].mxu0
        %v1907 = vadd.f32 0.0, %v1906
        %v1908 = vpop.f32.mrb[0].mxu0
        %1909 = vmatprep.mubr.f32.mxu0 0.0
        %1910 = vmatmul.mubr.f32.gmra.mrb[0].mxu0 %v1836
        %v1911 = vpop.f32.mrb[0].mxu0
        %v1912 = vadd.f32 0.0, %v1911
        %v1913 = vpop.f32.mrb[0].mxu0
        %1914 = vdwg.mxu0
        %v1915 = vadd.f32 %v1629, %v1907
        %v1916 = vadd.f32 %v1630, %v1912
        %v1917 = vlaneseq
        %v1918 = vshrl.u32 %v1917, 7
        %v1919 = vsub.s32 0, %v1918
        %v1920 = vrot.slane %v679, %v1919
        %v1921 = vadd.f32 %v1915, %v1920
        %v1922 = vadd.f32 %v1916, %v1920
        %v1923 = vadd.f32 %v656, %v1921
        %v1924 = vadd.f32 %v661, %v1922
        %v1925 = vsel %vm689, %v1923, 0.0
        %1926 = vadd.xlane.f32.xlu0 %v1925
        %v1927 = vpop.xlane.xlu0 %1926
        %v1928 = vsel %vm689, %v1924, 0.0
        %1929 = vadd.xlane.f32.xlu0 %v1928
        %v1930 = vpop.xlane.xlu0 %1929
        %v1931 = vrcp.pop 16.0
        %v1932 = vmul.f32 %v1927, %v1931
        %v1933 = vmul.f32 %v1930, %v1931
        %v1934 = vsub.f32 %v1923, %v1932
        %v1935 = vsub.f32 %v1924, %v1933
        %v1936 = vmul.f32 %v1934, %v1934
        %v1937 = vmul.f32 %v1935, %v1935
        %v1938 = vsel %vm689, %v1936, 0.0
        %1939 = vadd.xlane.f32.xlu0 %v1938
        %v1940 = vpop.xlane.xlu0 %1939
        %v1941 = vsel %vm689, %v1937, 0.0
        %1942 = vadd.xlane.f32.xlu0 %v1941
        %v1943 = vpop.xlane.xlu0 %1942
        %v1944 = vmul.f32 %v1940, %v1931
        %v1945 = vmul.f32 %v1943, %v1931
        %v1946 = vadd.f32 %v1944, 1e-05
        %v1947 = vadd.f32 %v1945, 1e-05
        %v1948 = vrsqrt.pop %v1946
        %v1949 = vrsqrt.pop %v1947
        %v1950 = vmul.f32 %v1934, %v1948
        %v1951 = vmul.f32 %v1935, %v1949
        %v1952 = vlaneseq
        %v1953 = vshrl.u32 %v1952, 7
        %v1954 = vsub.s32 1, %v1953
        %v1955 = vrot.slane %v679, %v1954
        %v1956 = vmul.f32 %v1950, %v1955
        %v1957 = vmul.f32 %v1951, %v1955
        %v1958 = vlaneseq
        %v1959 = vshrl.u32 %v1958, 7
        %v1960 = vsub.s32 2, %v1959
        %v1961 = vrot.slane %v679, %v1960
        %v1962 = vadd.f32 %v1956, %v1961
        %v1963 = vadd.f32 %v1957, %v1961
        %v1964 = vld [vmem:[%s8] sm:$0xff]
        %v1965 = vld [vmem:[%s8 + $0x8] sm:$0xff]
        %v1966 = vld [vmem:[%s9] sm:$0x1]
        %v1968 = vlaneseq
        %v1969 = vshrl.u32 %v1968, 7
        %v1970 = vsub.s32 0, %v1969
        %v1971 = vrot.slane %v1966, %v1970
        %v1974 = vsel %vm689, %v1962, 0
        %v1977 = vsel %vm689, %v1963, 0
        %1979 = vmatprep.subr.mxu0 0.0
        %1980 = vmatpush1.msra.mxu0 %v1964
        %1981 = vmatprep.subr.mxu0 0.0
        %1982 = vmatpush1.msra.mxu0 %v1965
        %1983 = vmatprep.subr.mxu0 0.0
        %1984 = vmatpush1.msra.mxu0 0.0
        %1985 = vmatprep.subr.mxu0 0.0
        %1986 = vmatpush1.msra.mxu0 0.0
        %1987 = vmatprep.subr.mxu0 0.0
        %1988 = vmatpush1.msra.mxu0 0.0
        %1989 = vmatprep.subr.mxu0 0.0
        %1990 = vmatpush1.msra.mxu0 0.0
        %1991 = vmatprep.subr.mxu0 0.0
        %1992 = vmatpush1.msra.mxu0 0.0
        %1993 = vmatprep.subr.mxu0 0.0
        %1994 = vmatpush1.msra.mxu0 0.0
        %1995 = vmatprep.subr.mxu0 0.0
        %1996 = vmatpush1.msra.mxu0 0.0
        %1997 = vmatprep.subr.mxu0 0.0
        %1998 = vmatpush1.msra.mxu0 0.0
        %1999 = vmatprep.subr.mxu0 0.0
        %2000 = vmatpush1.msra.mxu0 0.0
        %2001 = vmatprep.subr.mxu0 0.0
        %2002 = vmatpush1.msra.mxu0 0.0
        %2003 = vmatprep.subr.mxu0 0.0
        %2004 = vmatpush1.msra.mxu0 0.0
        %2005 = vmatprep.subr.mxu0 0.0
        %2006 = vmatpush1.msra.mxu0 0.0
        %2007 = vmatprep.subr.mxu0 0.0
        %2008 = vmatpush1.msra.mxu0 0.0
        %2009 = vmatprep.subr.mxu0 0.0
        %2010 = vmatpush1.msra.mxu0 0.0
        %2011 = vmatprep.subr.mxu0 0.0
        %2012 = vmatpush1.msra.mxu0 0.0
        %2013 = vmatprep.subr.mxu0 0.0
        %2014 = vmatpush1.msra.mxu0 0.0
        %2015 = vmatprep.subr.mxu0 0.0
        %2016 = vmatpush1.msra.mxu0 0.0
        %2017 = vmatprep.subr.mxu0 0.0
        %2018 = vmatpush1.msra.mxu0 0.0
        %2019 = vmatprep.subr.mxu0 0.0
        %2020 = vmatpush1.msra.mxu0 0.0
        %2021 = vmatprep.subr.mxu0 0.0
        %2022 = vmatpush1.msra.mxu0 0.0
        %2023 = vmatprep.subr.mxu0 0.0
        %2024 = vmatpush1.msra.mxu0 0.0
        %2025 = vmatprep.subr.mxu0 0.0
        %2026 = vmatpush1.msra.mxu0 0.0
        %2027 = vmatprep.subr.mxu0 0.0
        %2028 = vmatpush1.msra.mxu0 0.0
        %2029 = vmatprep.subr.mxu0 0.0
        %2030 = vmatpush1.msra.mxu0 0.0
        %2031 = vmatprep.subr.mxu0 0.0
        %2032 = vmatpush1.msra.mxu0 0.0
        %2033 = vmatprep.subr.mxu0 0.0
        %2034 = vmatpush1.msra.mxu0 0.0
        %2035 = vmatprep.subr.mxu0 0.0
        %2036 = vmatpush1.msra.mxu0 0.0
        %2037 = vmatprep.subr.mxu0 0.0
        %2038 = vmatpush1.msra.mxu0 0.0
        %2039 = vmatprep.subr.mxu0 0.0
        %2040 = vmatpush1.msra.mxu0 0.0
        %2041 = vmatprep.subr.mxu0 0.0
        %2042 = vmatpush1.msra.mxu0 0.0
        %2043 = vmatprep.mubr.f32.mxu0 0.0
        %2044 = vmatmul.mubr.f32.gmra.mrb[0].mxu0 %v1974
        %v2045 = vpop.f32.mrb[0].mxu0
        %v2046 = vadd.f32 %v1971, %v2045
        %v2047 = vpop.f32.mrb[0].mxu0
        %2048 = vmatprep.mubr.f32.mxu0 0.0
        %2049 = vmatmul.mubr.f32.gmra.mrb[0].mxu0 %v1977
        %v2050 = vpop.f32.mrb[0].mxu0
        %v2051 = vadd.f32 %v1971, %v2050
        %v2052 = vpop.f32.mrb[0].mxu0
        %2053 = vdwg.mxu0
        %v2054 = vmax.f32 %v2046, 0.0
        %v2055 = vmax.f32 %v2051, 0.0
        %v2056 = vld [vmem:[%s10] sm:$0xff]
        %v2057 = vld [vmem:[%s10 + $0x8] sm:$0xff]
        %v2058 = vld [vmem:[%s10 + $0x10] sm:$0xff]
        %v2059 = vld [vmem:[%s10 + $0x18] sm:$0xff]
        %v2060 = vlaneseq
        %v2061 = vshrl.u32 %v2060, 7
        %v2062 = vsub.s32 3, %v2061
        %v2063 = vrot.slane %v679, %v2062
        %vm2064 = vcmask 261120
        %v2066 = vsel %vm2064, %v2054, 0
        %v2069 = vsel %vm2064, %v2055, 0
        %2071 = vmatprep.subr.mxu0 0.0
        %2072 = vmatpush1.msra.mxu0 %v2056
        %2073 = vmatprep.subr.mxu0 0.0
        %2074 = vmatpush1.msra.mxu0 %v2057
        %2075 = vmatprep.subr.mxu0 0.0
        %2076 = vmatpush1.msra.mxu0 %v2058
        %2077 = vmatprep.subr.mxu0 0.0
        %2078 = vmatpush1.msra.mxu0 %v2059
        %2079 = vmatprep.subr.mxu0 0.0
        %2080 = vmatpush1.msra.mxu0 0.0
        %2081 = vmatprep.subr.mxu0 0.0
        %2082 = vmatpush1.msra.mxu0 0.0
        %2083 = vmatprep.subr.mxu0 0.0
        %2084 = vmatpush1.msra.mxu0 0.0
        %2085 = vmatprep.subr.mxu0 0.0
        %2086 = vmatpush1.msra.mxu0 0.0
        %2087 = vmatprep.subr.mxu0 0.0
        %2088 = vmatpush1.msra.mxu0 0.0
        %2089 = vmatprep.subr.mxu0 0.0
        %2090 = vmatpush1.msra.mxu0 0.0
        %2091 = vmatprep.subr.mxu0 0.0
        %2092 = vmatpush1.msra.mxu0 0.0
        %2093 = vmatprep.subr.mxu0 0.0
        %2094 = vmatpush1.msra.mxu0 0.0
        %2095 = vmatprep.subr.mxu0 0.0
        %2096 = vmatpush1.msra.mxu0 0.0
        %2097 = vmatprep.subr.mxu0 0.0
        %2098 = vmatpush1.msra.mxu0 0.0
        %2099 = vmatprep.subr.mxu0 0.0
        %2100 = vmatpush1.msra.mxu0 0.0
        %2101 = vmatprep.subr.mxu0 0.0
        %2102 = vmatpush1.msra.mxu0 0.0
        %2103 = vmatprep.subr.mxu0 0.0
        %2104 = vmatpush1.msra.mxu0 0.0
        %2105 = vmatprep.subr.mxu0 0.0
        %2106 = vmatpush1.msra.mxu0 0.0
        %2107 = vmatprep.subr.mxu0 0.0
        %2108 = vmatpush1.msra.mxu0 0.0
        %2109 = vmatprep.subr.mxu0 0.0
        %2110 = vmatpush1.msra.mxu0 0.0
        %2111 = vmatprep.subr.mxu0 0.0
        %2112 = vmatpush1.msra.mxu0 0.0
        %2113 = vmatprep.subr.mxu0 0.0
        %2114 = vmatpush1.msra.mxu0 0.0
        %2115 = vmatprep.subr.mxu0 0.0
        %2116 = vmatpush1.msra.mxu0 0.0
        %2117 = vmatprep.subr.mxu0 0.0
        %2118 = vmatpush1.msra.mxu0 0.0
        %2119 = vmatprep.subr.mxu0 0.0
        %2120 = vmatpush1.msra.mxu0 0.0
        %2121 = vmatprep.subr.mxu0 0.0
        %2122 = vmatpush1.msra.mxu0 0.0
        %2123 = vmatprep.subr.mxu0 0.0
        %2124 = vmatpush1.msra.mxu0 0.0
        %2125 = vmatprep.subr.mxu0 0.0
        %2126 = vmatpush1.msra.mxu0 0.0
        %2127 = vmatprep.subr.mxu0 0.0
        %2128 = vmatpush1.msra.mxu0 0.0
        %2129 = vmatprep.subr.mxu0 0.0
        %2130 = vmatpush1.msra.mxu0 0.0
        %2131 = vmatprep.subr.mxu0 0.0
        %2132 = vmatpush1.msra.mxu0 0.0
        %2133 = vmatprep.subr.mxu0 0.0
        %2134 = vmatpush1.msra.mxu0 0.0
        %2135 = vmatprep.mubr.f32.mxu0 0.0
        %2136 = vmatmul.mubr.f32.gmra.mrb[0].mxu0 %v2066
        %v2137 = vpop.f32.mrb[0].mxu0
        %v2138 = vadd.f32 %v2063, %v2137
        %v2139 = vpop.f32.mrb[0].mxu0
        %2140 = vmatprep.mubr.f32.mxu0 0.0
        %2141 = vmatmul.mubr.f32.gmra.mrb[0].mxu0 %v2069
        %v2142 = vpop.f32.mrb[0].mxu0
        %v2143 = vadd.f32 %v2063, %v2142
        %v2144 = vpop.f32.mrb[0].mxu0
        %2145 = vdwg.mxu0
        %v2146 = vadd.f32 %v1962, %v2138
        %v2147 = vadd.f32 %v1963, %v2143
        %v2148 = vsel %vm689, %v2146, 0.0
        %2149 = vadd.xlane.f32.xlu0 %v2148
        %v2150 = vpop.xlane.xlu0 %2149
        %v2151 = vsel %vm689, %v2147, 0.0
        %2152 = vadd.xlane.f32.xlu0 %v2151
        %v2153 = vpop.xlane.xlu0 %2152
        %v2154 = vmul.f32 %v2150, %v1931
        %v2155 = vmul.f32 %v2153, %v1931
        %v2156 = vsub.f32 %v2146, %v2154
        %v2157 = vsub.f32 %v2147, %v2155
        %v2158 = vmul.f32 %v2156, %v2156
        %v2159 = vmul.f32 %v2157, %v2157
        %v2160 = vsel %vm689, %v2158, 0.0
        %2161 = vadd.xlane.f32.xlu0 %v2160
        %v2162 = vpop.xlane.xlu0 %2161
        %v2163 = vsel %vm689, %v2159, 0.0
        %2164 = vadd.xlane.f32.xlu0 %v2163
        %v2165 = vpop.xlane.xlu0 %2164
        %v2166 = vmul.f32 %v2162, %v1931
        %v2167 = vmul.f32 %v2165, %v1931
        %v2168 = vadd.f32 %v2166, 1e-05
        %v2169 = vadd.f32 %v2167, 1e-05
        %v2170 = vrsqrt.pop %v2168
        %v2171 = vrsqrt.pop %v2169
        %v2172 = vmul.f32 %v2156, %v2170
        %v2173 = vmul.f32 %v2157, %v2171
        %v2174 = vlaneseq
        %v2175 = vshrl.u32 %v2174, 7
        %v2176 = vsub.s32 4, %v2175
        %v2177 = vrot.slane %v679, %v2176
        %v2178 = vmul.f32 %v2172, %v2177
        %v2179 = vmul.f32 %v2173, %v2177
        %v2180 = vlaneseq
        %v2181 = vshrl.u32 %v2180, 7
        %v2182 = vsub.s32 5, %v2181
        %v2183 = vrot.slane %v679, %v2182
        %v2184 = vadd.f32 %v2178, %v2183
        %v2185 = vadd.f32 %v2179, %v2183
        %s2186 = scalar_lea.vmem %s11, 8
        %v2187 = vld [vmem:[%s2186] sm:$0x3f]
        %s2188 = scalar_lea.vmem %s5, 16
        %v2189 = vld [vmem:[%s2188] sm:$0xff]
        %v2190 = vld [vmem:[%s2188 + $0x8] sm:$0xff]
        %s2191 = scalar_lea.vmem %s6, 1
        %v2192 = vld [vmem:[%s2191] sm:$0x1]
        %v2194 = vlaneseq
        %v2195 = vshrl.u32 %v2194, 7
        %v2196 = vsub.s32 0, %v2195
        %v2197 = vrot.slane %v2192, %v2196
        %v2200 = vsel %vm689, %v2184, 0
        %v2203 = vsel %vm689, %v2185, 0
        %2205 = vmatprep.subr.mxu0 0.0
        %2206 = vmatpush1.msra.mxu0 %v2189
        %2207 = vmatprep.subr.mxu0 0.0
        %2208 = vmatpush1.msra.mxu0 %v2190
        %2209 = vmatprep.subr.mxu0 0.0
        %2210 = vmatpush1.msra.mxu0 0.0
        %2211 = vmatprep.subr.mxu0 0.0
        %2212 = vmatpush1.msra.mxu0 0.0
        %2213 = vmatprep.subr.mxu0 0.0
        %2214 = vmatpush1.msra.mxu0 0.0
        %2215 = vmatprep.subr.mxu0 0.0
        %2216 = vmatpush1.msra.mxu0 0.0
        %2217 = vmatprep.subr.mxu0 0.0
        %2218 = vmatpush1.msra.mxu0 0.0
        %2219 = vmatprep.subr.mxu0 0.0
        %2220 = vmatpush1.msra.mxu0 0.0
        %2221 = vmatprep.subr.mxu0 0.0
        %2222 = vmatpush1.msra.mxu0 0.0
        %2223 = vmatprep.subr.mxu0 0.0
        %2224 = vmatpush1.msra.mxu0 0.0
        %2225 = vmatprep.subr.mxu0 0.0
        %2226 = vmatpush1.msra.mxu0 0.0
        %2227 = vmatprep.subr.mxu0 0.0
        %2228 = vmatpush1.msra.mxu0 0.0
        %2229 = vmatprep.subr.mxu0 0.0
        %2230 = vmatpush1.msra.mxu0 0.0
        %2231 = vmatprep.subr.mxu0 0.0
        %2232 = vmatpush1.msra.mxu0 0.0
        %2233 = vmatprep.subr.mxu0 0.0
        %2234 = vmatpush1.msra.mxu0 0.0
        %2235 = vmatprep.subr.mxu0 0.0
        %2236 = vmatpush1.msra.mxu0 0.0
        %2237 = vmatprep.subr.mxu0 0.0
        %2238 = vmatpush1.msra.mxu0 0.0
        %2239 = vmatprep.subr.mxu0 0.0
        %2240 = vmatpush1.msra.mxu0 0.0
        %2241 = vmatprep.subr.mxu0 0.0
        %2242 = vmatpush1.msra.mxu0 0.0
        %2243 = vmatprep.subr.mxu0 0.0
        %2244 = vmatpush1.msra.mxu0 0.0
        %2245 = vmatprep.subr.mxu0 0.0
        %2246 = vmatpush1.msra.mxu0 0.0
        %2247 = vmatprep.subr.mxu0 0.0
        %2248 = vmatpush1.msra.mxu0 0.0
        %2249 = vmatprep.subr.mxu0 0.0
        %2250 = vmatpush1.msra.mxu0 0.0
        %2251 = vmatprep.subr.mxu0 0.0
        %2252 = vmatpush1.msra.mxu0 0.0
        %2253 = vmatprep.subr.mxu0 0.0
        %2254 = vmatpush1.msra.mxu0 0.0
        %2255 = vmatprep.subr.mxu0 0.0
        %2256 = vmatpush1.msra.mxu0 0.0
        %2257 = vmatprep.subr.mxu0 0.0
        %2258 = vmatpush1.msra.mxu0 0.0
        %2259 = vmatprep.subr.mxu0 0.0
        %2260 = vmatpush1.msra.mxu0 0.0
        %2261 = vmatprep.subr.mxu0 0.0
        %2262 = vmatpush1.msra.mxu0 0.0
        %2263 = vmatprep.subr.mxu0 0.0
        %2264 = vmatpush1.msra.mxu0 0.0
        %2265 = vmatprep.subr.mxu0 0.0
        %2266 = vmatpush1.msra.mxu0 0.0
        %2267 = vmatprep.subr.mxu0 0.0
        %2268 = vmatpush1.msra.mxu0 0.0
        %2269 = vmatprep.mubr.f32.mxu0 0.0
        %2270 = vmatmul.mubr.f32.gmra.mrb[0].mxu0 %v2200
        %v2271 = vpop.f32.mrb[0].mxu0
        %v2272 = vadd.f32 %v2197, %v2271
        %v2273 = vpop.f32.mrb[0].mxu0
        %2274 = vmatprep.mubr.f32.mxu0 0.0
        %2275 = vmatmul.mubr.f32.gmra.mrb[0].mxu0 %v2203
        %v2276 = vpop.f32.mrb[0].mxu0
        %v2277 = vadd.f32 %v2197, %v2276
        %v2278 = vpop.f32.mrb[0].mxu0
        %2279 = vdwg.mxu0
        %v2280 = vmul.f32 %v2272, 0.5
        %v2281 = vmul.f32 %v2277, 0.5
        %s2282 = scalar_lea.vmem %s7, 16
        %v2283 = vld [vmem:[%s2282] sm:$0xff]
        %v2284 = vld [vmem:[%s2282 + $0x8] sm:$0xff]
        %2287 = vrot.lane.b32.xlu0 %v2272, 112
        %v2288 = vpop.permute.xlu0 %2287
        %2289 = vrot.lane.b32.xlu0 %v2277, 112
        %v2290 = vpop.permute.xlu0 %2289
        %v2292 = vsel %vm781, %v2280, 0
        %v2295 = vsel %vm781, %v2281, 0
        %v2297 = vsel %vm781, %v2288, 0
        %v2299 = vsel %vm781, %v2290, 0
        %2301 = vmatprep.subr.mxu0 0.0
        %2302 = vmatpush1.xpose.msra.mxu0 %v2297
        %2303 = vmatprep.subr.mxu0 0.0
        %2304 = vmatpush1.xpose.msra.mxu0 %v2299
        %2305 = vmatprep.subr.mxu0 0.0
        %2306 = vmatpush1.xpose.msra.mxu0 0.0
        %2307 = vmatprep.subr.mxu0 0.0
        %2308 = vmatpush1.xpose.msra.mxu0 0.0
        %2309 = vmatprep.subr.mxu0 0.0
        %2310 = vmatpush1.xpose.msra.mxu0 0.0
        %2311 = vmatprep.subr.mxu0 0.0
        %2312 = vmatpush1.xpose.msra.mxu0 0.0
        %2313 = vmatprep.subr.mxu0 0.0
        %2314 = vmatpush1.xpose.msra.mxu0 0.0
        %2315 = vmatprep.subr.mxu0 0.0
        %2316 = vmatpush1.xpose.msra.mxu0 0.0
        %2317 = vmatprep.subr.mxu0 0.0
        %2318 = vmatpush1.xpose.msra.mxu0 0.0
        %2319 = vmatprep.subr.mxu0 0.0
        %2320 = vmatpush1.xpose.msra.mxu0 0.0
        %2321 = vmatprep.subr.mxu0 0.0
        %2322 = vmatpush1.xpose.msra.mxu0 0.0
        %2323 = vmatprep.subr.mxu0 0.0
        %2324 = vmatpush1.xpose.msra.mxu0 0.0
        %2325 = vmatprep.subr.mxu0 0.0
        %2326 = vmatpush1.xpose.msra.mxu0 0.0
        %2327 = vmatprep.subr.mxu0 0.0
        %2328 = vmatpush1.xpose.msra.mxu0 0.0
        %2329 = vmatprep.subr.mxu0 0.0
        %2330 = vmatpush1.xpose.msra.mxu0 0.0
        %2331 = vmatprep.subr.mxu0 0.0
        %2332 = vmatpush1.xpose.msra.mxu0 0.0
        %2333 = vmatprep.subr.mxu0 0.0
        %2334 = vmatpush1.xpose.msra.mxu0 0.0
        %2335 = vmatprep.subr.mxu0 0.0
        %2336 = vmatpush1.xpose.msra.mxu0 0.0
        %2337 = vmatprep.subr.mxu0 0.0
        %2338 = vmatpush1.xpose.msra.mxu0 0.0
        %2339 = vmatprep.subr.mxu0 0.0
        %2340 = vmatpush1.xpose.msra.mxu0 0.0
        %2341 = vmatprep.subr.mxu0 0.0
        %2342 = vmatpush1.xpose.msra.mxu0 0.0
        %2343 = vmatprep.subr.mxu0 0.0
        %2344 = vmatpush1.xpose.msra.mxu0 0.0
        %2345 = vmatprep.subr.mxu0 0.0
        %2346 = vmatpush1.xpose.msra.mxu0 0.0
        %2347 = vmatprep.subr.mxu0 0.0
        %2348 = vmatpush1.xpose.msra.mxu0 0.0
        %2349 = vmatprep.subr.mxu0 0.0
        %2350 = vmatpush1.xpose.msra.mxu0 0.0
        %2351 = vmatprep.subr.mxu0 0.0
        %2352 = vmatpush1.xpose.msra.mxu0 0.0
        %2353 = vmatprep.subr.mxu0 0.0
        %2354 = vmatpush1.xpose.msra.mxu0 0.0
        %2355 = vmatprep.subr.mxu0 0.0
        %2356 = vmatpush1.xpose.msra.mxu0 0.0
        %2357 = vmatprep.subr.mxu0 0.0
        %2358 = vmatpush1.xpose.msra.mxu0 0.0
        %2359 = vmatprep.subr.mxu0 0.0
        %2360 = vmatpush1.xpose.msra.mxu0 0.0
        %2361 = vmatprep.subr.mxu0 0.0
        %2362 = vmatpush1.xpose.msra.mxu0 0.0
        %2363 = vmatprep.subr.mxu0 0.0
        %2364 = vmatpush1.xpose.msra.mxu0 0.0
        %2365 = vmatprep.mubr.f32.mxu0 0.0
        %2366 = vmatmul.mubr.f32.gmra.mrb[0].mxu0 %v2292
        %v2367 = vpop.f32.mrb[0].mxu0
        %v2368 = vadd.f32 %v672, %v2367
        %v2369 = vpop.f32.mrb[0].mxu0
        %2370 = vmatprep.mubr.f32.mxu0 0.0
        %2371 = vmatmul.mubr.f32.gmra.mrb[0].mxu0 %v2295
        %v2372 = vpop.f32.mrb[0].mxu0
        %v2373 = vadd.f32 %v672, %v2372
        %v2374 = vpop.f32.mrb[0].mxu0
        %2375 = vdwg.mxu0
        %v2376 = vsel %vm689, %v2368, -inf
        %2377 = vmax.xlane.f32.xlu0 %v2376
        %v2378 = vpop.xlane.xlu0 %2377
        %v2379 = vsel %vm689, %v2373, -inf
        %2380 = vmax.xlane.f32.xlu0 %v2379
        %v2381 = vpop.xlane.xlu0 %2380
        %v2382 = vsub.f32 %v2368, %v2378
        %v2383 = vsub.f32 %v2373, %v2381
        %v2384 = vmul.f32 %v2382, 1.442695
        %v2385 = vpow.pop %v2384
        %v2386 = vmul.f32 %v2383, 1.442695
        %v2387 = vpow.pop %v2386
        %v2388 = vsel %vm689, %v2385, 0.0
        %2389 = vadd.xlane.f32.xlu0 %v2388
        %v2390 = vpop.xlane.xlu0 %2389
        %v2391 = vsel %vm689, %v2387, 0.0
        %2392 = vadd.xlane.f32.xlu0 %v2391
        %v2393 = vpop.xlane.xlu0 %2392
        %v2394 = vrcp.pop %v2390
        %v2395 = vrcp.pop %v2393
        %v2396 = vmul.f32 %v2385, %v2394
        %v2397 = vmul.f32 %v2387, %v2395
        %2398 = vrot.lane.b32.xlu0 %v2272, 96
        %v2399 = vpop.permute.xlu0 %2398
        %2400 = vrot.lane.b32.xlu0 %v2277, 96
        %v2401 = vpop.permute.xlu0 %2400
        %v2405 = vsel %vm689, %v2396, 0
        %v2408 = vsel %vm689, %v2397, 0
        %2410 = vmatprep.subr.mxu0 0.0
        %2411 = vmatpush1.msra.mxu0 %v2399
        %2412 = vmatprep.subr.mxu0 0.0
        %2413 = vmatpush1.msra.mxu0 %v2401
        %2414 = vmatprep.subr.mxu0 0.0
        %2415 = vmatpush1.msra.mxu0 0.0
        %2416 = vmatprep.subr.mxu0 0.0
        %2417 = vmatpush1.msra.mxu0 0.0
        %2418 = vmatprep.subr.mxu0 0.0
        %2419 = vmatpush1.msra.mxu0 0.0
        %2420 = vmatprep.subr.mxu0 0.0
        %2421 = vmatpush1.msra.mxu0 0.0
        %2422 = vmatprep.subr.mxu0 0.0
        %2423 = vmatpush1.msra.mxu0 0.0
        %2424 = vmatprep.subr.mxu0 0.0
        %2425 = vmatpush1.msra.mxu0 0.0
        %2426 = vmatprep.subr.mxu0 0.0
        %2427 = vmatpush1.msra.mxu0 0.0
        %2428 = vmatprep.subr.mxu0 0.0
        %2429 = vmatpush1.msra.mxu0 0.0
        %2430 = vmatprep.subr.mxu0 0.0
        %2431 = vmatpush1.msra.mxu0 0.0
        %2432 = vmatprep.subr.mxu0 0.0
        %2433 = vmatpush1.msra.mxu0 0.0
        %2434 = vmatprep.subr.mxu0 0.0
        %2435 = vmatpush1.msra.mxu0 0.0
        %2436 = vmatprep.subr.mxu0 0.0
        %2437 = vmatpush1.msra.mxu0 0.0
        %2438 = vmatprep.subr.mxu0 0.0
        %2439 = vmatpush1.msra.mxu0 0.0
        %2440 = vmatprep.subr.mxu0 0.0
        %2441 = vmatpush1.msra.mxu0 0.0
        %2442 = vmatprep.subr.mxu0 0.0
        %2443 = vmatpush1.msra.mxu0 0.0
        %2444 = vmatprep.subr.mxu0 0.0
        %2445 = vmatpush1.msra.mxu0 0.0
        %2446 = vmatprep.subr.mxu0 0.0
        %2447 = vmatpush1.msra.mxu0 0.0
        %2448 = vmatprep.subr.mxu0 0.0
        %2449 = vmatpush1.msra.mxu0 0.0
        %2450 = vmatprep.subr.mxu0 0.0
        %2451 = vmatpush1.msra.mxu0 0.0
        %2452 = vmatprep.subr.mxu0 0.0
        %2453 = vmatpush1.msra.mxu0 0.0
        %2454 = vmatprep.subr.mxu0 0.0
        %2455 = vmatpush1.msra.mxu0 0.0
        %2456 = vmatprep.subr.mxu0 0.0
        %2457 = vmatpush1.msra.mxu0 0.0
        %2458 = vmatprep.subr.mxu0 0.0
        %2459 = vmatpush1.msra.mxu0 0.0
        %2460 = vmatprep.subr.mxu0 0.0
        %2461 = vmatpush1.msra.mxu0 0.0
        %2462 = vmatprep.subr.mxu0 0.0
        %2463 = vmatpush1.msra.mxu0 0.0
        %2464 = vmatprep.subr.mxu0 0.0
        %2465 = vmatpush1.msra.mxu0 0.0
        %2466 = vmatprep.subr.mxu0 0.0
        %2467 = vmatpush1.msra.mxu0 0.0
        %2468 = vmatprep.subr.mxu0 0.0
        %2469 = vmatpush1.msra.mxu0 0.0
        %2470 = vmatprep.subr.mxu0 0.0
        %2471 = vmatpush1.msra.mxu0 0.0
        %2472 = vmatprep.subr.mxu0 0.0
        %2473 = vmatpush1.msra.mxu0 0.0
        %2474 = vmatprep.mubr.f32.mxu0 0.0
        %2475 = vmatmul.mubr.f32.gmra.mrb[0].mxu0 %v2405
        %v2476 = vpop.f32.mrb[0].mxu0
        %v2477 = vadd.f32 0.0, %v2476
        %v2478 = vpop.f32.mrb[0].mxu0
        %2479 = vmatprep.mubr.f32.mxu0 0.0
        %2480 = vmatmul.mubr.f32.gmra.mrb[0].mxu0 %v2408
        %v2481 = vpop.f32.mrb[0].mxu0
        %v2482 = vadd.f32 0.0, %v2481
        %v2483 = vpop.f32.mrb[0].mxu0
        %2484 = vdwg.mxu0
        %2485 = vrot.lane.b32.xlu0 %v2280, 124
        %v2486 = vpop.permute.xlu0 %2485
        %2487 = vrot.lane.b32.xlu0 %v2281, 124
        %v2488 = vpop.permute.xlu0 %2487
        %2489 = vrot.lane.b32.xlu0 %v2272, 108
        %v2490 = vpop.permute.xlu0 %2489
        %2491 = vrot.lane.b32.xlu0 %v2277, 108
        %v2492 = vpop.permute.xlu0 %2491
        %v2493 = vsel %vm781, %v2486, 0
        %v2495 = vsel %vm781, %v2488, 0
        %v2497 = vsel %vm781, %v2490, 0
        %v2499 = vsel %vm781, %v2492, 0
        %2501 = vmatprep.subr.mxu0 0.0
        %2502 = vmatpush1.xpose.msra.mxu0 %v2497
        %2503 = vmatprep.subr.mxu0 0.0
        %2504 = vmatpush1.xpose.msra.mxu0 %v2499
        %2505 = vmatprep.subr.mxu0 0.0
        %2506 = vmatpush1.xpose.msra.mxu0 0.0
        %2507 = vmatprep.subr.mxu0 0.0
        %2508 = vmatpush1.xpose.msra.mxu0 0.0
        %2509 = vmatprep.subr.mxu0 0.0
        %2510 = vmatpush1.xpose.msra.mxu0 0.0
        %2511 = vmatprep.subr.mxu0 0.0
        %2512 = vmatpush1.xpose.msra.mxu0 0.0
        %2513 = vmatprep.subr.mxu0 0.0
        %2514 = vmatpush1.xpose.msra.mxu0 0.0
        %2515 = vmatprep.subr.mxu0 0.0
        %2516 = vmatpush1.xpose.msra.mxu0 0.0
        %2517 = vmatprep.subr.mxu0 0.0
        %2518 = vmatpush1.xpose.msra.mxu0 0.0
        %2519 = vmatprep.subr.mxu0 0.0
        %2520 = vmatpush1.xpose.msra.mxu0 0.0
        %2521 = vmatprep.subr.mxu0 0.0
        %2522 = vmatpush1.xpose.msra.mxu0 0.0
        %2523 = vmatprep.subr.mxu0 0.0
        %2524 = vmatpush1.xpose.msra.mxu0 0.0
        %2525 = vmatprep.subr.mxu0 0.0
        %2526 = vmatpush1.xpose.msra.mxu0 0.0
        %2527 = vmatprep.subr.mxu0 0.0
        %2528 = vmatpush1.xpose.msra.mxu0 0.0
        %2529 = vmatprep.subr.mxu0 0.0
        %2530 = vmatpush1.xpose.msra.mxu0 0.0
        %2531 = vmatprep.subr.mxu0 0.0
        %2532 = vmatpush1.xpose.msra.mxu0 0.0
        %2533 = vmatprep.subr.mxu0 0.0
        %2534 = vmatpush1.xpose.msra.mxu0 0.0
        %2535 = vmatprep.subr.mxu0 0.0
        %2536 = vmatpush1.xpose.msra.mxu0 0.0
        %2537 = vmatprep.subr.mxu0 0.0
        %2538 = vmatpush1.xpose.msra.mxu0 0.0
        %2539 = vmatprep.subr.mxu0 0.0
        %2540 = vmatpush1.xpose.msra.mxu0 0.0
        %2541 = vmatprep.subr.mxu0 0.0
        %2542 = vmatpush1.xpose.msra.mxu0 0.0
        %2543 = vmatprep.subr.mxu0 0.0
        %2544 = vmatpush1.xpose.msra.mxu0 0.0
        %2545 = vmatprep.subr.mxu0 0.0
        %2546 = vmatpush1.xpose.msra.mxu0 0.0
        %2547 = vmatprep.subr.mxu0 0.0
        %2548 = vmatpush1.xpose.msra.mxu0 0.0
        %2549 = vmatprep.subr.mxu0 0.0
        %2550 = vmatpush1.xpose.msra.mxu0 0.0
        %2551 = vmatprep.subr.mxu0 0.0
        %2552 = vmatpush1.xpose.msra.mxu0 0.0
        %2553 = vmatprep.subr.mxu0 0.0
        %2554 = vmatpush1.xpose.msra.mxu0 0.0
        %2555 = vmatprep.subr.mxu0 0.0
        %2556 = vmatpush1.xpose.msra.mxu0 0.0
        %2557 = vmatprep.subr.mxu0 0.0
        %2558 = vmatpush1.xpose.msra.mxu0 0.0
        %2559 = vmatprep.subr.mxu0 0.0
        %2560 = vmatpush1.xpose.msra.mxu0 0.0
        %2561 = vmatprep.subr.mxu0 0.0
        %2562 = vmatpush1.xpose.msra.mxu0 0.0
        %2563 = vmatprep.subr.mxu0 0.0
        %2564 = vmatpush1.xpose.msra.mxu0 0.0
        %2565 = vmatprep.mubr.f32.mxu0 0.0
        %2566 = vmatmul.mubr.f32.gmra.mrb[0].mxu0 %v2493
        %v2567 = vpop.f32.mrb[0].mxu0
        %v2568 = vadd.f32 %v672, %v2567
        %v2569 = vpop.f32.mrb[0].mxu0
        %2570 = vmatprep.mubr.f32.mxu0 0.0
        %2571 = vmatmul.mubr.f32.gmra.mrb[0].mxu0 %v2495
        %v2572 = vpop.f32.mrb[0].mxu0
        %v2573 = vadd.f32 %v672, %v2572
        %v2574 = vpop.f32.mrb[0].mxu0
        %2575 = vdwg.mxu0
        %v2576 = vsel %vm689, %v2568, -inf
        %2577 = vmax.xlane.f32.xlu0 %v2576
        %v2578 = vpop.xlane.xlu0 %2577
        %v2579 = vsel %vm689, %v2573, -inf
        %2580 = vmax.xlane.f32.xlu0 %v2579
        %v2581 = vpop.xlane.xlu0 %2580
        %v2582 = vsub.f32 %v2568, %v2578
        %v2583 = vsub.f32 %v2573, %v2581
        %v2584 = vmul.f32 %v2582, 1.442695
        %v2585 = vpow.pop %v2584
        %v2586 = vmul.f32 %v2583, 1.442695
        %v2587 = vpow.pop %v2586
        %v2588 = vsel %vm689, %v2585, 0.0
        %2589 = vadd.xlane.f32.xlu0 %v2588
        %v2590 = vpop.xlane.xlu0 %2589
        %v2591 = vsel %vm689, %v2587, 0.0
        %2592 = vadd.xlane.f32.xlu0 %v2591
        %v2593 = vpop.xlane.xlu0 %2592
        %v2594 = vrcp.pop %v2590
        %v2595 = vrcp.pop %v2593
        %v2596 = vmul.f32 %v2585, %v2594
        %v2597 = vmul.f32 %v2587, %v2595
        %2598 = vrot.lane.b32.xlu0 %v2272, 92
        %v2599 = vpop.permute.xlu0 %2598
        %2600 = vrot.lane.b32.xlu0 %v2277, 92
        %v2601 = vpop.permute.xlu0 %2600
        %v2605 = vsel %vm689, %v2596, 0
        %v2608 = vsel %vm689, %v2597, 0
        %2610 = vmatprep.subr.mxu0 0.0
        %2611 = vmatpush1.msra.mxu0 %v2599
        %2612 = vmatprep.subr.mxu0 0.0
        %2613 = vmatpush1.msra.mxu0 %v2601
        %2614 = vmatprep.subr.mxu0 0.0
        %2615 = vmatpush1.msra.mxu0 0.0
        %2616 = vmatprep.subr.mxu0 0.0
        %2617 = vmatpush1.msra.mxu0 0.0
        %2618 = vmatprep.subr.mxu0 0.0
        %2619 = vmatpush1.msra.mxu0 0.0
        %2620 = vmatprep.subr.mxu0 0.0
        %2621 = vmatpush1.msra.mxu0 0.0
        %2622 = vmatprep.subr.mxu0 0.0
        %2623 = vmatpush1.msra.mxu0 0.0
        %2624 = vmatprep.subr.mxu0 0.0
        %2625 = vmatpush1.msra.mxu0 0.0
        %2626 = vmatprep.subr.mxu0 0.0
        %2627 = vmatpush1.msra.mxu0 0.0
        %2628 = vmatprep.subr.mxu0 0.0
        %2629 = vmatpush1.msra.mxu0 0.0
        %2630 = vmatprep.subr.mxu0 0.0
        %2631 = vmatpush1.msra.mxu0 0.0
        %2632 = vmatprep.subr.mxu0 0.0
        %2633 = vmatpush1.msra.mxu0 0.0
        %2634 = vmatprep.subr.mxu0 0.0
        %2635 = vmatpush1.msra.mxu0 0.0
        %2636 = vmatprep.subr.mxu0 0.0
        %2637 = vmatpush1.msra.mxu0 0.0
        %2638 = vmatprep.subr.mxu0 0.0
        %2639 = vmatpush1.msra.mxu0 0.0
        %2640 = vmatprep.subr.mxu0 0.0
        %2641 = vmatpush1.msra.mxu0 0.0
        %2642 = vmatprep.subr.mxu0 0.0
        %2643 = vmatpush1.msra.mxu0 0.0
        %2644 = vmatprep.subr.mxu0 0.0
        %2645 = vmatpush1.msra.mxu0 0.0
        %2646 = vmatprep.subr.mxu0 0.0
        %2647 = vmatpush1.msra.mxu0 0.0
        %2648 = vmatprep.subr.mxu0 0.0
        %2649 = vmatpush1.msra.mxu0 0.0
        %2650 = vmatprep.subr.mxu0 0.0
        %2651 = vmatpush1.msra.mxu0 0.0
        %2652 = vmatprep.subr.mxu0 0.0
        %2653 = vmatpush1.msra.mxu0 0.0
        %2654 = vmatprep.subr.mxu0 0.0
        %2655 = vmatpush1.msra.mxu0 0.0
        %2656 = vmatprep.subr.mxu0 0.0
        %2657 = vmatpush1.msra.mxu0 0.0
        %2658 = vmatprep.subr.mxu0 0.0
        %2659 = vmatpush1.msra.mxu0 0.0
        %2660 = vmatprep.subr.mxu0 0.0
        %2661 = vmatpush1.msra.mxu0 0.0
        %2662 = vmatprep.subr.mxu0 0.0
        %2663 = vmatpush1.msra.mxu0 0.0
        %2664 = vmatprep.subr.mxu0 0.0
        %2665 = vmatpush1.msra.mxu0 0.0
        %2666 = vmatprep.subr.mxu0 0.0
        %2667 = vmatpush1.msra.mxu0 0.0
        %2668 = vmatprep.subr.mxu0 0.0
        %2669 = vmatpush1.msra.mxu0 0.0
        %2670 = vmatprep.subr.mxu0 0.0
        %2671 = vmatpush1.msra.mxu0 0.0
        %2672 = vmatprep.subr.mxu0 0.0
        %2673 = vmatpush1.msra.mxu0 0.0
        %2674 = vmatprep.mubr.f32.mxu0 0.0
        %2675 = vmatmul.mubr.f32.gmra.mrb[0].mxu0 %v2605
        %v2676 = vpop.f32.mrb[0].mxu0
        %v2677 = vadd.f32 0.0, %v2676
        %v2678 = vpop.f32.mrb[0].mxu0
        %2679 = vmatprep.mubr.f32.mxu0 0.0
        %2680 = vmatmul.mubr.f32.gmra.mrb[0].mxu0 %v2608
        %v2681 = vpop.f32.mrb[0].mxu0
        %v2682 = vadd.f32 0.0, %v2681
        %v2683 = vpop.f32.mrb[0].mxu0
        %2684 = vdwg.mxu0
        %v2686 = vrot.slane %v2283, 4
        %v2688 = vsel %vm781, %v2677, 0
        %v2691 = vsel %vm781, %v2682, 0
        %v2693 = vsel %vm1184, %v2686, 0
        %2695 = vmatprep.subr.mxu0 0.0
        %2696 = vmatpush1.msra.mxu0 %v2693
        %2697 = vmatprep.subr.mxu0 0.0
        %2698 = vmatpush1.msra.mxu0 0.0
        %2699 = vmatprep.subr.mxu0 0.0
        %2700 = vmatpush1.msra.mxu0 0.0
        %2701 = vmatprep.subr.mxu0 0.0
        %2702 = vmatpush1.msra.mxu0 0.0
        %2703 = vmatprep.subr.mxu0 0.0
        %2704 = vmatpush1.msra.mxu0 0.0
        %2705 = vmatprep.subr.mxu0 0.0
        %2706 = vmatpush1.msra.mxu0 0.0
        %2707 = vmatprep.subr.mxu0 0.0
        %2708 = vmatpush1.msra.mxu0 0.0
        %2709 = vmatprep.subr.mxu0 0.0
        %2710 = vmatpush1.msra.mxu0 0.0
        %2711 = vmatprep.subr.mxu0 0.0
        %2712 = vmatpush1.msra.mxu0 0.0
        %2713 = vmatprep.subr.mxu0 0.0
        %2714 = vmatpush1.msra.mxu0 0.0
        %2715 = vmatprep.subr.mxu0 0.0
        %2716 = vmatpush1.msra.mxu0 0.0
        %2717 = vmatprep.subr.mxu0 0.0
        %2718 = vmatpush1.msra.mxu0 0.0
        %2719 = vmatprep.subr.mxu0 0.0
        %2720 = vmatpush1.msra.mxu0 0.0
        %2721 = vmatprep.subr.mxu0 0.0
        %2722 = vmatpush1.msra.mxu0 0.0
        %2723 = vmatprep.subr.mxu0 0.0
        %2724 = vmatpush1.msra.mxu0 0.0
        %2725 = vmatprep.subr.mxu0 0.0
        %2726 = vmatpush1.msra.mxu0 0.0
        %2727 = vmatprep.subr.mxu0 0.0
        %2728 = vmatpush1.msra.mxu0 0.0
        %2729 = vmatprep.subr.mxu0 0.0
        %2730 = vmatpush1.msra.mxu0 0.0
        %2731 = vmatprep.subr.mxu0 0.0
        %2732 = vmatpush1.msra.mxu0 0.0
        %2733 = vmatprep.subr.mxu0 0.0
        %2734 = vmatpush1.msra.mxu0 0.0
        %2735 = vmatprep.subr.mxu0 0.0
        %2736 = vmatpush1.msra.mxu0 0.0
        %2737 = vmatprep.subr.mxu0 0.0
        %2738 = vmatpush1.msra.mxu0 0.0
        %2739 = vmatprep.subr.mxu0 0.0
        %2740 = vmatpush1.msra.mxu0 0.0
        %2741 = vmatprep.subr.mxu0 0.0
        %2742 = vmatpush1.msra.mxu0 0.0
        %2743 = vmatprep.subr.mxu0 0.0
        %2744 = vmatpush1.msra.mxu0 0.0
        %2745 = vmatprep.subr.mxu0 0.0
        %2746 = vmatpush1.msra.mxu0 0.0
        %2747 = vmatprep.subr.mxu0 0.0
        %2748 = vmatpush1.msra.mxu0 0.0
        %2749 = vmatprep.subr.mxu0 0.0
        %2750 = vmatpush1.msra.mxu0 0.0
        %2751 = vmatprep.subr.mxu0 0.0
        %2752 = vmatpush1.msra.mxu0 0.0
        %2753 = vmatprep.subr.mxu0 0.0
        %2754 = vmatpush1.msra.mxu0 0.0
        %2755 = vmatprep.subr.mxu0 0.0
        %2756 = vmatpush1.msra.mxu0 0.0
        %2757 = vmatprep.subr.mxu0 0.0
        %2758 = vmatpush1.msra.mxu0 0.0
        %2759 = vmatprep.mubr.f32.mxu0 0.0
        %2760 = vmatmul.mubr.f32.gmra.mrb[0].mxu0 %v2688
        %v2761 = vpop.f32.mrb[0].mxu0
        %v2762 = vadd.f32 0.0, %v2761
        %v2763 = vpop.f32.mrb[0].mxu0
        %2764 = vmatprep.mubr.f32.mxu0 0.0
        %2765 = vmatmul.mubr.f32.gmra.mrb[0].mxu0 %v2691
        %v2766 = vpop.f32.mrb[0].mxu0
        %v2767 = vadd.f32 0.0, %v2766
        %v2768 = vpop.f32.mrb[0].mxu0
        %2769 = vdwg.mxu0
        %v2771 = vsel %vm781, %v2477, 0
        %v2774 = vsel %vm781, %v2482, 0
        %v2776 = vsel %vm1184, %v2283, 0
        %2778 = vmatprep.subr.mxu0 0.0
        %2779 = vmatpush1.msra.mxu0 %v2776
        %2780 = vmatprep.subr.mxu0 0.0
        %2781 = vmatpush1.msra.mxu0 0.0
        %2782 = vmatprep.subr.mxu0 0.0
        %2783 = vmatpush1.msra.mxu0 0.0
        %2784 = vmatprep.subr.mxu0 0.0
        %2785 = vmatpush1.msra.mxu0 0.0
        %2786 = vmatprep.subr.mxu0 0.0
        %2787 = vmatpush1.msra.mxu0 0.0
        %2788 = vmatprep.subr.mxu0 0.0
        %2789 = vmatpush1.msra.mxu0 0.0
        %2790 = vmatprep.subr.mxu0 0.0
        %2791 = vmatpush1.msra.mxu0 0.0
        %2792 = vmatprep.subr.mxu0 0.0
        %2793 = vmatpush1.msra.mxu0 0.0
        %2794 = vmatprep.subr.mxu0 0.0
        %2795 = vmatpush1.msra.mxu0 0.0
        %2796 = vmatprep.subr.mxu0 0.0
        %2797 = vmatpush1.msra.mxu0 0.0
        %2798 = vmatprep.subr.mxu0 0.0
        %2799 = vmatpush1.msra.mxu0 0.0
        %2800 = vmatprep.subr.mxu0 0.0
        %2801 = vmatpush1.msra.mxu0 0.0
        %2802 = vmatprep.subr.mxu0 0.0
        %2803 = vmatpush1.msra.mxu0 0.0
        %2804 = vmatprep.subr.mxu0 0.0
        %2805 = vmatpush1.msra.mxu0 0.0
        %2806 = vmatprep.subr.mxu0 0.0
        %2807 = vmatpush1.msra.mxu0 0.0
        %2808 = vmatprep.subr.mxu0 0.0
        %2809 = vmatpush1.msra.mxu0 0.0
        %2810 = vmatprep.subr.mxu0 0.0
        %2811 = vmatpush1.msra.mxu0 0.0
        %2812 = vmatprep.subr.mxu0 0.0
        %2813 = vmatpush1.msra.mxu0 0.0
        %2814 = vmatprep.subr.mxu0 0.0
        %2815 = vmatpush1.msra.mxu0 0.0
        %2816 = vmatprep.subr.mxu0 0.0
        %2817 = vmatpush1.msra.mxu0 0.0
        %2818 = vmatprep.subr.mxu0 0.0
        %2819 = vmatpush1.msra.mxu0 0.0
        %2820 = vmatprep.subr.mxu0 0.0
        %2821 = vmatpush1.msra.mxu0 0.0
        %2822 = vmatprep.subr.mxu0 0.0
        %2823 = vmatpush1.msra.mxu0 0.0
        %2824 = vmatprep.subr.mxu0 0.0
        %2825 = vmatpush1.msra.mxu0 0.0
        %2826 = vmatprep.subr.mxu0 0.0
        %2827 = vmatpush1.msra.mxu0 0.0
        %2828 = vmatprep.subr.mxu0 0.0
        %2829 = vmatpush1.msra.mxu0 0.0
        %2830 = vmatprep.subr.mxu0 0.0
        %2831 = vmatpush1.msra.mxu0 0.0
        %2832 = vmatprep.subr.mxu0 0.0
        %2833 = vmatpush1.msra.mxu0 0.0
        %2834 = vmatprep.subr.mxu0 0.0
        %2835 = vmatpush1.msra.mxu0 0.0
        %2836 = vmatprep.subr.mxu0 0.0
        %2837 = vmatpush1.msra.mxu0 0.0
        %2838 = vmatprep.subr.mxu0 0.0
        %2839 = vmatpush1.msra.mxu0 0.0
        %2840 = vmatprep.subr.mxu0 0.0
        %2841 = vmatpush1.msra.mxu0 0.0
        %2842 = vmatprep.mubr.f32.mxu0 0.0
        %2843 = vmatmul.mubr.f32.gmra.mrb[0].mxu0 %v2771
        %v2844 = vpop.f32.mrb[0].mxu0
        %v2845 = vadd.f32 %v2762, %v2844
        %v2846 = vpop.f32.mrb[0].mxu0
        %2847 = vmatprep.mubr.f32.mxu0 0.0
        %2848 = vmatmul.mubr.f32.gmra.mrb[0].mxu0 %v2774
        %v2849 = vpop.f32.mrb[0].mxu0
        %v2850 = vadd.f32 %v2767, %v2849
        %v2851 = vpop.f32.mrb[0].mxu0
        %2852 = vdwg.mxu0
        %2853 = vrot.lane.b32.xlu0 %v2280, 120
        %v2854 = vpop.permute.xlu0 %2853
        %2855 = vrot.lane.b32.xlu0 %v2281, 120
        %v2856 = vpop.permute.xlu0 %2855
        %2857 = vrot.lane.b32.xlu0 %v2272, 104
        %v2858 = vpop.permute.xlu0 %2857
        %2859 = vrot.lane.b32.xlu0 %v2277, 104
        %v2860 = vpop.permute.xlu0 %2859
        %v2861 = vsel %vm781, %v2854, 0
        %v2863 = vsel %vm781, %v2856, 0
        %v2865 = vsel %vm781, %v2858, 0
        %v2867 = vsel %vm781, %v2860, 0
        %2869 = vmatprep.subr.mxu0 0.0
        %2870 = vmatpush1.xpose.msra.mxu0 %v2865
        %2871 = vmatprep.subr.mxu0 0.0
        %2872 = vmatpush1.xpose.msra.mxu0 %v2867
        %2873 = vmatprep.subr.mxu0 0.0
        %2874 = vmatpush1.xpose.msra.mxu0 0.0
        %2875 = vmatprep.subr.mxu0 0.0
        %2876 = vmatpush1.xpose.msra.mxu0 0.0
        %2877 = vmatprep.subr.mxu0 0.0
        %2878 = vmatpush1.xpose.msra.mxu0 0.0
        %2879 = vmatprep.subr.mxu0 0.0
        %2880 = vmatpush1.xpose.msra.mxu0 0.0
        %2881 = vmatprep.subr.mxu0 0.0
        %2882 = vmatpush1.xpose.msra.mxu0 0.0
        %2883 = vmatprep.subr.mxu0 0.0
        %2884 = vmatpush1.xpose.msra.mxu0 0.0
        %2885 = vmatprep.subr.mxu0 0.0
        %2886 = vmatpush1.xpose.msra.mxu0 0.0
        %2887 = vmatprep.subr.mxu0 0.0
        %2888 = vmatpush1.xpose.msra.mxu0 0.0
        %2889 = vmatprep.subr.mxu0 0.0
        %2890 = vmatpush1.xpose.msra.mxu0 0.0
        %2891 = vmatprep.subr.mxu0 0.0
        %2892 = vmatpush1.xpose.msra.mxu0 0.0
        %2893 = vmatprep.subr.mxu0 0.0
        %2894 = vmatpush1.xpose.msra.mxu0 0.0
        %2895 = vmatprep.subr.mxu0 0.0
        %2896 = vmatpush1.xpose.msra.mxu0 0.0
        %2897 = vmatprep.subr.mxu0 0.0
        %2898 = vmatpush1.xpose.msra.mxu0 0.0
        %2899 = vmatprep.subr.mxu0 0.0
        %2900 = vmatpush1.xpose.msra.mxu0 0.0
        %2901 = vmatprep.subr.mxu0 0.0
        %2902 = vmatpush1.xpose.msra.mxu0 0.0
        %2903 = vmatprep.subr.mxu0 0.0
        %2904 = vmatpush1.xpose.msra.mxu0 0.0
        %2905 = vmatprep.subr.mxu0 0.0
        %2906 = vmatpush1.xpose.msra.mxu0 0.0
        %2907 = vmatprep.subr.mxu0 0.0
        %2908 = vmatpush1.xpose.msra.mxu0 0.0
        %2909 = vmatprep.subr.mxu0 0.0
        %2910 = vmatpush1.xpose.msra.mxu0 0.0
        %2911 = vmatprep.subr.mxu0 0.0
        %2912 = vmatpush1.xpose.msra.mxu0 0.0
        %2913 = vmatprep.subr.mxu0 0.0
        %2914 = vmatpush1.xpose.msra.mxu0 0.0
        %2915 = vmatprep.subr.mxu0 0.0
        %2916 = vmatpush1.xpose.msra.mxu0 0.0
        %2917 = vmatprep.subr.mxu0 0.0
        %2918 = vmatpush1.xpose.msra.mxu0 0.0
        %2919 = vmatprep.subr.mxu0 0.0
        %2920 = vmatpush1.xpose.msra.mxu0 0.0
        %2921 = vmatprep.subr.mxu0 0.0
        %2922 = vmatpush1.xpose.msra.mxu0 0.0
        %2923 = vmatprep.subr.mxu0 0.0
        %2924 = vmatpush1.xpose.msra.mxu0 0.0
        %2925 = vmatprep.subr.mxu0 0.0
        %2926 = vmatpush1.xpose.msra.mxu0 0.0
        %2927 = vmatprep.subr.mxu0 0.0
        %2928 = vmatpush1.xpose.msra.mxu0 0.0
        %2929 = vmatprep.subr.mxu0 0.0
        %2930 = vmatpush1.xpose.msra.mxu0 0.0
        %2931 = vmatprep.subr.mxu0 0.0
        %2932 = vmatpush1.xpose.msra.mxu0 0.0
        %2933 = vmatprep.mubr.f32.mxu0 0.0
        %2934 = vmatmul.mubr.f32.gmra.mrb[0].mxu0 %v2861
        %v2935 = vpop.f32.mrb[0].mxu0
        %v2936 = vadd.f32 %v672, %v2935
        %v2937 = vpop.f32.mrb[0].mxu0
        %2938 = vmatprep.mubr.f32.mxu0 0.0
        %2939 = vmatmul.mubr.f32.gmra.mrb[0].mxu0 %v2863
        %v2940 = vpop.f32.mrb[0].mxu0
        %v2941 = vadd.f32 %v672, %v2940
        %v2942 = vpop.f32.mrb[0].mxu0
        %2943 = vdwg.mxu0
        %v2944 = vsel %vm689, %v2936, -inf
        %2945 = vmax.xlane.f32.xlu0 %v2944
        %v2946 = vpop.xlane.xlu0 %2945
        %v2947 = vsel %vm689, %v2941, -inf
        %2948 = vmax.xlane.f32.xlu0 %v2947
        %v2949 = vpop.xlane.xlu0 %2948
        %v2950 = vsub.f32 %v2936, %v2946
        %v2951 = vsub.f32 %v2941, %v2949
        %v2952 = vmul.f32 %v2950, 1.442695
        %v2953 = vpow.pop %v2952
        %v2954 = vmul.f32 %v2951, 1.442695
        %v2955 = vpow.pop %v2954
        %v2956 = vsel %vm689, %v2953, 0.0
        %2957 = vadd.xlane.f32.xlu0 %v2956
        %v2958 = vpop.xlane.xlu0 %2957
        %v2959 = vsel %vm689, %v2955, 0.0
        %2960 = vadd.xlane.f32.xlu0 %v2959
        %v2961 = vpop.xlane.xlu0 %2960
        %v2962 = vrcp.pop %v2958
        %v2963 = vrcp.pop %v2961
        %v2964 = vmul.f32 %v2953, %v2962
        %v2965 = vmul.f32 %v2955, %v2963
        %2966 = vrot.lane.b32.xlu0 %v2272, 88
        %v2967 = vpop.permute.xlu0 %2966
        %2968 = vrot.lane.b32.xlu0 %v2277, 88
        %v2969 = vpop.permute.xlu0 %2968
        %v2973 = vsel %vm689, %v2964, 0
        %v2976 = vsel %vm689, %v2965, 0
        %2978 = vmatprep.subr.mxu0 0.0
        %2979 = vmatpush1.msra.mxu0 %v2967
        %2980 = vmatprep.subr.mxu0 0.0
        %2981 = vmatpush1.msra.mxu0 %v2969
        %2982 = vmatprep.subr.mxu0 0.0
        %2983 = vmatpush1.msra.mxu0 0.0
        %2984 = vmatprep.subr.mxu0 0.0
        %2985 = vmatpush1.msra.mxu0 0.0
        %2986 = vmatprep.subr.mxu0 0.0
        %2987 = vmatpush1.msra.mxu0 0.0
        %2988 = vmatprep.subr.mxu0 0.0
        %2989 = vmatpush1.msra.mxu0 0.0
        %2990 = vmatprep.subr.mxu0 0.0
        %2991 = vmatpush1.msra.mxu0 0.0
        %2992 = vmatprep.subr.mxu0 0.0
        %2993 = vmatpush1.msra.mxu0 0.0
        %2994 = vmatprep.subr.mxu0 0.0
        %2995 = vmatpush1.msra.mxu0 0.0
        %2996 = vmatprep.subr.mxu0 0.0
        %2997 = vmatpush1.msra.mxu0 0.0
        %2998 = vmatprep.subr.mxu0 0.0
        %2999 = vmatpush1.msra.mxu0 0.0
        %3000 = vmatprep.subr.mxu0 0.0
        %3001 = vmatpush1.msra.mxu0 0.0
        %3002 = vmatprep.subr.mxu0 0.0
        %3003 = vmatpush1.msra.mxu0 0.0
        %3004 = vmatprep.subr.mxu0 0.0
        %3005 = vmatpush1.msra.mxu0 0.0
        %3006 = vmatprep.subr.mxu0 0.0
        %3007 = vmatpush1.msra.mxu0 0.0
        %3008 = vmatprep.subr.mxu0 0.0
        %3009 = vmatpush1.msra.mxu0 0.0
        %3010 = vmatprep.subr.mxu0 0.0
        %3011 = vmatpush1.msra.mxu0 0.0
        %3012 = vmatprep.subr.mxu0 0.0
        %3013 = vmatpush1.msra.mxu0 0.0
        %3014 = vmatprep.subr.mxu0 0.0
        %3015 = vmatpush1.msra.mxu0 0.0
        %3016 = vmatprep.subr.mxu0 0.0
        %3017 = vmatpush1.msra.mxu0 0.0
        %3018 = vmatprep.subr.mxu0 0.0
        %3019 = vmatpush1.msra.mxu0 0.0
        %3020 = vmatprep.subr.mxu0 0.0
        %3021 = vmatpush1.msra.mxu0 0.0
        %3022 = vmatprep.subr.mxu0 0.0
        %3023 = vmatpush1.msra.mxu0 0.0
        %3024 = vmatprep.subr.mxu0 0.0
        %3025 = vmatpush1.msra.mxu0 0.0
        %3026 = vmatprep.subr.mxu0 0.0
        %3027 = vmatpush1.msra.mxu0 0.0
        %3028 = vmatprep.subr.mxu0 0.0
        %3029 = vmatpush1.msra.mxu0 0.0
        %3030 = vmatprep.subr.mxu0 0.0
        %3031 = vmatpush1.msra.mxu0 0.0
        %3032 = vmatprep.subr.mxu0 0.0
        %3033 = vmatpush1.msra.mxu0 0.0
        %3034 = vmatprep.subr.mxu0 0.0
        %3035 = vmatpush1.msra.mxu0 0.0
        %3036 = vmatprep.subr.mxu0 0.0
        %3037 = vmatpush1.msra.mxu0 0.0
        %3038 = vmatprep.subr.mxu0 0.0
        %3039 = vmatpush1.msra.mxu0 0.0
        %3040 = vmatprep.subr.mxu0 0.0
        %3041 = vmatpush1.msra.mxu0 0.0
        %3042 = vmatprep.mubr.f32.mxu0 0.0
        %3043 = vmatmul.mubr.f32.gmra.mrb[0].mxu0 %v2973
        %v3044 = vpop.f32.mrb[0].mxu0
        %v3045 = vadd.f32 0.0, %v3044
        %v3046 = vpop.f32.mrb[0].mxu0
        %3047 = vmatprep.mubr.f32.mxu0 0.0
        %3048 = vmatmul.mubr.f32.gmra.mrb[0].mxu0 %v2976
        %v3049 = vpop.f32.mrb[0].mxu0
        %v3050 = vadd.f32 0.0, %v3049
        %v3051 = vpop.f32.mrb[0].mxu0
        %3052 = vdwg.mxu0
        %v3054 = vsel %vm781, %v3045, 0
        %v3057 = vsel %vm781, %v3050, 0
        %v3060 = vsel %vm1184, %v2284, 0
        %3062 = vmatprep.subr.mxu0 0.0
        %3063 = vmatpush1.msra.mxu0 %v3060
        %3064 = vmatprep.subr.mxu0 0.0
        %3065 = vmatpush1.msra.mxu0 0.0
        %3066 = vmatprep.subr.mxu0 0.0
        %3067 = vmatpush1.msra.mxu0 0.0
        %3068 = vmatprep.subr.mxu0 0.0
        %3069 = vmatpush1.msra.mxu0 0.0
        %3070 = vmatprep.subr.mxu0 0.0
        %3071 = vmatpush1.msra.mxu0 0.0
        %3072 = vmatprep.subr.mxu0 0.0
        %3073 = vmatpush1.msra.mxu0 0.0
        %3074 = vmatprep.subr.mxu0 0.0
        %3075 = vmatpush1.msra.mxu0 0.0
        %3076 = vmatprep.subr.mxu0 0.0
        %3077 = vmatpush1.msra.mxu0 0.0
        %3078 = vmatprep.subr.mxu0 0.0
        %3079 = vmatpush1.msra.mxu0 0.0
        %3080 = vmatprep.subr.mxu0 0.0
        %3081 = vmatpush1.msra.mxu0 0.0
        %3082 = vmatprep.subr.mxu0 0.0
        %3083 = vmatpush1.msra.mxu0 0.0
        %3084 = vmatprep.subr.mxu0 0.0
        %3085 = vmatpush1.msra.mxu0 0.0
        %3086 = vmatprep.subr.mxu0 0.0
        %3087 = vmatpush1.msra.mxu0 0.0
        %3088 = vmatprep.subr.mxu0 0.0
        %3089 = vmatpush1.msra.mxu0 0.0
        %3090 = vmatprep.subr.mxu0 0.0
        %3091 = vmatpush1.msra.mxu0 0.0
        %3092 = vmatprep.subr.mxu0 0.0
        %3093 = vmatpush1.msra.mxu0 0.0
        %3094 = vmatprep.subr.mxu0 0.0
        %3095 = vmatpush1.msra.mxu0 0.0
        %3096 = vmatprep.subr.mxu0 0.0
        %3097 = vmatpush1.msra.mxu0 0.0
        %3098 = vmatprep.subr.mxu0 0.0
        %3099 = vmatpush1.msra.mxu0 0.0
        %3100 = vmatprep.subr.mxu0 0.0
        %3101 = vmatpush1.msra.mxu0 0.0
        %3102 = vmatprep.subr.mxu0 0.0
        %3103 = vmatpush1.msra.mxu0 0.0
        %3104 = vmatprep.subr.mxu0 0.0
        %3105 = vmatpush1.msra.mxu0 0.0
        %3106 = vmatprep.subr.mxu0 0.0
        %3107 = vmatpush1.msra.mxu0 0.0
        %3108 = vmatprep.subr.mxu0 0.0
        %3109 = vmatpush1.msra.mxu0 0.0
        %3110 = vmatprep.subr.mxu0 0.0
        %3111 = vmatpush1.msra.mxu0 0.0
        %3112 = vmatprep.subr.mxu0 0.0
        %3113 = vmatpush1.msra.mxu0 0.0
        %3114 = vmatprep.subr.mxu0 0.0
        %3115 = vmatpush1.msra.mxu0 0.0
        %3116 = vmatprep.subr.mxu0 0.0
        %3117 = vmatpush1.msra.mxu0 0.0
        %3118 = vmatprep.subr.mxu0 0.0
        %3119 = vmatpush1.msra.mxu0 0.0
        %3120 = vmatprep.subr.mxu0 0.0
        %3121 = vmatpush1.msra.mxu0 0.0
        %3122 = vmatprep.subr.mxu0 0.0
        %3123 = vmatpush1.msra.mxu0 0.0
        %3124 = vmatprep.subr.mxu0 0.0
        %3125 = vmatpush1.msra.mxu0 0.0
        %3126 = vmatprep.mubr.f32.mxu0 0.0
        %3127 = vmatmul.mubr.f32.gmra.mrb[0].mxu0 %v3054
        %v3128 = vpop.f32.mrb[0].mxu0
        %v3129 = vadd.f32 0.0, %v3128
        %v3130 = vpop.f32.mrb[0].mxu0
        %3131 = vmatprep.mubr.f32.mxu0 0.0
        %3132 = vmatmul.mubr.f32.gmra.mrb[0].mxu0 %v3057
        %v3133 = vpop.f32.mrb[0].mxu0
        %v3134 = vadd.f32 0.0, %v3133
        %v3135 = vpop.f32.mrb[0].mxu0
        %3136 = vdwg.mxu0
        %v3137 = vadd.f32 %v2845, %v3129
        %v3138 = vadd.f32 %v2850, %v3134
        %3139 = vrot.lane.b32.xlu0 %v2280, 116
        %v3140 = vpop.permute.xlu0 %3139
        %3141 = vrot.lane.b32.xlu0 %v2281, 116
        %v3142 = vpop.permute.xlu0 %3141
        %3143 = vrot.lane.b32.xlu0 %v2272, 100
        %v3144 = vpop.permute.xlu0 %3143
        %3145 = vrot.lane.b32.xlu0 %v2277, 100
        %v3146 = vpop.permute.xlu0 %3145
        %v3147 = vsel %vm781, %v3140, 0
        %v3149 = vsel %vm781, %v3142, 0
        %v3151 = vsel %vm781, %v3144, 0
        %v3153 = vsel %vm781, %v3146, 0
        %3155 = vmatprep.subr.mxu0 0.0
        %3156 = vmatpush1.xpose.msra.mxu0 %v3151
        %3157 = vmatprep.subr.mxu0 0.0
        %3158 = vmatpush1.xpose.msra.mxu0 %v3153
        %3159 = vmatprep.subr.mxu0 0.0
        %3160 = vmatpush1.xpose.msra.mxu0 0.0
        %3161 = vmatprep.subr.mxu0 0.0
        %3162 = vmatpush1.xpose.msra.mxu0 0.0
        %3163 = vmatprep.subr.mxu0 0.0
        %3164 = vmatpush1.xpose.msra.mxu0 0.0
        %3165 = vmatprep.subr.mxu0 0.0
        %3166 = vmatpush1.xpose.msra.mxu0 0.0
        %3167 = vmatprep.subr.mxu0 0.0
        %3168 = vmatpush1.xpose.msra.mxu0 0.0
        %3169 = vmatprep.subr.mxu0 0.0
        %3170 = vmatpush1.xpose.msra.mxu0 0.0
        %3171 = vmatprep.subr.mxu0 0.0
        %3172 = vmatpush1.xpose.msra.mxu0 0.0
        %3173 = vmatprep.subr.mxu0 0.0
        %3174 = vmatpush1.xpose.msra.mxu0 0.0
        %3175 = vmatprep.subr.mxu0 0.0
        %3176 = vmatpush1.xpose.msra.mxu0 0.0
        %3177 = vmatprep.subr.mxu0 0.0
        %3178 = vmatpush1.xpose.msra.mxu0 0.0
        %3179 = vmatprep.subr.mxu0 0.0
        %3180 = vmatpush1.xpose.msra.mxu0 0.0
        %3181 = vmatprep.subr.mxu0 0.0
        %3182 = vmatpush1.xpose.msra.mxu0 0.0
        %3183 = vmatprep.subr.mxu0 0.0
        %3184 = vmatpush1.xpose.msra.mxu0 0.0
        %3185 = vmatprep.subr.mxu0 0.0
        %3186 = vmatpush1.xpose.msra.mxu0 0.0
        %3187 = vmatprep.subr.mxu0 0.0
        %3188 = vmatpush1.xpose.msra.mxu0 0.0
        %3189 = vmatprep.subr.mxu0 0.0
        %3190 = vmatpush1.xpose.msra.mxu0 0.0
        %3191 = vmatprep.subr.mxu0 0.0
        %3192 = vmatpush1.xpose.msra.mxu0 0.0
        %3193 = vmatprep.subr.mxu0 0.0
        %3194 = vmatpush1.xpose.msra.mxu0 0.0
        %3195 = vmatprep.subr.mxu0 0.0
        %3196 = vmatpush1.xpose.msra.mxu0 0.0
        %3197 = vmatprep.subr.mxu0 0.0
        %3198 = vmatpush1.xpose.msra.mxu0 0.0
        %3199 = vmatprep.subr.mxu0 0.0
        %3200 = vmatpush1.xpose.msra.mxu0 0.0
        %3201 = vmatprep.subr.mxu0 0.0
        %3202 = vmatpush1.xpose.msra.mxu0 0.0
        %3203 = vmatprep.subr.mxu0 0.0
        %3204 = vmatpush1.xpose.msra.mxu0 0.0
        %3205 = vmatprep.subr.mxu0 0.0
        %3206 = vmatpush1.xpose.msra.mxu0 0.0
        %3207 = vmatprep.subr.mxu0 0.0
        %3208 = vmatpush1.xpose.msra.mxu0 0.0
        %3209 = vmatprep.subr.mxu0 0.0
        %3210 = vmatpush1.xpose.msra.mxu0 0.0
        %3211 = vmatprep.subr.mxu0 0.0
        %3212 = vmatpush1.xpose.msra.mxu0 0.0
        %3213 = vmatprep.subr.mxu0 0.0
        %3214 = vmatpush1.xpose.msra.mxu0 0.0
        %3215 = vmatprep.subr.mxu0 0.0
        %3216 = vmatpush1.xpose.msra.mxu0 0.0
        %3217 = vmatprep.subr.mxu0 0.0
        %3218 = vmatpush1.xpose.msra.mxu0 0.0
        %3219 = vmatprep.mubr.f32.mxu0 0.0
        %3220 = vmatmul.mubr.f32.gmra.mrb[0].mxu0 %v3147
        %v3221 = vpop.f32.mrb[0].mxu0
        %v3222 = vadd.f32 %v672, %v3221
        %v3223 = vpop.f32.mrb[0].mxu0
        %3224 = vmatprep.mubr.f32.mxu0 0.0
        %3225 = vmatmul.mubr.f32.gmra.mrb[0].mxu0 %v3149
        %v3226 = vpop.f32.mrb[0].mxu0
        %v3227 = vadd.f32 %v672, %v3226
        %v3228 = vpop.f32.mrb[0].mxu0
        %3229 = vdwg.mxu0
        %v3230 = vsel %vm689, %v3222, -inf
        %3231 = vmax.xlane.f32.xlu0 %v3230
        %v3232 = vpop.xlane.xlu0 %3231
        %v3233 = vsel %vm689, %v3227, -inf
        %3234 = vmax.xlane.f32.xlu0 %v3233
        %v3235 = vpop.xlane.xlu0 %3234
        %v3236 = vsub.f32 %v3222, %v3232
        %v3237 = vsub.f32 %v3227, %v3235
        %v3238 = vmul.f32 %v3236, 1.442695
        %v3239 = vpow.pop %v3238
        %v3240 = vmul.f32 %v3237, 1.442695
        %v3241 = vpow.pop %v3240
        %v3242 = vsel %vm689, %v3239, 0.0
        %3243 = vadd.xlane.f32.xlu0 %v3242
        %v3244 = vpop.xlane.xlu0 %3243
        %v3245 = vsel %vm689, %v3241, 0.0
        %3246 = vadd.xlane.f32.xlu0 %v3245
        %v3247 = vpop.xlane.xlu0 %3246
        %v3248 = vrcp.pop %v3244
        %v3249 = vrcp.pop %v3247
        %v3250 = vmul.f32 %v3239, %v3248
        %v3251 = vmul.f32 %v3241, %v3249
        %3252 = vrot.lane.b32.xlu0 %v2272, 84
        %v3253 = vpop.permute.xlu0 %3252
        %3254 = vrot.lane.b32.xlu0 %v2277, 84
        %v3255 = vpop.permute.xlu0 %3254
        %v3259 = vsel %vm689, %v3250, 0
        %v3262 = vsel %vm689, %v3251, 0
        %3264 = vmatprep.subr.mxu0 0.0
        %3265 = vmatpush1.msra.mxu0 %v3253
        %3266 = vmatprep.subr.mxu0 0.0
        %3267 = vmatpush1.msra.mxu0 %v3255
        %3268 = vmatprep.subr.mxu0 0.0
        %3269 = vmatpush1.msra.mxu0 0.0
        %3270 = vmatprep.subr.mxu0 0.0
        %3271 = vmatpush1.msra.mxu0 0.0
        %3272 = vmatprep.subr.mxu0 0.0
        %3273 = vmatpush1.msra.mxu0 0.0
        %3274 = vmatprep.subr.mxu0 0.0
        %3275 = vmatpush1.msra.mxu0 0.0
        %3276 = vmatprep.subr.mxu0 0.0
        %3277 = vmatpush1.msra.mxu0 0.0
        %3278 = vmatprep.subr.mxu0 0.0
        %3279 = vmatpush1.msra.mxu0 0.0
        %3280 = vmatprep.subr.mxu0 0.0
        %3281 = vmatpush1.msra.mxu0 0.0
        %3282 = vmatprep.subr.mxu0 0.0
        %3283 = vmatpush1.msra.mxu0 0.0
        %3284 = vmatprep.subr.mxu0 0.0
        %3285 = vmatpush1.msra.mxu0 0.0
        %3286 = vmatprep.subr.mxu0 0.0
        %3287 = vmatpush1.msra.mxu0 0.0
        %3288 = vmatprep.subr.mxu0 0.0
        %3289 = vmatpush1.msra.mxu0 0.0
        %3290 = vmatprep.subr.mxu0 0.0
        %3291 = vmatpush1.msra.mxu0 0.0
        %3292 = vmatprep.subr.mxu0 0.0
        %3293 = vmatpush1.msra.mxu0 0.0
        %3294 = vmatprep.subr.mxu0 0.0
        %3295 = vmatpush1.msra.mxu0 0.0
        %3296 = vmatprep.subr.mxu0 0.0
        %3297 = vmatpush1.msra.mxu0 0.0
        %3298 = vmatprep.subr.mxu0 0.0
        %3299 = vmatpush1.msra.mxu0 0.0
        %3300 = vmatprep.subr.mxu0 0.0
        %3301 = vmatpush1.msra.mxu0 0.0
        %3302 = vmatprep.subr.mxu0 0.0
        %3303 = vmatpush1.msra.mxu0 0.0
        %3304 = vmatprep.subr.mxu0 0.0
        %3305 = vmatpush1.msra.mxu0 0.0
        %3306 = vmatprep.subr.mxu0 0.0
        %3307 = vmatpush1.msra.mxu0 0.0
        %3308 = vmatprep.subr.mxu0 0.0
        %3309 = vmatpush1.msra.mxu0 0.0
        %3310 = vmatprep.subr.mxu0 0.0
        %3311 = vmatpush1.msra.mxu0 0.0
        %3312 = vmatprep.subr.mxu0 0.0
        %3313 = vmatpush1.msra.mxu0 0.0
        %3314 = vmatprep.subr.mxu0 0.0
        %3315 = vmatpush1.msra.mxu0 0.0
        %3316 = vmatprep.subr.mxu0 0.0
        %3317 = vmatpush1.msra.mxu0 0.0
        %3318 = vmatprep.subr.mxu0 0.0
        %3319 = vmatpush1.msra.mxu0 0.0
        %3320 = vmatprep.subr.mxu0 0.0
        %3321 = vmatpush1.msra.mxu0 0.0
        %3322 = vmatprep.subr.mxu0 0.0
        %3323 = vmatpush1.msra.mxu0 0.0
        %3324 = vmatprep.subr.mxu0 0.0
        %3325 = vmatpush1.msra.mxu0 0.0
        %3326 = vmatprep.subr.mxu0 0.0
        %3327 = vmatpush1.msra.mxu0 0.0
        %3328 = vmatprep.mubr.f32.mxu0 0.0
        %3329 = vmatmul.mubr.f32.gmra.mrb[0].mxu0 %v3259
        %v3330 = vpop.f32.mrb[0].mxu0
        %v3331 = vadd.f32 0.0, %v3330
        %v3332 = vpop.f32.mrb[0].mxu0
        %3333 = vmatprep.mubr.f32.mxu0 0.0
        %3334 = vmatmul.mubr.f32.gmra.mrb[0].mxu0 %v3262
        %v3335 = vpop.f32.mrb[0].mxu0
        %v3336 = vadd.f32 0.0, %v3335
        %v3337 = vpop.f32.mrb[0].mxu0
        %3338 = vdwg.mxu0
        %v3339 = vrot.slane %v2284, 4
        %v3341 = vsel %vm781, %v3331, 0
        %v3344 = vsel %vm781, %v3336, 0
        %v3346 = vsel %vm1184, %v3339, 0
        %3348 = vmatprep.subr.mxu0 0.0
        %3349 = vmatpush1.msra.mxu0 %v3346
        %3350 = vmatprep.subr.mxu0 0.0
        %3351 = vmatpush1.msra.mxu0 0.0
        %3352 = vmatprep.subr.mxu0 0.0
        %3353 = vmatpush1.msra.mxu0 0.0
        %3354 = vmatprep.subr.mxu0 0.0
        %3355 = vmatpush1.msra.mxu0 0.0
        %3356 = vmatprep.subr.mxu0 0.0
        %3357 = vmatpush1.msra.mxu0 0.0
        %3358 = vmatprep.subr.mxu0 0.0
        %3359 = vmatpush1.msra.mxu0 0.0
        %3360 = vmatprep.subr.mxu0 0.0
        %3361 = vmatpush1.msra.mxu0 0.0
        %3362 = vmatprep.subr.mxu0 0.0
        %3363 = vmatpush1.msra.mxu0 0.0
        %3364 = vmatprep.subr.mxu0 0.0
        %3365 = vmatpush1.msra.mxu0 0.0
        %3366 = vmatprep.subr.mxu0 0.0
        %3367 = vmatpush1.msra.mxu0 0.0
        %3368 = vmatprep.subr.mxu0 0.0
        %3369 = vmatpush1.msra.mxu0 0.0
        %3370 = vmatprep.subr.mxu0 0.0
        %3371 = vmatpush1.msra.mxu0 0.0
        %3372 = vmatprep.subr.mxu0 0.0
        %3373 = vmatpush1.msra.mxu0 0.0
        %3374 = vmatprep.subr.mxu0 0.0
        %3375 = vmatpush1.msra.mxu0 0.0
        %3376 = vmatprep.subr.mxu0 0.0
        %3377 = vmatpush1.msra.mxu0 0.0
        %3378 = vmatprep.subr.mxu0 0.0
        %3379 = vmatpush1.msra.mxu0 0.0
        %3380 = vmatprep.subr.mxu0 0.0
        %3381 = vmatpush1.msra.mxu0 0.0
        %3382 = vmatprep.subr.mxu0 0.0
        %3383 = vmatpush1.msra.mxu0 0.0
        %3384 = vmatprep.subr.mxu0 0.0
        %3385 = vmatpush1.msra.mxu0 0.0
        %3386 = vmatprep.subr.mxu0 0.0
        %3387 = vmatpush1.msra.mxu0 0.0
        %3388 = vmatprep.subr.mxu0 0.0
        %3389 = vmatpush1.msra.mxu0 0.0
        %3390 = vmatprep.subr.mxu0 0.0
        %3391 = vmatpush1.msra.mxu0 0.0
        %3392 = vmatprep.subr.mxu0 0.0
        %3393 = vmatpush1.msra.mxu0 0.0
        %3394 = vmatprep.subr.mxu0 0.0
        %3395 = vmatpush1.msra.mxu0 0.0
        %3396 = vmatprep.subr.mxu0 0.0
        %3397 = vmatpush1.msra.mxu0 0.0
        %3398 = vmatprep.subr.mxu0 0.0
        %3399 = vmatpush1.msra.mxu0 0.0
        %3400 = vmatprep.subr.mxu0 0.0
        %3401 = vmatpush1.msra.mxu0 0.0
        %3402 = vmatprep.subr.mxu0 0.0
        %3403 = vmatpush1.msra.mxu0 0.0
        %3404 = vmatprep.subr.mxu0 0.0
        %3405 = vmatpush1.msra.mxu0 0.0
        %3406 = vmatprep.subr.mxu0 0.0
        %3407 = vmatpush1.msra.mxu0 0.0
        %3408 = vmatprep.subr.mxu0 0.0
        %3409 = vmatpush1.msra.mxu0 0.0
        %3410 = vmatprep.subr.mxu0 0.0
        %3411 = vmatpush1.msra.mxu0 0.0
        %3412 = vmatprep.mubr.f32.mxu0 0.0
        %3413 = vmatmul.mubr.f32.gmra.mrb[0].mxu0 %v3341
        %v3414 = vpop.f32.mrb[0].mxu0
        %v3415 = vadd.f32 0.0, %v3414
        %v3416 = vpop.f32.mrb[0].mxu0
        %3417 = vmatprep.mubr.f32.mxu0 0.0
        %3418 = vmatmul.mubr.f32.gmra.mrb[0].mxu0 %v3344
        %v3419 = vpop.f32.mrb[0].mxu0
        %v3420 = vadd.f32 0.0, %v3419
        %v3421 = vpop.f32.mrb[0].mxu0
        %3422 = vdwg.mxu0
        %v3423 = vadd.f32 %v3137, %v3415
        %v3424 = vadd.f32 %v3138, %v3420
        %v3425 = vlaneseq
        %v3426 = vshrl.u32 %v3425, 7
        %v3427 = vsub.s32 0, %v3426
        %v3428 = vrot.slane %v2187, %v3427
        %v3429 = vadd.f32 %v3423, %v3428
        %v3430 = vadd.f32 %v3424, %v3428
        %v3431 = vadd.f32 %v2184, %v3429
        %v3432 = vadd.f32 %v2185, %v3430
        %v3433 = vsel %vm689, %v3431, 0.0
        %3434 = vadd.xlane.f32.xlu0 %v3433
        %v3435 = vpop.xlane.xlu0 %3434
        %v3436 = vsel %vm689, %v3432, 0.0
        %3437 = vadd.xlane.f32.xlu0 %v3436
        %v3438 = vpop.xlane.xlu0 %3437
        %v3439 = vmul.f32 %v3435, %v1931
        %v3440 = vmul.f32 %v3438, %v1931
        %v3441 = vsub.f32 %v3431, %v3439
        %v3442 = vsub.f32 %v3432, %v3440
        %v3443 = vmul.f32 %v3441, %v3441
        %v3444 = vmul.f32 %v3442, %v3442
        %v3445 = vsel %vm689, %v3443, 0.0
        %3446 = vadd.xlane.f32.xlu0 %v3445
        %v3447 = vpop.xlane.xlu0 %3446
        %v3448 = vsel %vm689, %v3444, 0.0
        %3449 = vadd.xlane.f32.xlu0 %v3448
        %v3450 = vpop.xlane.xlu0 %3449
        %v3451 = vmul.f32 %v3447, %v1931
        %v3452 = vmul.f32 %v3450, %v1931
        %v3453 = vadd.f32 %v3451, 1e-05
        %v3454 = vadd.f32 %v3452, 1e-05
        %v3455 = vrsqrt.pop %v3453
        %v3456 = vrsqrt.pop %v3454
        %v3457 = vmul.f32 %v3441, %v3455
        %v3458 = vmul.f32 %v3442, %v3456
        %v3459 = vlaneseq
        %v3460 = vshrl.u32 %v3459, 7
        %v3461 = vsub.s32 1, %v3460
        %v3462 = vrot.slane %v2187, %v3461
        %v3463 = vmul.f32 %v3457, %v3462
        %v3464 = vmul.f32 %v3458, %v3462
        %v3465 = vlaneseq
        %v3466 = vshrl.u32 %v3465, 7
        %v3467 = vsub.s32 2, %v3466
        %v3468 = vrot.slane %v2187, %v3467
        %v3469 = vadd.f32 %v3463, %v3468
        %v3470 = vadd.f32 %v3464, %v3468
        %s3471 = scalar_lea.vmem %s8, 16
        %v3472 = vld [vmem:[%s3471] sm:$0xff]
        %v3473 = vld [vmem:[%s3471 + $0x8] sm:$0xff]
        %s3474 = scalar_lea.vmem %s9, 1
        %v3475 = vld [vmem:[%s3474] sm:$0x1]
        %v3477 = vlaneseq
        %v3478 = vshrl.u32 %v3477, 7
        %v3479 = vsub.s32 0, %v3478
        %v3480 = vrot.slane %v3475, %v3479
        %v3483 = vsel %vm689, %v3469, 0
        %v3486 = vsel %vm689, %v3470, 0
        %3488 = vmatprep.subr.mxu0 0.0
        %3489 = vmatpush1.msra.mxu0 %v3472
        %3490 = vmatprep.subr.mxu0 0.0
        %3491 = vmatpush1.msra.mxu0 %v3473
        %3492 = vmatprep.subr.mxu0 0.0
        %3493 = vmatpush1.msra.mxu0 0.0
        %3494 = vmatprep.subr.mxu0 0.0
        %3495 = vmatpush1.msra.mxu0 0.0
        %3496 = vmatprep.subr.mxu0 0.0
        %3497 = vmatpush1.msra.mxu0 0.0
        %3498 = vmatprep.subr.mxu0 0.0
        %3499 = vmatpush1.msra.mxu0 0.0
        %3500 = vmatprep.subr.mxu0 0.0
        %3501 = vmatpush1.msra.mxu0 0.0
        %3502 = vmatprep.subr.mxu0 0.0
        %3503 = vmatpush1.msra.mxu0 0.0
        %3504 = vmatprep.subr.mxu0 0.0
        %3505 = vmatpush1.msra.mxu0 0.0
        %3506 = vmatprep.subr.mxu0 0.0
        %3507 = vmatpush1.msra.mxu0 0.0
        %3508 = vmatprep.subr.mxu0 0.0
        %3509 = vmatpush1.msra.mxu0 0.0
        %3510 = vmatprep.subr.mxu0 0.0
        %3511 = vmatpush1.msra.mxu0 0.0
        %3512 = vmatprep.subr.mxu0 0.0
        %3513 = vmatpush1.msra.mxu0 0.0
        %3514 = vmatprep.subr.mxu0 0.0
        %3515 = vmatpush1.msra.mxu0 0.0
        %3516 = vmatprep.subr.mxu0 0.0
        %3517 = vmatpush1.msra.mxu0 0.0
        %3518 = vmatprep.subr.mxu0 0.0
        %3519 = vmatpush1.msra.mxu0 0.0
        %3520 = vmatprep.subr.mxu0 0.0
        %3521 = vmatpush1.msra.mxu0 0.0
        %3522 = vmatprep.subr.mxu0 0.0
        %3523 = vmatpush1.msra.mxu0 0.0
        %3524 = vmatprep.subr.mxu0 0.0
        %3525 = vmatpush1.msra.mxu0 0.0
        %3526 = vmatprep.subr.mxu0 0.0
        %3527 = vmatpush1.msra.mxu0 0.0
        %3528 = vmatprep.subr.mxu0 0.0
        %3529 = vmatpush1.msra.mxu0 0.0
        %3530 = vmatprep.subr.mxu0 0.0
        %3531 = vmatpush1.msra.mxu0 0.0
        %3532 = vmatprep.subr.mxu0 0.0
        %3533 = vmatpush1.msra.mxu0 0.0
        %3534 = vmatprep.subr.mxu0 0.0
        %3535 = vmatpush1.msra.mxu0 0.0
        %3536 = vmatprep.subr.mxu0 0.0
        %3537 = vmatpush1.msra.mxu0 0.0
        %3538 = vmatprep.subr.mxu0 0.0
        %3539 = vmatpush1.msra.mxu0 0.0
        %3540 = vmatprep.subr.mxu0 0.0
        %3541 = vmatpush1.msra.mxu0 0.0
        %3542 = vmatprep.subr.mxu0 0.0
        %3543 = vmatpush1.msra.mxu0 0.0
        %3544 = vmatprep.subr.mxu0 0.0
        %3545 = vmatpush1.msra.mxu0 0.0
        %3546 = vmatprep.subr.mxu0 0.0
        %3547 = vmatpush1.msra.mxu0 0.0
        %3548 = vmatprep.subr.mxu0 0.0
        %3549 = vmatpush1.msra.mxu0 0.0
        %3550 = vmatprep.subr.mxu0 0.0
        %3551 = vmatpush1.msra.mxu0 0.0
        %3552 = vmatprep.mubr.f32.mxu0 0.0
        %3553 = vmatmul.mubr.f32.gmra.mrb[0].mxu0 %v3483
        %v3554 = vpop.f32.mrb[0].mxu0
        %v3555 = vadd.f32 %v3480, %v3554
        %v3556 = vpop.f32.mrb[0].mxu0
        %3557 = vmatprep.mubr.f32.mxu0 0.0
        %3558 = vmatmul.mubr.f32.gmra.mrb[0].mxu0 %v3486
        %v3559 = vpop.f32.mrb[0].mxu0
        %v3560 = vadd.f32 %v3480, %v3559
        %v3561 = vpop.f32.mrb[0].mxu0
        %3562 = vdwg.mxu0
        %v3563 = vmax.f32 %v3555, 0.0
        %v3564 = vmax.f32 %v3560, 0.0
        %s3565 = scalar_lea.vmem %s10, 32
        %v3566 = vld [vmem:[%s3565] sm:$0xff]
        %v3567 = vld [vmem:[%s3565 + $0x8] sm:$0xff]
        %v3568 = vld [vmem:[%s3565 + $0x10] sm:$0xff]
        %v3569 = vld [vmem:[%s3565 + $0x18] sm:$0xff]
        %v3570 = vlaneseq
        %v3571 = vshrl.u32 %v3570, 7
        %v3572 = vsub.s32 3, %v3571
        %v3573 = vrot.slane %v2187, %v3572
        %v3575 = vsel %vm2064, %v3563, 0
        %v3578 = vsel %vm2064, %v3564, 0
        %3580 = vmatprep.subr.mxu0 0.0
        %3581 = vmatpush1.msra.mxu0 %v3566
        %3582 = vmatprep.subr.mxu0 0.0
        %3583 = vmatpush1.msra.mxu0 %v3567
        %3584 = vmatprep.subr.mxu0 0.0
        %3585 = vmatpush1.msra.mxu0 %v3568
        %3586 = vmatprep.subr.mxu0 0.0
        %3587 = vmatpush1.msra.mxu0 %v3569
        %3588 = vmatprep.subr.mxu0 0.0
        %3589 = vmatpush1.msra.mxu0 0.0
        %3590 = vmatprep.subr.mxu0 0.0
        %3591 = vmatpush1.msra.mxu0 0.0
        %3592 = vmatprep.subr.mxu0 0.0
        %3593 = vmatpush1.msra.mxu0 0.0
        %3594 = vmatprep.subr.mxu0 0.0
        %3595 = vmatpush1.msra.mxu0 0.0
        %3596 = vmatprep.subr.mxu0 0.0
        %3597 = vmatpush1.msra.mxu0 0.0
        %3598 = vmatprep.subr.mxu0 0.0
        %3599 = vmatpush1.msra.mxu0 0.0
        %3600 = vmatprep.subr.mxu0 0.0
        %3601 = vmatpush1.msra.mxu0 0.0
        %3602 = vmatprep.subr.mxu0 0.0
        %3603 = vmatpush1.msra.mxu0 0.0
        %3604 = vmatprep.subr.mxu0 0.0
        %3605 = vmatpush1.msra.mxu0 0.0
        %3606 = vmatprep.subr.mxu0 0.0
        %3607 = vmatpush1.msra.mxu0 0.0
        %3608 = vmatprep.subr.mxu0 0.0
        %3609 = vmatpush1.msra.mxu0 0.0
        %3610 = vmatprep.subr.mxu0 0.0
        %3611 = vmatpush1.msra.mxu0 0.0
        %3612 = vmatprep.subr.mxu0 0.0
        %3613 = vmatpush1.msra.mxu0 0.0
        %3614 = vmatprep.subr.mxu0 0.0
        %3615 = vmatpush1.msra.mxu0 0.0
        %3616 = vmatprep.subr.mxu0 0.0
        %3617 = vmatpush1.msra.mxu0 0.0
        %3618 = vmatprep.subr.mxu0 0.0
        %3619 = vmatpush1.msra.mxu0 0.0
        %3620 = vmatprep.subr.mxu0 0.0
        %3621 = vmatpush1.msra.mxu0 0.0
        %3622 = vmatprep.subr.mxu0 0.0
        %3623 = vmatpush1.msra.mxu0 0.0
        %3624 = vmatprep.subr.mxu0 0.0
        %3625 = vmatpush1.msra.mxu0 0.0
        %3626 = vmatprep.subr.mxu0 0.0
        %3627 = vmatpush1.msra.mxu0 0.0
        %3628 = vmatprep.subr.mxu0 0.0
        %3629 = vmatpush1.msra.mxu0 0.0
        %3630 = vmatprep.subr.mxu0 0.0
        %3631 = vmatpush1.msra.mxu0 0.0
        %3632 = vmatprep.subr.mxu0 0.0
        %3633 = vmatpush1.msra.mxu0 0.0
        %3634 = vmatprep.subr.mxu0 0.0
        %3635 = vmatpush1.msra.mxu0 0.0
        %3636 = vmatprep.subr.mxu0 0.0
        %3637 = vmatpush1.msra.mxu0 0.0
        %3638 = vmatprep.subr.mxu0 0.0
        %3639 = vmatpush1.msra.mxu0 0.0
        %3640 = vmatprep.subr.mxu0 0.0
        %3641 = vmatpush1.msra.mxu0 0.0
        %3642 = vmatprep.subr.mxu0 0.0
        %3643 = vmatpush1.msra.mxu0 0.0
        %3644 = vmatprep.mubr.f32.mxu0 0.0
        %3645 = vmatmul.mubr.f32.gmra.mrb[0].mxu0 %v3575
        %v3646 = vpop.f32.mrb[0].mxu0
        %v3647 = vadd.f32 %v3573, %v3646
        %v3648 = vpop.f32.mrb[0].mxu0
        %3649 = vmatprep.mubr.f32.mxu0 0.0
        %3650 = vmatmul.mubr.f32.gmra.mrb[0].mxu0 %v3578
        %v3651 = vpop.f32.mrb[0].mxu0
        %v3652 = vadd.f32 %v3573, %v3651
        %v3653 = vpop.f32.mrb[0].mxu0
        %3654 = vdwg.mxu0
        %v3655 = vadd.f32 %v3469, %v3647
        %v3656 = vadd.f32 %v3470, %v3652
        %v3657 = vsel %vm689, %v3655, 0.0
        %3658 = vadd.xlane.f32.xlu0 %v3657
        %v3659 = vpop.xlane.xlu0 %3658
        %v3660 = vsel %vm689, %v3656, 0.0
        %3661 = vadd.xlane.f32.xlu0 %v3660
        %v3662 = vpop.xlane.xlu0 %3661
        %v3663 = vmul.f32 %v3659, %v1931
        %v3664 = vmul.f32 %v3662, %v1931
        %v3665 = vsub.f32 %v3655, %v3663
        %v3666 = vsub.f32 %v3656, %v3664
        %v3667 = vmul.f32 %v3665, %v3665
        %v3668 = vmul.f32 %v3666, %v3666
        %v3669 = vsel %vm689, %v3667, 0.0
        %3670 = vadd.xlane.f32.xlu0 %v3669
        %v3671 = vpop.xlane.xlu0 %3670
        %v3672 = vsel %vm689, %v3668, 0.0
        %3673 = vadd.xlane.f32.xlu0 %v3672
        %v3674 = vpop.xlane.xlu0 %3673
        %v3675 = vmul.f32 %v3671, %v1931
        %v3676 = vmul.f32 %v3674, %v1931
        %v3677 = vadd.f32 %v3675, 1e-05
        %v3678 = vadd.f32 %v3676, 1e-05
        %v3679 = vrsqrt.pop %v3677
        %v3680 = vrsqrt.pop %v3678
        %v3681 = vmul.f32 %v3665, %v3679
        %v3682 = vmul.f32 %v3666, %v3680
        %v3683 = vlaneseq
        %v3684 = vshrl.u32 %v3683, 7
        %v3685 = vsub.s32 4, %v3684
        %v3686 = vrot.slane %v2187, %v3685
        %v3687 = vmul.f32 %v3681, %v3686
        %v3688 = vmul.f32 %v3682, %v3686
        %v3689 = vlaneseq
        %v3690 = vshrl.u32 %v3689, 7
        %v3691 = vsub.s32 5, %v3690
        %v3692 = vrot.slane %v2187, %v3691
        %v3693 = vadd.f32 %v3687, %v3692
        %v3694 = vadd.f32 %v3688, %v3692
        %v3695 = vmul.f32 %v3693, %v677
        %v3696 = vmul.f32 %v3694, %v678
        %v3697 = vsel %vm689, %v3695, 0.0
        %v3698 = vsel %vm689, %v3696, 0.0
        %v3699 = vadd.f32 %v3697, %v3698
        %v3700 = vrot.slane %v3699, 4
        %v3701 = vadd.f32 %v3699, %v3700
        %v3702 = vrot.slane %v3701, 2
        %v3703 = vadd.f32 %v3701, %v3702
        %v3704 = vrot.slane %v3703, 1
        %v3705 = vadd.f32 %v3703, %v3704
        %s3706 = scvt.s32.f32 %s664
        %s3707 = sadd.f32 %s3706, 1.0
        %v3708 = vstv %s3707
        %v3709 = vrcp.pop %v3708
        %v3710 = vmul.f32 %v3705, %v3709
        %v3711 = vld [vmem:[%s566] sm:$0x1]
        %v3712 = vld [vmem:[%s12] sm:$0xf]
        %v3713 = vld [vmem:[%s13] sm:$0x1]
        %v3715 = vsel %vm781, %v3711, 0
        %v3718 = vsel %vm1184, %v3712, 0
        %3720 = vmatprep.subr.mxu0 0.0
        %3721 = vmatpush1.msra.mxu0 %v3718
        %3722 = vmatprep.subr.mxu0 0.0
        %3723 = vmatpush1.msra.mxu0 0.0
        %3724 = vmatprep.subr.mxu0 0.0
        %3725 = vmatpush1.msra.mxu0 0.0
        %3726 = vmatprep.subr.mxu0 0.0
        %3727 = vmatpush1.msra.mxu0 0.0
        %3728 = vmatprep.subr.mxu0 0.0
        %3729 = vmatpush1.msra.mxu0 0.0
        %3730 = vmatprep.subr.mxu0 0.0
        %3731 = vmatpush1.msra.mxu0 0.0
        %3732 = vmatprep.subr.mxu0 0.0
        %3733 = vmatpush1.msra.mxu0 0.0
        %3734 = vmatprep.subr.mxu0 0.0
        %3735 = vmatpush1.msra.mxu0 0.0
        %3736 = vmatprep.subr.mxu0 0.0
        %3737 = vmatpush1.msra.mxu0 0.0
        %3738 = vmatprep.subr.mxu0 0.0
        %3739 = vmatpush1.msra.mxu0 0.0
        %3740 = vmatprep.subr.mxu0 0.0
        %3741 = vmatpush1.msra.mxu0 0.0
        %3742 = vmatprep.subr.mxu0 0.0
        %3743 = vmatpush1.msra.mxu0 0.0
        %3744 = vmatprep.subr.mxu0 0.0
        %3745 = vmatpush1.msra.mxu0 0.0
        %3746 = vmatprep.subr.mxu0 0.0
        %3747 = vmatpush1.msra.mxu0 0.0
        %3748 = vmatprep.subr.mxu0 0.0
        %3749 = vmatpush1.msra.mxu0 0.0
        %3750 = vmatprep.subr.mxu0 0.0
        %3751 = vmatpush1.msra.mxu0 0.0
        %3752 = vmatprep.subr.mxu0 0.0
        %3753 = vmatpush1.msra.mxu0 0.0
        %3754 = vmatprep.subr.mxu0 0.0
        %3755 = vmatpush1.msra.mxu0 0.0
        %3756 = vmatprep.subr.mxu0 0.0
        %3757 = vmatpush1.msra.mxu0 0.0
        %3758 = vmatprep.subr.mxu0 0.0
        %3759 = vmatpush1.msra.mxu0 0.0
        %3760 = vmatprep.subr.mxu0 0.0
        %3761 = vmatpush1.msra.mxu0 0.0
        %3762 = vmatprep.subr.mxu0 0.0
        %3763 = vmatpush1.msra.mxu0 0.0
        %3764 = vmatprep.subr.mxu0 0.0
        %3765 = vmatpush1.msra.mxu0 0.0
        %3766 = vmatprep.subr.mxu0 0.0
        %3767 = vmatpush1.msra.mxu0 0.0
        %3768 = vmatprep.subr.mxu0 0.0
        %3769 = vmatpush1.msra.mxu0 0.0
        %3770 = vmatprep.subr.mxu0 0.0
        %3771 = vmatpush1.msra.mxu0 0.0
        %3772 = vmatprep.subr.mxu0 0.0
        %3773 = vmatpush1.msra.mxu0 0.0
        %3774 = vmatprep.subr.mxu0 0.0
        %3775 = vmatpush1.msra.mxu0 0.0
        %3776 = vmatprep.subr.mxu0 0.0
        %3777 = vmatpush1.msra.mxu0 0.0
        %3778 = vmatprep.subr.mxu0 0.0
        %3779 = vmatpush1.msra.mxu0 0.0
        %3780 = vmatprep.subr.mxu0 0.0
        %3781 = vmatpush1.msra.mxu0 0.0
        %3782 = vmatprep.subr.mxu0 0.0
        %3783 = vmatpush1.msra.mxu0 0.0
        %3784 = vmatprep.mubr.f32.mxu0 0.0
        %3785 = vmatmul.mubr.f32.gmra.mrb[0].mxu0 %v3715
        %v3786 = vpop.f32.mrb[0].mxu0
        %v3787 = vadd.f32 %v3713, %v3786
        %v3788 = vpop.f32.mrb[0].mxu0
        %3789 = vdwg.mxu0
        %v3790 = vld [vmem:[%s14] sm:$0xff]
        %v3791 = vld [vmem:[%s14 + $0x8] sm:$0xff]
        %v3792 = vld [vmem:[%s14 + $0x10] sm:$0xff]
        %vm3793 = vcmask 64512
        %v3795 = vsel %vm3793, %v3787, 0
        %3797 = vmatprep.subr.mxu0 0.0
        %3798 = vmatpush1.msra.mxu0 %v3792
        %3799 = vmatprep.subr.mxu0 0.0
        %3800 = vmatpush1.msra.mxu0 0.0
        %3801 = vmatprep.subr.mxu0 0.0
        %3802 = vmatpush1.msra.mxu0 0.0
        %3803 = vmatprep.subr.mxu0 0.0
        %3804 = vmatpush1.msra.mxu0 0.0
        %3805 = vmatprep.subr.mxu0 0.0
        %3806 = vmatpush1.msra.mxu0 0.0
        %3807 = vmatprep.subr.mxu0 0.0
        %3808 = vmatpush1.msra.mxu0 0.0
        %3809 = vmatprep.subr.mxu0 0.0
        %3810 = vmatpush1.msra.mxu0 0.0
        %3811 = vmatprep.subr.mxu0 0.0
        %3812 = vmatpush1.msra.mxu0 0.0
        %3813 = vmatprep.subr.mxu0 0.0
        %3814 = vmatpush1.msra.mxu0 0.0
        %3815 = vmatprep.subr.mxu0 0.0
        %3816 = vmatpush1.msra.mxu0 0.0
        %3817 = vmatprep.subr.mxu0 0.0
        %3818 = vmatpush1.msra.mxu0 0.0
        %3819 = vmatprep.subr.mxu0 0.0
        %3820 = vmatpush1.msra.mxu0 0.0
        %3821 = vmatprep.subr.mxu0 0.0
        %3822 = vmatpush1.msra.mxu0 0.0
        %3823 = vmatprep.subr.mxu0 0.0
        %3824 = vmatpush1.msra.mxu0 0.0
        %3825 = vmatprep.subr.mxu0 0.0
        %3826 = vmatpush1.msra.mxu0 0.0
        %3827 = vmatprep.subr.mxu0 0.0
        %3828 = vmatpush1.msra.mxu0 0.0
        %3829 = vmatprep.subr.mxu0 0.0
        %3830 = vmatpush1.msra.mxu0 0.0
        %3831 = vmatprep.subr.mxu0 0.0
        %3832 = vmatpush1.msra.mxu0 0.0
        %3833 = vmatprep.subr.mxu0 0.0
        %3834 = vmatpush1.msra.mxu0 0.0
        %3835 = vmatprep.subr.mxu0 0.0
        %3836 = vmatpush1.msra.mxu0 0.0
        %3837 = vmatprep.subr.mxu0 0.0
        %3838 = vmatpush1.msra.mxu0 0.0
        %3839 = vmatprep.subr.mxu0 0.0
        %3840 = vmatpush1.msra.mxu0 0.0
        %3841 = vmatprep.subr.mxu0 0.0
        %3842 = vmatpush1.msra.mxu0 0.0
        %3843 = vmatprep.subr.mxu0 0.0
        %3844 = vmatpush1.msra.mxu0 0.0
        %3845 = vmatprep.subr.mxu0 0.0
        %3846 = vmatpush1.msra.mxu0 0.0
        %3847 = vmatprep.subr.mxu0 0.0
        %3848 = vmatpush1.msra.mxu0 0.0
        %3849 = vmatprep.subr.mxu0 0.0
        %3850 = vmatpush1.msra.mxu0 0.0
        %3851 = vmatprep.subr.mxu0 0.0
        %3852 = vmatpush1.msra.mxu0 0.0
        %3853 = vmatprep.subr.mxu0 0.0
        %3854 = vmatpush1.msra.mxu0 0.0
        %3855 = vmatprep.subr.mxu0 0.0
        %3856 = vmatpush1.msra.mxu0 0.0
        %3857 = vmatprep.subr.mxu0 0.0
        %3858 = vmatpush1.msra.mxu0 0.0
        %3859 = vmatprep.subr.mxu0 0.0
        %3860 = vmatpush1.msra.mxu0 0.0
        %3861 = vmatprep.mubr.f32.mxu0 0.0
        %3862 = vmatmul.mubr.f32.gmra.mrb[0].mxu0 %v3795
        %v3863 = vpop.f32.mrb[0].mxu0
        %v3864 = vadd.f32 0.0, %v3863
        %v3865 = vpop.f32.mrb[0].mxu0
        %3866 = vdwg.mxu0
        %v3868 = vsel %vm689, %v3710, 0
        %3870 = vmatprep.subr.mxu0 0.0
        %3871 = vmatpush1.msra.mxu0 %v3790
        %3872 = vmatprep.subr.mxu0 0.0
        %3873 = vmatpush1.msra.mxu0 %v3791
        %3874 = vmatprep.subr.mxu0 0.0
        %3875 = vmatpush1.msra.mxu0 0.0
        %3876 = vmatprep.subr.mxu0 0.0
        %3877 = vmatpush1.msra.mxu0 0.0
        %3878 = vmatprep.subr.mxu0 0.0
        %3879 = vmatpush1.msra.mxu0 0.0
        %3880 = vmatprep.subr.mxu0 0.0
        %3881 = vmatpush1.msra.mxu0 0.0
        %3882 = vmatprep.subr.mxu0 0.0
        %3883 = vmatpush1.msra.mxu0 0.0
        %3884 = vmatprep.subr.mxu0 0.0
        %3885 = vmatpush1.msra.mxu0 0.0
        %3886 = vmatprep.subr.mxu0 0.0
        %3887 = vmatpush1.msra.mxu0 0.0
        %3888 = vmatprep.subr.mxu0 0.0
        %3889 = vmatpush1.msra.mxu0 0.0
        %3890 = vmatprep.subr.mxu0 0.0
        %3891 = vmatpush1.msra.mxu0 0.0
        %3892 = vmatprep.subr.mxu0 0.0
        %3893 = vmatpush1.msra.mxu0 0.0
        %3894 = vmatprep.subr.mxu0 0.0
        %3895 = vmatpush1.msra.mxu0 0.0
        %3896 = vmatprep.subr.mxu0 0.0
        %3897 = vmatpush1.msra.mxu0 0.0
        %3898 = vmatprep.subr.mxu0 0.0
        %3899 = vmatpush1.msra.mxu0 0.0
        %3900 = vmatprep.subr.mxu0 0.0
        %3901 = vmatpush1.msra.mxu0 0.0
        %3902 = vmatprep.subr.mxu0 0.0
        %3903 = vmatpush1.msra.mxu0 0.0
        %3904 = vmatprep.subr.mxu0 0.0
        %3905 = vmatpush1.msra.mxu0 0.0
        %3906 = vmatprep.subr.mxu0 0.0
        %3907 = vmatpush1.msra.mxu0 0.0
        %3908 = vmatprep.subr.mxu0 0.0
        %3909 = vmatpush1.msra.mxu0 0.0
        %3910 = vmatprep.subr.mxu0 0.0
        %3911 = vmatpush1.msra.mxu0 0.0
        %3912 = vmatprep.subr.mxu0 0.0
        %3913 = vmatpush1.msra.mxu0 0.0
        %3914 = vmatprep.subr.mxu0 0.0
        %3915 = vmatpush1.msra.mxu0 0.0
        %3916 = vmatprep.subr.mxu0 0.0
        %3917 = vmatpush1.msra.mxu0 0.0
        %3918 = vmatprep.subr.mxu0 0.0
        %3919 = vmatpush1.msra.mxu0 0.0
        %3920 = vmatprep.subr.mxu0 0.0
        %3921 = vmatpush1.msra.mxu0 0.0
        %3922 = vmatprep.subr.mxu0 0.0
        %3923 = vmatpush1.msra.mxu0 0.0
        %3924 = vmatprep.subr.mxu0 0.0
        %3925 = vmatpush1.msra.mxu0 0.0
        %3926 = vmatprep.subr.mxu0 0.0
        %3927 = vmatpush1.msra.mxu0 0.0
        %3928 = vmatprep.subr.mxu0 0.0
        %3929 = vmatpush1.msra.mxu0 0.0
        %3930 = vmatprep.subr.mxu0 0.0
        %3931 = vmatpush1.msra.mxu0 0.0
        %3932 = vmatprep.subr.mxu0 0.0
        %3933 = vmatpush1.msra.mxu0 0.0
        %3934 = vmatprep.mubr.f32.mxu0 0.0
        %3935 = vmatmul.mubr.f32.gmra.mrb[0].mxu0 %v3868
        %v3936 = vpop.f32.mrb[0].mxu0
        %v3937 = vadd.f32 %v3864, %v3936
        %v3938 = vpop.f32.mrb[0].mxu0
        %3939 = vdwg.mxu0
        %v3940 = vld [vmem:[%s15] sm:$0x1]
        %v3941 = vadd.f32 %v3937, %v3940
        %v3942 = vmax.f32 %v3941, 0.0
        %v3943 = vld [vmem:[%s16] sm:$0xff]
        %v3944 = vld [vmem:[%s16 + $0x8] sm:$0xff]
        %v3945 = vld [vmem:[%s16 + $0x10] sm:$0xff]
        %v3946 = vld [vmem:[%s17] sm:$0x1]
        %vm3947 = vcmask 195584
        %v3949 = vsel %vm3947, %v3942, 0
        %3951 = vmatprep.subr.mxu0 0.0
        %3952 = vmatpush1.msra.mxu0 %v3943
        %3953 = vmatprep.subr.mxu0 0.0
        %3954 = vmatpush1.msra.mxu0 %v3944
        %3955 = vmatprep.subr.mxu0 0.0
        %3956 = vmatpush1.msra.mxu0 %v3945
        %3957 = vmatprep.subr.mxu0 0.0
        %3958 = vmatpush1.msra.mxu0 0.0
        %3959 = vmatprep.subr.mxu0 0.0
        %3960 = vmatpush1.msra.mxu0 0.0
        %3961 = vmatprep.subr.mxu0 0.0
        %3962 = vmatpush1.msra.mxu0 0.0
        %3963 = vmatprep.subr.mxu0 0.0
        %3964 = vmatpush1.msra.mxu0 0.0
        %3965 = vmatprep.subr.mxu0 0.0
        %3966 = vmatpush1.msra.mxu0 0.0
        %3967 = vmatprep.subr.mxu0 0.0
        %3968 = vmatpush1.msra.mxu0 0.0
        %3969 = vmatprep.subr.mxu0 0.0
        %3970 = vmatpush1.msra.mxu0 0.0
        %3971 = vmatprep.subr.mxu0 0.0
        %3972 = vmatpush1.msra.mxu0 0.0
        %3973 = vmatprep.subr.mxu0 0.0
        %3974 = vmatpush1.msra.mxu0 0.0
        %3975 = vmatprep.subr.mxu0 0.0
        %3976 = vmatpush1.msra.mxu0 0.0
        %3977 = vmatprep.subr.mxu0 0.0
        %3978 = vmatpush1.msra.mxu0 0.0
        %3979 = vmatprep.subr.mxu0 0.0
        %3980 = vmatpush1.msra.mxu0 0.0
        %3981 = vmatprep.subr.mxu0 0.0
        %3982 = vmatpush1.msra.mxu0 0.0
        %3983 = vmatprep.subr.mxu0 0.0
        %3984 = vmatpush1.msra.mxu0 0.0
        %3985 = vmatprep.subr.mxu0 0.0
        %3986 = vmatpush1.msra.mxu0 0.0
        %3987 = vmatprep.subr.mxu0 0.0
        %3988 = vmatpush1.msra.mxu0 0.0
        %3989 = vmatprep.subr.mxu0 0.0
        %3990 = vmatpush1.msra.mxu0 0.0
        %3991 = vmatprep.subr.mxu0 0.0
        %3992 = vmatpush1.msra.mxu0 0.0
        %3993 = vmatprep.subr.mxu0 0.0
        %3994 = vmatpush1.msra.mxu0 0.0
        %3995 = vmatprep.subr.mxu0 0.0
        %3996 = vmatpush1.msra.mxu0 0.0
        %3997 = vmatprep.subr.mxu0 0.0
        %3998 = vmatpush1.msra.mxu0 0.0
        %3999 = vmatprep.subr.mxu0 0.0
        %4000 = vmatpush1.msra.mxu0 0.0
        %4001 = vmatprep.subr.mxu0 0.0
        %4002 = vmatpush1.msra.mxu0 0.0
        %4003 = vmatprep.subr.mxu0 0.0
        %4004 = vmatpush1.msra.mxu0 0.0
        %4005 = vmatprep.subr.mxu0 0.0
        %4006 = vmatpush1.msra.mxu0 0.0
        %4007 = vmatprep.subr.mxu0 0.0
        %4008 = vmatpush1.msra.mxu0 0.0
        %4009 = vmatprep.subr.mxu0 0.0
        %4010 = vmatpush1.msra.mxu0 0.0
        %4011 = vmatprep.subr.mxu0 0.0
        %4012 = vmatpush1.msra.mxu0 0.0
        %4013 = vmatprep.subr.mxu0 0.0
        %4014 = vmatpush1.msra.mxu0 0.0
        %4015 = vmatprep.mubr.f32.mxu0 0.0
        %4016 = vmatmul.mubr.f32.gmra.mrb[0].mxu0 %v3949
        %v4017 = vpop.f32.mrb[0].mxu0
        %v4018 = vadd.f32 %v3946, %v4017
        %v4019 = vpop.f32.mrb[0].mxu0
        %4020 = vdwg.mxu0
        %vm4021 = vcmask 16384
        %4022 = vst.msk [vmem:[%s558] sm:$0x1] %vm4021, %v4018
        %s4023 = sand.u32 %s413, 1
        %s4024 = scalar_lea.sflag [#allocation5], %s4023
        %s4025 = sand.u32 %s413, 1
        %s4026 = scalar_lea.vmem [#allocation4], %s4025
        // Predicated region
        $region89: #{tpu_custom_call.1} parent=87 // pred_check
          %p4027 = pneg %p423
        $region90: #{tpu_custom_call.1} parent=87 // pred_check_branch
          %4029 = sbr.rel (%p4027) target = $region92
        $region91: #{tpu_custom_call.1} parent=87 // pred_region
          %s4031 = ssub.s32 16, 16
          %4032 = vsyncadd %s4024, %s4031
          %s4033 = smul.addr %s38, 16
          %s4034 = scalar_lea.hbm %s18, %s4033
          %s4036 = sshll.u32 %s4026, 4
          %s4037 = int_to_ptr.vmem [resolvable:$true] %s4036
          %4039 = dma.vmem_to_hbm [thread:$0]  %s4037, 16, %s4034, %s4024
        $region92: #{tpu_custom_call.1} parent=87 // pred_fallthru
          _
      $region88: #{tpu_custom_call.1} parent=5 // pred_fallthru
        _
      %p4040 = scmp.le.s32.totalorder 2, %s33
      // Predicated region
      $region93: #{tpu_custom_call.1} parent=5 // pred_check
        %p4041 = pneg %p4040
      $region94: #{tpu_custom_call.1} parent=5 // pred_check_branch
        %4043 = sbr.rel (%p4041) target = $region96
      $region95: #{tpu_custom_call.1} parent=5 // pred_region
        %s4044 = ssub.s32 %s33, 2
        // Predicated region
        $region97: #{tpu_custom_call.1} parent=95 // pred_check
          %p4045 = pneg %p429
        $region98: #{tpu_custom_call.1} parent=95 // pred_check_branch
          %4047 = sbr.rel (%p4045) target = $region100
        $region99: #{tpu_custom_call.1} parent=95 // pred_region
          %s4048 = sand.u32 %s414, 1
          %s4049 = scalar_lea.sflag [#allocation5], %s4048
          %s4050 = sand.u32 %s414, 1
          %s4051 = scalar_lea.vmem [#allocation4], %s4050
          %4052 = dma.done %s4049, 16
        $region100: #{tpu_custom_call.1} parent=95 // pred_fallthru
          _
      $region96: #{tpu_custom_call.1} parent=5 // pred_fallthru
        _
    $region6: #{tpu_custom_call.1} parent=1 // loop_footer
      %s37 = sadd.s32 1, %s33
    $region7: #{tpu_custom_call.1} parent=1 // loop_footer_branch
      %32 = sbr.rel target = $region3
    $region8: #{tpu_custom_call.1} parent=1 // loop_exit
      _
    %4053 = vsyncpa [#allocation5], 1
    %s4054 = scalar_lea.sflag [#allocation5], 1
    %4055 = vsyncpa %s4054, 1

</llo_original>
